<compile_context>
chip_gen: v7x
topology: tpu7x:2x2x1
jax: 0.10.0
libtpu: 0.0.40
codegen_flags: <defaults>
</compile_context>

<pallas_src>
import functools
import math

import jax
import jax.numpy as jnp
from jax.experimental import pallas as pl
from jax.experimental.pallas import tpu as pltpu


def decoder_block_kernel(
    x_ref, attn_mask_ref, pad_bias_ref,
    g1_ref, b1n_ref, g2_ref, b2n_ref,
    wqkv_ref, bqkv_ref, wo_ref, bo_ref,
    w1_ref, bf1_ref, w2_ref, bf2_ref,
    out_ref,
    *, n_heads: int,
):
    x = x_ref[...]                               # (Bt, L, E) f32
    Bt, L, E = x.shape
    d = E // n_heads

    xf = x.reshape(Bt * L, E)                    # leading-dim merge (free)

    # ---- shared LayerNorm statistics: LN1 and LN2 both normalize x -----------
    mean = jnp.mean(xf, axis=-1, keepdims=True)
    var = jnp.mean((xf - mean) ** 2, axis=-1, keepdims=True)
    xhat = (xf - mean) * jax.lax.rsqrt(var + 1e-5)
    xn1 = (xhat * g1_ref[...] + b1n_ref[...]).astype(jnp.bfloat16)
    xn2 = (xhat * g2_ref[...] + b2n_ref[...]).astype(jnp.bfloat16)

    # ---- attention branch: fused QKV projection (one wide bf16 matmul) -------
    # 1/sqrt(d) is already folded into the Q columns / bias by the wrapper.
    qkv = jnp.dot(xn1, wqkv_ref[...],
                  preferred_element_type=jnp.float32) + bqkv_ref[...]
    qkv_bf = qkv.astype(jnp.bfloat16).reshape(Bt, L, 3 * E)

    # additive mask hoisted out of the head loop (one temp, n_heads-1 fewer adds)
    mask = attn_mask_ref[...][None, :, :] + pad_bias_ref[...]   # (Bt, Lq, Lk)

    head_outs = []
    for h in range(n_heads):                     # static unrolled loop over heads
        qh = qkv_bf[:, :, h * d:(h + 1) * d]                  # (Bt, L, d)
        kh = qkv_bf[:, :, E + h * d:E + (h + 1) * d]          # (Bt, L, d)
        vh = qkv_bf[:, :, 2 * E + h * d:2 * E + (h + 1) * d]  # (Bt, L, d)

        s = jnp.einsum("bqd,bkd->bqk", qh, kh,
                       preferred_element_type=jnp.float32) + mask
        s = s - jnp.max(s, axis=-1, keepdims=True)
        p = jnp.exp(s)
        # EUP approximate reciprocal (separate issue slot) instead of a VPU divide
        p = p * pl.reciprocal(jnp.sum(p, axis=-1, keepdims=True), approx=True)
        oh = jnp.einsum("bqk,bkd->bqd", p.astype(jnp.bfloat16), vh,
                        preferred_element_type=jnp.float32)    # (Bt, L, d)
        head_outs.append(oh.reshape(Bt * L, d))

    # concat heads in registers (no VMEM scratch / masked partial stores) and run
    # ONE (M,E)x(E,E) output projection with a single bias add.
    attn = jnp.concatenate(head_outs, axis=-1).astype(jnp.bfloat16)   # (Bt*L, E)
    attn_out = jnp.dot(attn, wo_ref[...],
                       preferred_element_type=jnp.float32) + bo_ref[...]
    h_res = attn_out + xf

    # ---- FFN branch: LN2(x) -> Linear -> ReLU -> Linear (uses x, not h_res) --
    f = jnp.dot(xn2, w1_ref[...],
                preferred_element_type=jnp.float32) + bf1_ref[...]
    f = jnp.maximum(f, 0.0).astype(jnp.bfloat16)
    f = jnp.dot(f, w2_ref[...],
                preferred_element_type=jnp.float32) + bf2_ref[...]

    out_ref[...] = (h_res + f).reshape(Bt, L, E)


def _pick_block_b(B, L, target_rows=512):
    # Largest divisor of B with block_b * L <= target_rows (MXU-friendly M),
    # capped at B//2 so the "parallel" grid axis has >=2 steps and can shard
    # across v7x's two TensorCores (v5e/v6e are unaffected at these row counts).
    max_bb = max(1, B // 2)
    best = 1
    for cand in range(1, max_bb + 1):
        if B % cand == 0 and cand * L <= target_rows:
            best = cand
    return best


def _vmem_capacity_bytes():
    try:
        return int(pltpu.get_tpu_info().vmem_capacity_bytes)
    except Exception:
        return 64 << 20            # conservative fallback (v7x per-TC VMEM)


def pre_norm_decoder_block(x, attention_mask, padding_mask, params, n_heads, *, block_b=None):
    B, L, E = x.shape
    HID = params["w1"].shape[1]
    assert E % n_heads == 0
    d = E // n_heads
    if block_b is None:
        block_b = _pick_block_b(B, L)
    assert B % block_b == 0
    grid_b = B // block_b

    # key_padding_mask (bool, True == pad) -> additive float bias, shaped (B, 1, L)
    pad_bias = jnp.where(padding_mask, -1e9, 0.0).astype(jnp.float32)[:, None, :]
    attn_mask = attention_mask.astype(jnp.float32)

    # Fuse Q/K/V weights into one (E, 3E) bf16 projection; fold the 1/sqrt(d)
    # softmax scale into the Q columns (and Q bias).
    scale = 1.0 / math.sqrt(d)
    wqkv = jnp.concatenate([params["wq"] * scale, params["wk"], params["wv"]],
                           axis=1).astype(jnp.bfloat16)
    bqkv = jnp.concatenate([params["bq"] * scale, params["bk"], params["bv"]],
                           axis=1).astype(jnp.float32)
    wo = params["wo"].astype(jnp.bfloat16)
    w1 = params["w1"].astype(jnp.bfloat16)
    w2 = params["w2"].astype(jnp.bfloat16)

    args = [
        x, attn_mask, pad_bias,
        params["g1"], params["b1n"], params["g2"], params["b2n"],
        wqkv, bqkv, wo, params["bo"],
        w1, params["bf1"], w2, params["bf2"],
    ]

    def per_batch(shape):
        zeros = (0,) * (len(shape) - 1)
        return pl.BlockSpec(shape, lambda b, _z=zeros: (b,) + _z)

    # VMEM budget: bf16 single-buffered weights + double-buffered activation
    # blocks + live intermediates, clamped to this generation's physical VMEM
    # minus ~12 MiB headroom for compiler-internal scratch.
    f32b, bf16b = 4, 2
    weight_bytes = bf16b * (3 * E * E + E * E + 2 * E * HID)
    bias_bytes = f32b * (3 * E + E + HID + E + 4 * E)
    block_bytes = f32b * (2 * block_b * L * E + L * L + block_b * L)
    live_bytes = f32b * block_b * L * (8 * E + HID) + f32b * block_b * L * L * 4
    vmem_needed = weight_bytes + bias_bytes + 2 * block_bytes + live_bytes + (8 << 20)
    vmem_cap = max(_vmem_capacity_bytes() - (12 << 20), 16 << 20)
    vmem_limit = int(min(max(vmem_needed, 32 << 20), vmem_cap))

    kernel = functools.partial(decoder_block_kernel, n_heads=n_heads)

    def run(single_buffer_consts: bool):
        def shared(shape):
            # grid-invariant blocks (weights/biases/masks): single-buffer them,
            # their index_map never changes -> halves weight VMEM residency.
            zeros = (0,) * len(shape)
            kw = {"pipeline_mode": pl.Buffered(1)} if single_buffer_consts else {}
            return pl.BlockSpec(shape, lambda b, _z=zeros: _z, **kw)

        in_specs = [
            per_batch((block_b, L, E)),                                      # x
            shared((L, L)),                                                  # attn_mask
            per_batch((block_b, 1, L)),                                      # pad_bias
            shared((1, E)), shared((1, E)), shared((1, E)), shared((1, E)),  # g1,b1,g2,b2
            shared((E, 3 * E)), shared((1, 3 * E)),                          # wqkv, bqkv
            shared((E, E)), shared((1, E)),                                  # wo, bo
            shared((E, HID)), shared((1, HID)),                              # w1, bf1
            shared((HID, E)), shared((1, E)),                                # w2, bf2
        ]
        return pl.pallas_call(
            kernel,
            out_shape=jax.ShapeDtypeStruct((B, L, E), jnp.float32),
            grid=(grid_b,),
            in_specs=in_specs,
            out_specs=per_batch((block_b, L, E)),
            compiler_params=pltpu.CompilerParams(
                dimension_semantics=("parallel",),
                vmem_limit_bytes=vmem_limit,
            ),
        )(*args)

    try:
        return run(True)
    except Exception:
        # pl.Buffered(1) not accepted by this jax build: fall back to default
        # double-buffered constant blocks (correctness unaffected).
        return run(False)


def decoder_forward(x, attention_mask, padding_mask, layers, n_heads):
    # Decoder.forward: apply each (fused) decoder layer sequentially.
    for layer_params in layers:
        x = pre_norm_decoder_block(x, attention_mask, padding_mask, layer_params, n_heads)
    return x


def reference(x, attention_mask, padding_mask, layers, n_heads):
    # pure-JAX reference matching the PyTorch forward semantics
    def ln(t, g, b, eps=1e-5):
        m = jnp.mean(t, -1, keepdims=True)
        v = jnp.mean((t - m) ** 2, -1, keepdims=True)
        return (t - m) / jnp.sqrt(v + eps) * g + b

    B, L, E = x.shape
    d = E // n_heads
    pad_bias = jnp.where(padding_mask, -1e9, 0.0)[:, None, None, :]      # (B,1,1,L)

    for p in layers:
        xn = ln(x, p["g1"], p["b1n"])
        q = xn @ p["wq"] + p["bq"]
        k = xn @ p["wk"] + p["bk"]
        v = xn @ p["wv"] + p["bv"]
        qh = q.reshape(B, L, n_heads, d).transpose(0, 2, 1, 3)
        kh = k.reshape(B, L, n_heads, d).transpose(0, 2, 1, 3)
        vh = v.reshape(B, L, n_heads, d).transpose(0, 2, 1, 3)
        s = jnp.einsum("bhqd,bhkd->bhqk", qh, kh) / math.sqrt(d)
        s = s + attention_mask[None, None] + pad_bias
        prob = jax.nn.softmax(s, axis=-1)
        o = jnp.einsum("bhqk,bhkd->bhqd", prob, vh).transpose(0, 2, 1, 3).reshape(B, L, E)
        attn_out = o @ p["wo"] + p["bo"]
        h = attn_out + x
        xn2 = ln(x, p["g2"], p["b2n"])
        f = jnp.maximum(xn2 @ p["w1"] + p["bf1"], 0.0) @ p["w2"] + p["bf2"]
        x = h + f
    return x


if __name__ == "__main__":
    B, L, E, NH, HID, NUM_LAYERS = 2, 8, 32, 4, 64, 2

    key = jax.random.PRNGKey(0)
    kx, kparams = jax.random.split(key, 2)
    x = jax.random.normal(kx, (B, L, E), jnp.float32)

    # causal additive float attn_mask (0 = allowed, -1e9 = masked)
    causal = jnp.tril(jnp.ones((L, L), jnp.bool_))
    attention_mask = jnp.where(causal, 0.0, -1e9).astype(jnp.float32)
    # key_padding_mask: bool (B, L), True = pad; pad the last token of batch 1
    padding_mask = jnp.zeros((B, L), jnp.bool_).at[1, L - 1].set(True)

    def rnd(k, shape, scale=0.1):
        return (scale * jax.random.normal(k, shape)).astype(jnp.float32)

    # deterministic synthetic parameters (PyTorch Linear weights stored pre-transposed)
    layers = []
    for li in range(NUM_LAYERS):
        ks = jax.random.split(jax.random.fold_in(kparams, li), 12)
        layers.append(dict(
            g1=jnp.ones((1, E), jnp.float32), b1n=jnp.zeros((1, E), jnp.float32),
            g2=jnp.ones((1, E), jnp.float32), b2n=jnp.zeros((1, E), jnp.float32),
            wq=rnd(ks[0], (E, E)), wk=rnd(ks[1], (E, E)), wv=rnd(ks[2], (E, E)),
            bq=rnd(ks[3], (1, E)), bk=rnd(ks[4], (1, E)), bv=rnd(ks[5], (1, E)),
            wo=rnd(ks[6], (E, E)), bo=rnd(ks[7], (1, E)),
            w1=rnd(ks[8], (E, HID)), bf1=rnd(ks[9], (1, HID)),
            w2=rnd(ks[10], (HID, E)), bf2=rnd(ks[11], (1, E)),
        ))

    out = decoder_forward(x, attention_mask, padding_mask, layers, NH)
    out = jax.block_until_ready(out)

    with jax.default_matmul_precision("highest"):
        ref = jax.block_until_ready(reference(x, attention_mask, padding_mask, layers, NH))

    assert out.shape == (B, L, E)
    # tolerance sized for intentional bf16 MXU operands (f32 accumulation)
    assert jnp.allclose(out, ref, rtol=3e-2, atol=3e-2), "mismatch vs JAX reference"
    print("KERNEL_OK")
</pallas_src>

<mosaic_0001>
module attributes {stable_mosaic.version = 11 : i64} {
  func.func @decoder_block_kernel(%arg0: i32, %arg1: memref<1x8x32xf32, #tpu.memory_space<vmem>>, %arg2: memref<8x8xf32, #tpu.memory_space<vmem>>, %arg3: memref<1x1x8xf32, #tpu.memory_space<vmem>>, %arg4: memref<1x32xf32, #tpu.memory_space<vmem>>, %arg5: memref<1x32xf32, #tpu.memory_space<vmem>>, %arg6: memref<1x32xf32, #tpu.memory_space<vmem>>, %arg7: memref<1x32xf32, #tpu.memory_space<vmem>>, %arg8: memref<32x96xbf16, #tpu.memory_space<vmem>>, %arg9: memref<1x96xf32, #tpu.memory_space<vmem>>, %arg10: memref<32x32xbf16, #tpu.memory_space<vmem>>, %arg11: memref<1x32xf32, #tpu.memory_space<vmem>>, %arg12: memref<32x64xbf16, #tpu.memory_space<vmem>>, %arg13: memref<1x64xf32, #tpu.memory_space<vmem>>, %arg14: memref<64x32xbf16, #tpu.memory_space<vmem>>, %arg15: memref<1x32xf32, #tpu.memory_space<vmem>>, %arg16: memref<1x8x32xf32, #tpu.memory_space<vmem>>) attributes {dimension_semantics = [#tpu.dimension_semantics<parallel>], iteration_bounds = array<i64: 2>, scalar_prefetch = 0 : i64, scratch_operands = 0 : i64, tpu.core_type = #tpu.core_type<tc>, window_params = [{transform_indices = @transform_0, window_bounds = array<i64: 1, 8, 32>}, {pipeline_mode = #tpu.pipeline_mode<synchronous>, transform_indices = @transform_1, window_bounds = array<i64: 8, 8>}, {transform_indices = @transform_2, window_bounds = array<i64: 1, 1, 8>}, {pipeline_mode = #tpu.pipeline_mode<synchronous>, transform_indices = @transform_3, window_bounds = array<i64: 1, 32>}, {pipeline_mode = #tpu.pipeline_mode<synchronous>, transform_indices = @transform_4, window_bounds = array<i64: 1, 32>}, {pipeline_mode = #tpu.pipeline_mode<synchronous>, transform_indices = @transform_5, window_bounds = array<i64: 1, 32>}, {pipeline_mode = #tpu.pipeline_mode<synchronous>, transform_indices = @transform_6, window_bounds = array<i64: 1, 32>}, {pipeline_mode = #tpu.pipeline_mode<synchronous>, transform_indices = @transform_7, window_bounds = array<i64: 32, 96>}, {pipeline_mode = #tpu.pipeline_mode<synchronous>, transform_indices = @transform_8, window_bounds = array<i64: 1, 96>}, {pipeline_mode = #tpu.pipeline_mode<synchronous>, transform_indices = @transform_9, window_bounds = array<i64: 32, 32>}, {pipeline_mode = #tpu.pipeline_mode<synchronous>, transform_indices = @transform_10, window_bounds = array<i64: 1, 32>}, {pipeline_mode = #tpu.pipeline_mode<synchronous>, transform_indices = @transform_11, window_bounds = array<i64: 32, 64>}, {pipeline_mode = #tpu.pipeline_mode<synchronous>, transform_indices = @transform_12, window_bounds = array<i64: 1, 64>}, {pipeline_mode = #tpu.pipeline_mode<synchronous>, transform_indices = @transform_13, window_bounds = array<i64: 64, 32>}, {pipeline_mode = #tpu.pipeline_mode<synchronous>, transform_indices = @transform_14, window_bounds = array<i64: 1, 32>}, {transform_indices = @transform_15, window_bounds = array<i64: 1, 8, 32>}]} {
    %c0 = arith.constant 0 : index
    %c0_0 = arith.constant 0 : index
    %c0_1 = arith.constant 0 : index
    %0 = vector.load %arg1[%c0, %c0_0, %c0_1] : memref<1x8x32xf32, #tpu.memory_space<vmem>>, vector<1x8x32xf32>
    %1 = vector.shape_cast %0 : vector<1x8x32xf32> to vector<8x32xf32>
    %cst = arith.constant dense<0.000000e+00> : vector<8xf32>
    %2 = vector.multi_reduction <add>, %1, %cst [1] : vector<8x32xf32> to vector<8xf32>
    %3 = vector.shape_cast %2 : vector<8xf32> to vector<8x1xf32>
    %cst_2 = arith.constant 3.200000e+01 : f32
    %4 = vector.broadcast %cst_2 : f32 to vector<8x1xf32>
    %5 = arith.divf %3, %4 : vector<8x1xf32>
    %6 = vector.broadcast %5 : vector<8x1xf32> to vector<8x32xf32>
    %7 = arith.subf %1, %6 : vector<8x32xf32>
    %8 = arith.mulf %7, %7 : vector<8x32xf32>
    %cst_3 = arith.constant dense<0.000000e+00> : vector<8xf32>
    %9 = vector.multi_reduction <add>, %8, %cst_3 [1] : vector<8x32xf32> to vector<8xf32>
    %10 = vector.shape_cast %9 : vector<8xf32> to vector<8x1xf32>
    %cst_4 = arith.constant 3.200000e+01 : f32
    %11 = vector.broadcast %cst_4 : f32 to vector<8x1xf32>
    %12 = arith.divf %10, %11 : vector<8x1xf32>
    %13 = vector.broadcast %5 : vector<8x1xf32> to vector<8x32xf32>
    %14 = arith.subf %1, %13 : vector<8x32xf32>
    %cst_5 = arith.constant 9.99999974E-6 : f32
    %15 = vector.broadcast %cst_5 : f32 to vector<8x1xf32>
    %16 = arith.addf %12, %15 : vector<8x1xf32>
    %17 = math.rsqrt %16 : vector<8x1xf32>
    %18 = vector.broadcast %17 : vector<8x1xf32> to vector<8x32xf32>
    %19 = arith.mulf %14, %18 : vector<8x32xf32>
    %c0_6 = arith.constant 0 : index
    %c0_7 = arith.constant 0 : index
    %20 = vector.load %arg4[%c0_6, %c0_7] : memref<1x32xf32, #tpu.memory_space<vmem>>, vector<1x32xf32>
    %21 = vector.broadcast %20 : vector<1x32xf32> to vector<8x32xf32>
    %22 = arith.mulf %19, %21 : vector<8x32xf32>
    %c0_8 = arith.constant 0 : index
    %c0_9 = arith.constant 0 : index
    %23 = vector.load %arg5[%c0_8, %c0_9] : memref<1x32xf32, #tpu.memory_space<vmem>>, vector<1x32xf32>
    %24 = vector.broadcast %23 : vector<1x32xf32> to vector<8x32xf32>
    %25 = arith.addf %22, %24 : vector<8x32xf32>
    %26 = arith.truncf %25 : vector<8x32xf32> to vector<8x32xbf16>
    %c0_10 = arith.constant 0 : index
    %c0_11 = arith.constant 0 : index
    %27 = vector.load %arg6[%c0_10, %c0_11] : memref<1x32xf32, #tpu.memory_space<vmem>>, vector<1x32xf32>
    %28 = vector.broadcast %27 : vector<1x32xf32> to vector<8x32xf32>
    %29 = arith.mulf %19, %28 : vector<8x32xf32>
    %c0_12 = arith.constant 0 : index
    %c0_13 = arith.constant 0 : index
    %30 = vector.load %arg7[%c0_12, %c0_13] : memref<1x32xf32, #tpu.memory_space<vmem>>, vector<1x32xf32>
    %31 = vector.broadcast %30 : vector<1x32xf32> to vector<8x32xf32>
    %32 = arith.addf %29, %31 : vector<8x32xf32>
    %33 = arith.truncf %32 : vector<8x32xf32> to vector<8x32xbf16>
    %c0_14 = arith.constant 0 : index
    %c0_15 = arith.constant 0 : index
    %34 = vector.load %arg8[%c0_14, %c0_15] : memref<32x96xbf16, #tpu.memory_space<vmem>>, vector<32x96xbf16>
    %cst_16 = arith.constant dense<0.000000e+00> : vector<8x96xf32>
    %35 = tpu.matmul %26, %34, %cst_16 {dimension_numbers = #tpu.dot_dimension_numbers<[1], [0], [0], [1], [0, 0, 1, 1], [], []>} : vector<8x32xbf16>, vector<32x96xbf16>, vector<8x96xf32> -> vector<8x96xf32>
    %c0_17 = arith.constant 0 : index
    %c0_18 = arith.constant 0 : index
    %36 = vector.load %arg9[%c0_17, %c0_18] : memref<1x96xf32, #tpu.memory_space<vmem>>, vector<1x96xf32>
    %37 = vector.broadcast %36 : vector<1x96xf32> to vector<8x96xf32>
    %38 = arith.addf %35, %37 : vector<8x96xf32>
    %39 = arith.truncf %38 : vector<8x96xf32> to vector<8x96xbf16>
    %40 = vector.shape_cast %39 : vector<8x96xbf16> to vector<1x8x96xbf16>
    %c0_19 = arith.constant 0 : index
    %c0_20 = arith.constant 0 : index
    %41 = vector.load %arg2[%c0_19, %c0_20] : memref<8x8xf32, #tpu.memory_space<vmem>>, vector<8x8xf32>
    %42 = vector.shape_cast %41 : vector<8x8xf32> to vector<1x8x8xf32>
    %c0_21 = arith.constant 0 : index
    %c0_22 = arith.constant 0 : index
    %c0_23 = arith.constant 0 : index
    %43 = vector.load %arg3[%c0_21, %c0_22, %c0_23] : memref<1x1x8xf32, #tpu.memory_space<vmem>>, vector<1x1x8xf32>
    %44 = vector.broadcast %43 : vector<1x1x8xf32> to vector<1x8x8xf32>
    %45 = arith.addf %42, %44 : vector<1x8x8xf32>
    %46 = vector.extract_strided_slice %40 {offsets = [0, 0, 0], sizes = [1, 8, 8], strides = [1, 1, 1]} : vector<1x8x96xbf16> to vector<1x8x8xbf16>
    %47 = vector.extract_strided_slice %40 {offsets = [0, 0, 32], sizes = [1, 8, 8], strides = [1, 1, 1]} : vector<1x8x96xbf16> to vector<1x8x8xbf16>
    %48 = vector.extract_strided_slice %40 {offsets = [0, 0, 64], sizes = [1, 8, 8], strides = [1, 1, 1]} : vector<1x8x96xbf16> to vector<1x8x8xbf16>
    "tpu.trace_start"() <{level = 10 : i32, message = "bqd,bkd->bqk"}> : () -> ()
    %cst_24 = arith.constant dense<0.000000e+00> : vector<1x8x8xf32>
    %49 = tpu.matmul %46, %47, %cst_24 {dimension_numbers = #tpu.dot_dimension_numbers<[2], [2], [1], [1], [0, 0, 0, 1, 1, 1], [0], [0]>} : vector<1x8x8xbf16>, vector<1x8x8xbf16>, vector<1x8x8xf32> -> vector<1x8x8xf32>
    "tpu.trace_stop"() : () -> ()
    %50 = arith.addf %49, %45 : vector<1x8x8xf32>
    %cst_25 = arith.constant dense<0xFF800000> : vector<1x8xf32>
    %51 = vector.multi_reduction <maximumf>, %50, %cst_25 [2] : vector<1x8x8xf32> to vector<1x8xf32>
    %52 = vector.shape_cast %51 : vector<1x8xf32> to vector<1x8x1xf32>
    %53 = vector.broadcast %52 : vector<1x8x1xf32> to vector<1x8x8xf32>
    %54 = arith.subf %50, %53 : vector<1x8x8xf32>
    %55 = math.exp %54 : vector<1x8x8xf32>
    %cst_26 = arith.constant dense<0.000000e+00> : vector<1x8xf32>
    %56 = vector.multi_reduction <add>, %55, %cst_26 [2] : vector<1x8x8xf32> to vector<1x8xf32>
    %57 = vector.shape_cast %56 : vector<1x8xf32> to vector<1x8x1xf32>
    %58 = tpu.reciprocal %57 {approx = true} : vector<1x8x1xf32> -> vector<1x8x1xf32>
    %59 = vector.broadcast %58 : vector<1x8x1xf32> to vector<1x8x8xf32>
    %60 = arith.mulf %55, %59 : vector<1x8x8xf32>
    %61 = arith.truncf %60 : vector<1x8x8xf32> to vector<1x8x8xbf16>
    "tpu.trace_start"() <{level = 10 : i32, message = "bqk,bkd->bqd"}> : () -> ()
    %cst_27 = arith.constant dense<0.000000e+00> : vector<1x8x8xf32>
    %62 = tpu.matmul %61, %48, %cst_27 {dimension_numbers = #tpu.dot_dimension_numbers<[2], [1], [1], [2], [0, 0, 0, 1, 1, 2], [0], [0]>} : vector<1x8x8xbf16>, vector<1x8x8xbf16>, vector<1x8x8xf32> -> vector<1x8x8xf32>
    "tpu.trace_stop"() : () -> ()
    %63 = vector.shape_cast %62 : vector<1x8x8xf32> to vector<8x8xf32>
    %64 = vector.extract_strided_slice %40 {offsets = [0, 0, 8], sizes = [1, 8, 8], strides = [1, 1, 1]} : vector<1x8x96xbf16> to vector<1x8x8xbf16>
    %65 = vector.extract_strided_slice %40 {offsets = [0, 0, 40], sizes = [1, 8, 8], strides = [1, 1, 1]} : vector<1x8x96xbf16> to vector<1x8x8xbf16>
    %66 = vector.extract_strided_slice %40 {offsets = [0, 0, 72], sizes = [1, 8, 8], strides = [1, 1, 1]} : vector<1x8x96xbf16> to vector<1x8x8xbf16>
    "tpu.trace_start"() <{level = 10 : i32, message = "bqd,bkd->bqk"}> : () -> ()
    %cst_28 = arith.constant dense<0.000000e+00> : vector<1x8x8xf32>
    %67 = tpu.matmul %64, %65, %cst_28 {dimension_numbers = #tpu.dot_dimension_numbers<[2], [2], [1], [1], [0, 0, 0, 1, 1, 1], [0], [0]>} : vector<1x8x8xbf16>, vector<1x8x8xbf16>, vector<1x8x8xf32> -> vector<1x8x8xf32>
    "tpu.trace_stop"() : () -> ()
    %68 = arith.addf %67, %45 : vector<1x8x8xf32>
    %cst_29 = arith.constant dense<0xFF800000> : vector<1x8xf32>
    %69 = vector.multi_reduction <maximumf>, %68, %cst_29 [2] : vector<1x8x8xf32> to vector<1x8xf32>
    %70 = vector.shape_cast %69 : vector<1x8xf32> to vector<1x8x1xf32>
    %71 = vector.broadcast %70 : vector<1x8x1xf32> to vector<1x8x8xf32>
    %72 = arith.subf %68, %71 : vector<1x8x8xf32>
    %73 = math.exp %72 : vector<1x8x8xf32>
    %cst_30 = arith.constant dense<0.000000e+00> : vector<1x8xf32>
    %74 = vector.multi_reduction <add>, %73, %cst_30 [2] : vector<1x8x8xf32> to vector<1x8xf32>
    %75 = vector.shape_cast %74 : vector<1x8xf32> to vector<1x8x1xf32>
    %76 = tpu.reciprocal %75 {approx = true} : vector<1x8x1xf32> -> vector<1x8x1xf32>
    %77 = vector.broadcast %76 : vector<1x8x1xf32> to vector<1x8x8xf32>
    %78 = arith.mulf %73, %77 : vector<1x8x8xf32>
    %79 = arith.truncf %78 : vector<1x8x8xf32> to vector<1x8x8xbf16>
    "tpu.trace_start"() <{level = 10 : i32, message = "bqk,bkd->bqd"}> : () -> ()
    %cst_31 = arith.constant dense<0.000000e+00> : vector<1x8x8xf32>
    %80 = tpu.matmul %79, %66, %cst_31 {dimension_numbers = #tpu.dot_dimension_numbers<[2], [1], [1], [2], [0, 0, 0, 1, 1, 2], [0], [0]>} : vector<1x8x8xbf16>, vector<1x8x8xbf16>, vector<1x8x8xf32> -> vector<1x8x8xf32>
    "tpu.trace_stop"() : () -> ()
    %81 = vector.shape_cast %80 : vector<1x8x8xf32> to vector<8x8xf32>
    %82 = vector.extract_strided_slice %40 {offsets = [0, 0, 16], sizes = [1, 8, 8], strides = [1, 1, 1]} : vector<1x8x96xbf16> to vector<1x8x8xbf16>
    %83 = vector.extract_strided_slice %40 {offsets = [0, 0, 48], sizes = [1, 8, 8], strides = [1, 1, 1]} : vector<1x8x96xbf16> to vector<1x8x8xbf16>
    %84 = vector.extract_strided_slice %40 {offsets = [0, 0, 80], sizes = [1, 8, 8], strides = [1, 1, 1]} : vector<1x8x96xbf16> to vector<1x8x8xbf16>
    "tpu.trace_start"() <{level = 10 : i32, message = "bqd,bkd->bqk"}> : () -> ()
    %cst_32 = arith.constant dense<0.000000e+00> : vector<1x8x8xf32>
    %85 = tpu.matmul %82, %83, %cst_32 {dimension_numbers = #tpu.dot_dimension_numbers<[2], [2], [1], [1], [0, 0, 0, 1, 1, 1], [0], [0]>} : vector<1x8x8xbf16>, vector<1x8x8xbf16>, vector<1x8x8xf32> -> vector<1x8x8xf32>
    "tpu.trace_stop"() : () -> ()
    %86 = arith.addf %85, %45 : vector<1x8x8xf32>
    %cst_33 = arith.constant dense<0xFF800000> : vector<1x8xf32>
    %87 = vector.multi_reduction <maximumf>, %86, %cst_33 [2] : vector<1x8x8xf32> to vector<1x8xf32>
    %88 = vector.shape_cast %87 : vector<1x8xf32> to vector<1x8x1xf32>
    %89 = vector.broadcast %88 : vector<1x8x1xf32> to vector<1x8x8xf32>
    %90 = arith.subf %86, %89 : vector<1x8x8xf32>
    %91 = math.exp %90 : vector<1x8x8xf32>
    %cst_34 = arith.constant dense<0.000000e+00> : vector<1x8xf32>
    %92 = vector.multi_reduction <add>, %91, %cst_34 [2] : vector<1x8x8xf32> to vector<1x8xf32>
    %93 = vector.shape_cast %92 : vector<1x8xf32> to vector<1x8x1xf32>
    %94 = tpu.reciprocal %93 {approx = true} : vector<1x8x1xf32> -> vector<1x8x1xf32>
    %95 = vector.broadcast %94 : vector<1x8x1xf32> to vector<1x8x8xf32>
    %96 = arith.mulf %91, %95 : vector<1x8x8xf32>
    %97 = arith.truncf %96 : vector<1x8x8xf32> to vector<1x8x8xbf16>
    "tpu.trace_start"() <{level = 10 : i32, message = "bqk,bkd->bqd"}> : () -> ()
    %cst_35 = arith.constant dense<0.000000e+00> : vector<1x8x8xf32>
    %98 = tpu.matmul %97, %84, %cst_35 {dimension_numbers = #tpu.dot_dimension_numbers<[2], [1], [1], [2], [0, 0, 0, 1, 1, 2], [0], [0]>} : vector<1x8x8xbf16>, vector<1x8x8xbf16>, vector<1x8x8xf32> -> vector<1x8x8xf32>
    "tpu.trace_stop"() : () -> ()
    %99 = vector.shape_cast %98 : vector<1x8x8xf32> to vector<8x8xf32>
    %100 = vector.extract_strided_slice %40 {offsets = [0, 0, 24], sizes = [1, 8, 8], strides = [1, 1, 1]} : vector<1x8x96xbf16> to vector<1x8x8xbf16>
    %101 = vector.extract_strided_slice %40 {offsets = [0, 0, 56], sizes = [1, 8, 8], strides = [1, 1, 1]} : vector<1x8x96xbf16> to vector<1x8x8xbf16>
    %102 = vector.extract_strided_slice %40 {offsets = [0, 0, 88], sizes = [1, 8, 8], strides = [1, 1, 1]} : vector<1x8x96xbf16> to vector<1x8x8xbf16>
    "tpu.trace_start"() <{level = 10 : i32, message = "bqd,bkd->bqk"}> : () -> ()
    %cst_36 = arith.constant dense<0.000000e+00> : vector<1x8x8xf32>
    %103 = tpu.matmul %100, %101, %cst_36 {dimension_numbers = #tpu.dot_dimension_numbers<[2], [2], [1], [1], [0, 0, 0, 1, 1, 1], [0], [0]>} : vector<1x8x8xbf16>, vector<1x8x8xbf16>, vector<1x8x8xf32> -> vector<1x8x8xf32>
    "tpu.trace_stop"() : () -> ()
    %104 = arith.addf %103, %45 : vector<1x8x8xf32>
    %cst_37 = arith.constant dense<0xFF800000> : vector<1x8xf32>
    %105 = vector.multi_reduction <maximumf>, %104, %cst_37 [2] : vector<1x8x8xf32> to vector<1x8xf32>
    %106 = vector.shape_cast %105 : vector<1x8xf32> to vector<1x8x1xf32>
    %107 = vector.broadcast %106 : vector<1x8x1xf32> to vector<1x8x8xf32>
    %108 = arith.subf %104, %107 : vector<1x8x8xf32>
    %109 = math.exp %108 : vector<1x8x8xf32>
    %cst_38 = arith.constant dense<0.000000e+00> : vector<1x8xf32>
    %110 = vector.multi_reduction <add>, %109, %cst_38 [2] : vector<1x8x8xf32> to vector<1x8xf32>
    %111 = vector.shape_cast %110 : vector<1x8xf32> to vector<1x8x1xf32>
    %112 = tpu.reciprocal %111 {approx = true} : vector<1x8x1xf32> -> vector<1x8x1xf32>
    %113 = vector.broadcast %112 : vector<1x8x1xf32> to vector<1x8x8xf32>
    %114 = arith.mulf %109, %113 : vector<1x8x8xf32>
    %115 = arith.truncf %114 : vector<1x8x8xf32> to vector<1x8x8xbf16>
    "tpu.trace_start"() <{level = 10 : i32, message = "bqk,bkd->bqd"}> : () -> ()
    %cst_39 = arith.constant dense<0.000000e+00> : vector<1x8x8xf32>
    %116 = tpu.matmul %115, %102, %cst_39 {dimension_numbers = #tpu.dot_dimension_numbers<[2], [1], [1], [2], [0, 0, 0, 1, 1, 2], [0], [0]>} : vector<1x8x8xbf16>, vector<1x8x8xbf16>, vector<1x8x8xf32> -> vector<1x8x8xf32>
    "tpu.trace_stop"() : () -> ()
    %117 = vector.shape_cast %116 : vector<1x8x8xf32> to vector<8x8xf32>
    %118 = tpu.concatenate %63, %81, %99, %117 in 1 : vector<8x8xf32>, vector<8x8xf32>, vector<8x8xf32>, vector<8x8xf32> -> vector<8x32xf32>
    %119 = arith.truncf %118 : vector<8x32xf32> to vector<8x32xbf16>
    %c0_40 = arith.constant 0 : index
    %c0_41 = arith.constant 0 : index
    %120 = vector.load %arg10[%c0_40, %c0_41] : memref<32x32xbf16, #tpu.memory_space<vmem>>, vector<32x32xbf16>
    %cst_42 = arith.constant dense<0.000000e+00> : vector<8x32xf32>
    %121 = tpu.matmul %119, %120, %cst_42 {dimension_numbers = #tpu.dot_dimension_numbers<[1], [0], [0], [1], [0, 0, 1, 1], [], []>} : vector<8x32xbf16>, vector<32x32xbf16>, vector<8x32xf32> -> vector<8x32xf32>
    %c0_43 = arith.constant 0 : index
    %c0_44 = arith.constant 0 : index
    %122 = vector.load %arg11[%c0_43, %c0_44] : memref<1x32xf32, #tpu.memory_space<vmem>>, vector<1x32xf32>
    %123 = vector.broadcast %122 : vector<1x32xf32> to vector<8x32xf32>
    %124 = arith.addf %121, %123 : vector<8x32xf32>
    %125 = arith.addf %124, %1 : vector<8x32xf32>
    %c0_45 = arith.constant 0 : index
    %c0_46 = arith.constant 0 : index
    %126 = vector.load %arg12[%c0_45, %c0_46] : memref<32x64xbf16, #tpu.memory_space<vmem>>, vector<32x64xbf16>
    %cst_47 = arith.constant dense<0.000000e+00> : vector<8x64xf32>
    %127 = tpu.matmul %33, %126, %cst_47 {dimension_numbers = #tpu.dot_dimension_numbers<[1], [0], [0], [1], [0, 0, 1, 1], [], []>} : vector<8x32xbf16>, vector<32x64xbf16>, vector<8x64xf32> -> vector<8x64xf32>
    %c0_48 = arith.constant 0 : index
    %c0_49 = arith.constant 0 : index
    %128 = vector.load %arg13[%c0_48, %c0_49] : memref<1x64xf32, #tpu.memory_space<vmem>>, vector<1x64xf32>
    %129 = vector.broadcast %128 : vector<1x64xf32> to vector<8x64xf32>
    %130 = arith.addf %127, %129 : vector<8x64xf32>
    %cst_50 = arith.constant 0.000000e+00 : f32
    %131 = vector.broadcast %cst_50 : f32 to vector<8x64xf32>
    %132 = arith.maximumf %130, %131 : vector<8x64xf32>
    %133 = arith.truncf %132 : vector<8x64xf32> to vector<8x64xbf16>
    %c0_51 = arith.constant 0 : index
    %c0_52 = arith.constant 0 : index
    %134 = vector.load %arg14[%c0_51, %c0_52] : memref<64x32xbf16, #tpu.memory_space<vmem>>, vector<64x32xbf16>
    %cst_53 = arith.constant dense<0.000000e+00> : vector<8x32xf32>
    %135 = tpu.matmul %133, %134, %cst_53 {dimension_numbers = #tpu.dot_dimension_numbers<[1], [0], [0], [1], [0, 0, 1, 1], [], []>} : vector<8x64xbf16>, vector<64x32xbf16>, vector<8x32xf32> -> vector<8x32xf32>
    %c0_54 = arith.constant 0 : index
    %c0_55 = arith.constant 0 : index
    %136 = vector.load %arg15[%c0_54, %c0_55] : memref<1x32xf32, #tpu.memory_space<vmem>>, vector<1x32xf32>
    %137 = vector.broadcast %136 : vector<1x32xf32> to vector<8x32xf32>
    %138 = arith.addf %135, %137 : vector<8x32xf32>
    %139 = arith.addf %125, %138 : vector<8x32xf32>
    %140 = vector.shape_cast %139 : vector<8x32xf32> to vector<1x8x32xf32>
    %c0_56 = arith.constant 0 : index
    %c0_57 = arith.constant 0 : index
    %c0_58 = arith.constant 0 : index
    %141 = vector.load %arg16[%c0_56, %c0_57, %c0_58] : memref<1x8x32xf32, #tpu.memory_space<vmem>>, vector<1x8x32xf32>
    tpu.vector_store %arg16[%c0_56, %c0_57, %c0_58], %140 {strides = array<i32>} : memref<1x8x32xf32, #tpu.memory_space<vmem>>, vector<1x8x32xf32>,
    return
  }
  func.func @transform_0(%arg0: i32) -> (i32, i32, i32) {
    %c0_i32 = arith.constant 0 : i32
    %c0_i32_0 = arith.constant 0 : i32
    %c0_i32_1 = arith.constant 0 : i32
    return %arg0, %c0_i32, %c0_i32_0 : i32, i32, i32
  }
  func.func @transform_1(%arg0: i32) -> (i32, i32) {
    %c0_i32 = arith.constant 0 : i32
    %c0_i32_0 = arith.constant 0 : i32
    %c0_i32_1 = arith.constant 0 : i32
    return %c0_i32, %c0_i32_0 : i32, i32
  }
  func.func @transform_2(%arg0: i32) -> (i32, i32, i32) {
    %c0_i32 = arith.constant 0 : i32
    %c0_i32_0 = arith.constant 0 : i32
    %c0_i32_1 = arith.constant 0 : i32
    return %arg0, %c0_i32, %c0_i32_0 : i32, i32, i32
  }
  func.func @transform_3(%arg0: i32) -> (i32, i32) {
    %c0_i32 = arith.constant 0 : i32
    %c0_i32_0 = arith.constant 0 : i32
    %c0_i32_1 = arith.constant 0 : i32
    return %c0_i32, %c0_i32_0 : i32, i32
  }
  func.func @transform_4(%arg0: i32) -> (i32, i32) {
    %c0_i32 = arith.constant 0 : i32
    %c0_i32_0 = arith.constant 0 : i32
    %c0_i32_1 = arith.constant 0 : i32
    return %c0_i32, %c0_i32_0 : i32, i32
  }
  func.func @transform_5(%arg0: i32) -> (i32, i32) {
    %c0_i32 = arith.constant 0 : i32
    %c0_i32_0 = arith.constant 0 : i32
    %c0_i32_1 = arith.constant 0 : i32
    return %c0_i32, %c0_i32_0 : i32, i32
  }
  func.func @transform_6(%arg0: i32) -> (i32, i32) {
    %c0_i32 = arith.constant 0 : i32
    %c0_i32_0 = arith.constant 0 : i32
    %c0_i32_1 = arith.constant 0 : i32
    return %c0_i32, %c0_i32_0 : i32, i32
  }
  func.func @transform_7(%arg0: i32) -> (i32, i32) {
    %c0_i32 = arith.constant 0 : i32
    %c0_i32_0 = arith.constant 0 : i32
    %c0_i32_1 = arith.constant 0 : i32
    return %c0_i32, %c0_i32_0 : i32, i32
  }
  func.func @transform_8(%arg0: i32) -> (i32, i32) {
    %c0_i32 = arith.constant 0 : i32
    %c0_i32_0 = arith.constant 0 : i32
    %c0_i32_1 = arith.constant 0 : i32
    return %c0_i32, %c0_i32_0 : i32, i32
  }
  func.func @transform_9(%arg0: i32) -> (i32, i32) {
    %c0_i32 = arith.constant 0 : i32
    %c0_i32_0 = arith.constant 0 : i32
    %c0_i32_1 = arith.constant 0 : i32
    return %c0_i32, %c0_i32_0 : i32, i32
  }
  func.func @transform_10(%arg0: i32) -> (i32, i32) {
    %c0_i32 = arith.constant 0 : i32
    %c0_i32_0 = arith.constant 0 : i32
    %c0_i32_1 = arith.constant 0 : i32
    return %c0_i32, %c0_i32_0 : i32, i32
  }
  func.func @transform_11(%arg0: i32) -> (i32, i32) {
    %c0_i32 = arith.constant 0 : i32
    %c0_i32_0 = arith.constant 0 : i32
    %c0_i32_1 = arith.constant 0 : i32
    return %c0_i32, %c0_i32_0 : i32, i32
  }
  func.func @transform_12(%arg0: i32) -> (i32, i32) {
    %c0_i32 = arith.constant 0 : i32
    %c0_i32_0 = arith.constant 0 : i32
    %c0_i32_1 = arith.constant 0 : i32
    return %c0_i32, %c0_i32_0 : i32, i32
  }
  func.func @transform_13(%arg0: i32) -> (i32, i32) {
    %c0_i32 = arith.constant 0 : i32
    %c0_i32_0 = arith.constant 0 : i32
    %c0_i32_1 = arith.constant 0 : i32
    return %c0_i32, %c0_i32_0 : i32, i32
  }
  func.func @transform_14(%arg0: i32) -> (i32, i32) {
    %c0_i32 = arith.constant 0 : i32
    %c0_i32_0 = arith.constant 0 : i32
    %c0_i32_1 = arith.constant 0 : i32
    return %c0_i32, %c0_i32_0 : i32, i32
  }
  func.func @transform_15(%arg0: i32) -> (i32, i32, i32) {
    %c0_i32 = arith.constant 0 : i32
    %c0_i32_0 = arith.constant 0 : i32
    %c0_i32_1 = arith.constant 0 : i32
    return %arg0, %c0_i32, %c0_i32_0 : i32, i32, i32
  }
}

module attributes {stable_mosaic.version = 11 : i64} {
  func.func @decoder_block_kernel(%arg0: i32, %arg1: memref<1x8x32xf32, #tpu.memory_space<vmem>>, %arg2: memref<8x8xf32, #tpu.memory_space<vmem>>, %arg3: memref<1x1x8xf32, #tpu.memory_space<vmem>>, %arg4: memref<1x32xf32, #tpu.memory_space<vmem>>, %arg5: memref<1x32xf32, #tpu.memory_space<vmem>>, %arg6: memref<1x32xf32, #tpu.memory_space<vmem>>, %arg7: memref<1x32xf32, #tpu.memory_space<vmem>>, %arg8: memref<32x96xbf16, #tpu.memory_space<vmem>>, %arg9: memref<1x96xf32, #tpu.memory_space<vmem>>, %arg10: memref<32x32xbf16, #tpu.memory_space<vmem>>, %arg11: memref<1x32xf32, #tpu.memory_space<vmem>>, %arg12: memref<32x64xbf16, #tpu.memory_space<vmem>>, %arg13: memref<1x64xf32, #tpu.memory_space<vmem>>, %arg14: memref<64x32xbf16, #tpu.memory_space<vmem>>, %arg15: memref<1x32xf32, #tpu.memory_space<vmem>>, %arg16: memref<1x8x32xf32, #tpu.memory_space<vmem>>) attributes {dimension_semantics = [#tpu.dimension_semantics<parallel>], iteration_bounds = array<i64: 2>, scalar_prefetch = 0 : i64, scratch_operands = 0 : i64, tpu.core_type = #tpu.core_type<tc>, window_params = [{transform_indices = @transform_0, window_bounds = array<i64: 1, 8, 32>}, {pipeline_mode = #tpu.pipeline_mode<synchronous>, transform_indices = @transform_1, window_bounds = array<i64: 8, 8>}, {transform_indices = @transform_2, window_bounds = array<i64: 1, 1, 8>}, {pipeline_mode = #tpu.pipeline_mode<synchronous>, transform_indices = @transform_3, window_bounds = array<i64: 1, 32>}, {pipeline_mode = #tpu.pipeline_mode<synchronous>, transform_indices = @transform_4, window_bounds = array<i64: 1, 32>}, {pipeline_mode = #tpu.pipeline_mode<synchronous>, transform_indices = @transform_5, window_bounds = array<i64: 1, 32>}, {pipeline_mode = #tpu.pipeline_mode<synchronous>, transform_indices = @transform_6, window_bounds = array<i64: 1, 32>}, {pipeline_mode = #tpu.pipeline_mode<synchronous>, transform_indices = @transform_7, window_bounds = array<i64: 32, 96>}, {pipeline_mode = #tpu.pipeline_mode<synchronous>, transform_indices = @transform_8, window_bounds = array<i64: 1, 96>}, {pipeline_mode = #tpu.pipeline_mode<synchronous>, transform_indices = @transform_9, window_bounds = array<i64: 32, 32>}, {pipeline_mode = #tpu.pipeline_mode<synchronous>, transform_indices = @transform_10, window_bounds = array<i64: 1, 32>}, {pipeline_mode = #tpu.pipeline_mode<synchronous>, transform_indices = @transform_11, window_bounds = array<i64: 32, 64>}, {pipeline_mode = #tpu.pipeline_mode<synchronous>, transform_indices = @transform_12, window_bounds = array<i64: 1, 64>}, {pipeline_mode = #tpu.pipeline_mode<synchronous>, transform_indices = @transform_13, window_bounds = array<i64: 64, 32>}, {pipeline_mode = #tpu.pipeline_mode<synchronous>, transform_indices = @transform_14, window_bounds = array<i64: 1, 32>}, {transform_indices = @transform_15, window_bounds = array<i64: 1, 8, 32>}]} {
    %c0 = arith.constant 0 : index
    %c0_0 = arith.constant 0 : index
    %c0_1 = arith.constant 0 : index
    %0 = vector.load %arg1[%c0, %c0_0, %c0_1] : memref<1x8x32xf32, #tpu.memory_space<vmem>>, vector<1x8x32xf32>
    %1 = vector.shape_cast %0 : vector<1x8x32xf32> to vector<8x32xf32>
    %cst = arith.constant dense<0.000000e+00> : vector<8xf32>
    %2 = vector.multi_reduction <add>, %1, %cst [1] : vector<8x32xf32> to vector<8xf32>
    %3 = vector.shape_cast %2 : vector<8xf32> to vector<8x1xf32>
    %cst_2 = arith.constant 3.200000e+01 : f32
    %4 = vector.broadcast %cst_2 : f32 to vector<8x1xf32>
    %5 = arith.divf %3, %4 : vector<8x1xf32>
    %6 = vector.broadcast %5 : vector<8x1xf32> to vector<8x32xf32>
    %7 = arith.subf %1, %6 : vector<8x32xf32>
    %8 = arith.mulf %7, %7 : vector<8x32xf32>
    %cst_3 = arith.constant dense<0.000000e+00> : vector<8xf32>
    %9 = vector.multi_reduction <add>, %8, %cst_3 [1] : vector<8x32xf32> to vector<8xf32>
    %10 = vector.shape_cast %9 : vector<8xf32> to vector<8x1xf32>
    %cst_4 = arith.constant 3.200000e+01 : f32
    %11 = vector.broadcast %cst_4 : f32 to vector<8x1xf32>
    %12 = arith.divf %10, %11 : vector<8x1xf32>
    %13 = vector.broadcast %5 : vector<8x1xf32> to vector<8x32xf32>
    %14 = arith.subf %1, %13 : vector<8x32xf32>
    %cst_5 = arith.constant 9.99999974E-6 : f32
    %15 = vector.broadcast %cst_5 : f32 to vector<8x1xf32>
    %16 = arith.addf %12, %15 : vector<8x1xf32>
    %17 = math.rsqrt %16 : vector<8x1xf32>
    %18 = vector.broadcast %17 : vector<8x1xf32> to vector<8x32xf32>
    %19 = arith.mulf %14, %18 : vector<8x32xf32>
    %c0_6 = arith.constant 0 : index
    %c0_7 = arith.constant 0 : index
    %20 = vector.load %arg4[%c0_6, %c0_7] : memref<1x32xf32, #tpu.memory_space<vmem>>, vector<1x32xf32>
    %21 = vector.broadcast %20 : vector<1x32xf32> to vector<8x32xf32>
    %22 = arith.mulf %19, %21 : vector<8x32xf32>
    %c0_8 = arith.constant 0 : index
    %c0_9 = arith.constant 0 : index
    %23 = vector.load %arg5[%c0_8, %c0_9] : memref<1x32xf32, #tpu.memory_space<vmem>>, vector<1x32xf32>
    %24 = vector.broadcast %23 : vector<1x32xf32> to vector<8x32xf32>
    %25 = arith.addf %22, %24 : vector<8x32xf32>
    %26 = arith.truncf %25 : vector<8x32xf32> to vector<8x32xbf16>
    %c0_10 = arith.constant 0 : index
    %c0_11 = arith.constant 0 : index
    %27 = vector.load %arg6[%c0_10, %c0_11] : memref<1x32xf32, #tpu.memory_space<vmem>>, vector<1x32xf32>
    %28 = vector.broadcast %27 : vector<1x32xf32> to vector<8x32xf32>
    %29 = arith.mulf %19, %28 : vector<8x32xf32>
    %c0_12 = arith.constant 0 : index
    %c0_13 = arith.constant 0 : index
    %30 = vector.load %arg7[%c0_12, %c0_13] : memref<1x32xf32, #tpu.memory_space<vmem>>, vector<1x32xf32>
    %31 = vector.broadcast %30 : vector<1x32xf32> to vector<8x32xf32>
    %32 = arith.addf %29, %31 : vector<8x32xf32>
    %33 = arith.truncf %32 : vector<8x32xf32> to vector<8x32xbf16>
    %c0_14 = arith.constant 0 : index
    %c0_15 = arith.constant 0 : index
    %34 = vector.load %arg8[%c0_14, %c0_15] : memref<32x96xbf16, #tpu.memory_space<vmem>>, vector<32x96xbf16>
    %cst_16 = arith.constant dense<0.000000e+00> : vector<8x96xf32>
    %35 = tpu.matmul %26, %34, %cst_16 {dimension_numbers = #tpu.dot_dimension_numbers<[1], [0], [0], [1], [0, 0, 1, 1], [], []>} : vector<8x32xbf16>, vector<32x96xbf16>, vector<8x96xf32> -> vector<8x96xf32>
    %c0_17 = arith.constant 0 : index
    %c0_18 = arith.constant 0 : index
    %36 = vector.load %arg9[%c0_17, %c0_18] : memref<1x96xf32, #tpu.memory_space<vmem>>, vector<1x96xf32>
    %37 = vector.broadcast %36 : vector<1x96xf32> to vector<8x96xf32>
    %38 = arith.addf %35, %37 : vector<8x96xf32>
    %39 = arith.truncf %38 : vector<8x96xf32> to vector<8x96xbf16>
    %40 = vector.shape_cast %39 : vector<8x96xbf16> to vector<1x8x96xbf16>
    %c0_19 = arith.constant 0 : index
    %c0_20 = arith.constant 0 : index
    %41 = vector.load %arg2[%c0_19, %c0_20] : memref<8x8xf32, #tpu.memory_space<vmem>>, vector<8x8xf32>
    %42 = vector.shape_cast %41 : vector<8x8xf32> to vector<1x8x8xf32>
    %c0_21 = arith.constant 0 : index
    %c0_22 = arith.constant 0 : index
    %c0_23 = arith.constant 0 : index
    %43 = vector.load %arg3[%c0_21, %c0_22, %c0_23] : memref<1x1x8xf32, #tpu.memory_space<vmem>>, vector<1x1x8xf32>
    %44 = vector.broadcast %43 : vector<1x1x8xf32> to vector<1x8x8xf32>
    %45 = arith.addf %42, %44 : vector<1x8x8xf32>
    %46 = vector.extract_strided_slice %40 {offsets = [0, 0, 0], sizes = [1, 8, 8], strides = [1, 1, 1]} : vector<1x8x96xbf16> to vector<1x8x8xbf16>
    %47 = vector.extract_strided_slice %40 {offsets = [0, 0, 32], sizes = [1, 8, 8], strides = [1, 1, 1]} : vector<1x8x96xbf16> to vector<1x8x8xbf16>
    %48 = vector.extract_strided_slice %40 {offsets = [0, 0, 64], sizes = [1, 8, 8], strides = [1, 1, 1]} : vector<1x8x96xbf16> to vector<1x8x8xbf16>
    "tpu.trace_start"() <{level = 10 : i32, message = "bqd,bkd->bqk"}> : () -> ()
    %cst_24 = arith.constant dense<0.000000e+00> : vector<1x8x8xf32>
    %49 = tpu.matmul %46, %47, %cst_24 {dimension_numbers = #tpu.dot_dimension_numbers<[2], [2], [1], [1], [0, 0, 0, 1, 1, 1], [0], [0]>} : vector<1x8x8xbf16>, vector<1x8x8xbf16>, vector<1x8x8xf32> -> vector<1x8x8xf32>
    "tpu.trace_stop"() : () -> ()
    %50 = arith.addf %49, %45 : vector<1x8x8xf32>
    %cst_25 = arith.constant dense<0xFF800000> : vector<1x8xf32>
    %51 = vector.multi_reduction <maximumf>, %50, %cst_25 [2] : vector<1x8x8xf32> to vector<1x8xf32>
    %52 = vector.shape_cast %51 : vector<1x8xf32> to vector<1x8x1xf32>
    %53 = vector.broadcast %52 : vector<1x8x1xf32> to vector<1x8x8xf32>
    %54 = arith.subf %50, %53 : vector<1x8x8xf32>
    %55 = math.exp %54 : vector<1x8x8xf32>
    %cst_26 = arith.constant dense<0.000000e+00> : vector<1x8xf32>
    %56 = vector.multi_reduction <add>, %55, %cst_26 [2] : vector<1x8x8xf32> to vector<1x8xf32>
    %57 = vector.shape_cast %56 : vector<1x8xf32> to vector<1x8x1xf32>
    %58 = tpu.reciprocal %57 {approx = true} : vector<1x8x1xf32> -> vector<1x8x1xf32>
    %59 = vector.broadcast %58 : vector<1x8x1xf32> to vector<1x8x8xf32>
    %60 = arith.mulf %55, %59 : vector<1x8x8xf32>
    %61 = arith.truncf %60 : vector<1x8x8xf32> to vector<1x8x8xbf16>
    "tpu.trace_start"() <{level = 10 : i32, message = "bqk,bkd->bqd"}> : () -> ()
    %cst_27 = arith.constant dense<0.000000e+00> : vector<1x8x8xf32>
    %62 = tpu.matmul %61, %48, %cst_27 {dimension_numbers = #tpu.dot_dimension_numbers<[2], [1], [1], [2], [0, 0, 0, 1, 1, 2], [0], [0]>} : vector<1x8x8xbf16>, vector<1x8x8xbf16>, vector<1x8x8xf32> -> vector<1x8x8xf32>
    "tpu.trace_stop"() : () -> ()
    %63 = vector.shape_cast %62 : vector<1x8x8xf32> to vector<8x8xf32>
    %64 = vector.extract_strided_slice %40 {offsets = [0, 0, 8], sizes = [1, 8, 8], strides = [1, 1, 1]} : vector<1x8x96xbf16> to vector<1x8x8xbf16>
    %65 = vector.extract_strided_slice %40 {offsets = [0, 0, 40], sizes = [1, 8, 8], strides = [1, 1, 1]} : vector<1x8x96xbf16> to vector<1x8x8xbf16>
    %66 = vector.extract_strided_slice %40 {offsets = [0, 0, 72], sizes = [1, 8, 8], strides = [1, 1, 1]} : vector<1x8x96xbf16> to vector<1x8x8xbf16>
    "tpu.trace_start"() <{level = 10 : i32, message = "bqd,bkd->bqk"}> : () -> ()
    %cst_28 = arith.constant dense<0.000000e+00> : vector<1x8x8xf32>
    %67 = tpu.matmul %64, %65, %cst_28 {dimension_numbers = #tpu.dot_dimension_numbers<[2], [2], [1], [1], [0, 0, 0, 1, 1, 1], [0], [0]>} : vector<1x8x8xbf16>, vector<1x8x8xbf16>, vector<1x8x8xf32> -> vector<1x8x8xf32>
    "tpu.trace_stop"() : () -> ()
    %68 = arith.addf %67, %45 : vector<1x8x8xf32>
    %cst_29 = arith.constant dense<0xFF800000> : vector<1x8xf32>
    %69 = vector.multi_reduction <maximumf>, %68, %cst_29 [2] : vector<1x8x8xf32> to vector<1x8xf32>
    %70 = vector.shape_cast %69 : vector<1x8xf32> to vector<1x8x1xf32>
    %71 = vector.broadcast %70 : vector<1x8x1xf32> to vector<1x8x8xf32>
    %72 = arith.subf %68, %71 : vector<1x8x8xf32>
    %73 = math.exp %72 : vector<1x8x8xf32>
    %cst_30 = arith.constant dense<0.000000e+00> : vector<1x8xf32>
    %74 = vector.multi_reduction <add>, %73, %cst_30 [2] : vector<1x8x8xf32> to vector<1x8xf32>
    %75 = vector.shape_cast %74 : vector<1x8xf32> to vector<1x8x1xf32>
    %76 = tpu.reciprocal %75 {approx = true} : vector<1x8x1xf32> -> vector<1x8x1xf32>
    %77 = vector.broadcast %76 : vector<1x8x1xf32> to vector<1x8x8xf32>
    %78 = arith.mulf %73, %77 : vector<1x8x8xf32>
    %79 = arith.truncf %78 : vector<1x8x8xf32> to vector<1x8x8xbf16>
    "tpu.trace_start"() <{level = 10 : i32, message = "bqk,bkd->bqd"}> : () -> ()
    %cst_31 = arith.constant dense<0.000000e+00> : vector<1x8x8xf32>
    %80 = tpu.matmul %79, %66, %cst_31 {dimension_numbers = #tpu.dot_dimension_numbers<[2], [1], [1], [2], [0, 0, 0, 1, 1, 2], [0], [0]>} : vector<1x8x8xbf16>, vector<1x8x8xbf16>, vector<1x8x8xf32> -> vector<1x8x8xf32>
    "tpu.trace_stop"() : () -> ()
    %81 = vector.shape_cast %80 : vector<1x8x8xf32> to vector<8x8xf32>
    %82 = vector.extract_strided_slice %40 {offsets = [0, 0, 16], sizes = [1, 8, 8], strides = [1, 1, 1]} : vector<1x8x96xbf16> to vector<1x8x8xbf16>
    %83 = vector.extract_strided_slice %40 {offsets = [0, 0, 48], sizes = [1, 8, 8], strides = [1, 1, 1]} : vector<1x8x96xbf16> to vector<1x8x8xbf16>
    %84 = vector.extract_strided_slice %40 {offsets = [0, 0, 80], sizes = [1, 8, 8], strides = [1, 1, 1]} : vector<1x8x96xbf16> to vector<1x8x8xbf16>
    "tpu.trace_start"() <{level = 10 : i32, message = "bqd,bkd->bqk"}> : () -> ()
    %cst_32 = arith.constant dense<0.000000e+00> : vector<1x8x8xf32>
    %85 = tpu.matmul %82, %83, %cst_32 {dimension_numbers = #tpu.dot_dimension_numbers<[2], [2], [1], [1], [0, 0, 0, 1, 1, 1], [0], [0]>} : vector<1x8x8xbf16>, vector<1x8x8xbf16>, vector<1x8x8xf32> -> vector<1x8x8xf32>
    "tpu.trace_stop"() : () -> ()
    %86 = arith.addf %85, %45 : vector<1x8x8xf32>
    %cst_33 = arith.constant dense<0xFF800000> : vector<1x8xf32>
    %87 = vector.multi_reduction <maximumf>, %86, %cst_33 [2] : vector<1x8x8xf32> to vector<1x8xf32>
    %88 = vector.shape_cast %87 : vector<1x8xf32> to vector<1x8x1xf32>
    %89 = vector.broadcast %88 : vector<1x8x1xf32> to vector<1x8x8xf32>
    %90 = arith.subf %86, %89 : vector<1x8x8xf32>
    %91 = math.exp %90 : vector<1x8x8xf32>
    %cst_34 = arith.constant dense<0.000000e+00> : vector<1x8xf32>
    %92 = vector.multi_reduction <add>, %91, %cst_34 [2] : vector<1x8x8xf32> to vector<1x8xf32>
    %93 = vector.shape_cast %92 : vector<1x8xf32> to vector<1x8x1xf32>
    %94 = tpu.reciprocal %93 {approx = true} : vector<1x8x1xf32> -> vector<1x8x1xf32>
    %95 = vector.broadcast %94 : vector<1x8x1xf32> to vector<1x8x8xf32>
    %96 = arith.mulf %91, %95 : vector<1x8x8xf32>
    %97 = arith.truncf %96 : vector<1x8x8xf32> to vector<1x8x8xbf16>
    "tpu.trace_start"() <{level = 10 : i32, message = "bqk,bkd->bqd"}> : () -> ()
    %cst_35 = arith.constant dense<0.000000e+00> : vector<1x8x8xf32>
    %98 = tpu.matmul %97, %84, %cst_35 {dimension_numbers = #tpu.dot_dimension_numbers<[2], [1], [1], [2], [0, 0, 0, 1, 1, 2], [0], [0]>} : vector<1x8x8xbf16>, vector<1x8x8xbf16>, vector<1x8x8xf32> -> vector<1x8x8xf32>
    "tpu.trace_stop"() : () -> ()
    %99 = vector.shape_cast %98 : vector<1x8x8xf32> to vector<8x8xf32>
    %100 = vector.extract_strided_slice %40 {offsets = [0, 0, 24], sizes = [1, 8, 8], strides = [1, 1, 1]} : vector<1x8x96xbf16> to vector<1x8x8xbf16>
    %101 = vector.extract_strided_slice %40 {offsets = [0, 0, 56], sizes = [1, 8, 8], strides = [1, 1, 1]} : vector<1x8x96xbf16> to vector<1x8x8xbf16>
    %102 = vector.extract_strided_slice %40 {offsets = [0, 0, 88], sizes = [1, 8, 8], strides = [1, 1, 1]} : vector<1x8x96xbf16> to vector<1x8x8xbf16>
    "tpu.trace_start"() <{level = 10 : i32, message = "bqd,bkd->bqk"}> : () -> ()
    %cst_36 = arith.constant dense<0.000000e+00> : vector<1x8x8xf32>
    %103 = tpu.matmul %100, %101, %cst_36 {dimension_numbers = #tpu.dot_dimension_numbers<[2], [2], [1], [1], [0, 0, 0, 1, 1, 1], [0], [0]>} : vector<1x8x8xbf16>, vector<1x8x8xbf16>, vector<1x8x8xf32> -> vector<1x8x8xf32>
    "tpu.trace_stop"() : () -> ()
    %104 = arith.addf %103, %45 : vector<1x8x8xf32>
    %cst_37 = arith.constant dense<0xFF800000> : vector<1x8xf32>
    %105 = vector.multi_reduction <maximumf>, %104, %cst_37 [2] : vector<1x8x8xf32> to vector<1x8xf32>
    %106 = vector.shape_cast %105 : vector<1x8xf32> to vector<1x8x1xf32>
    %107 = vector.broadcast %106 : vector<1x8x1xf32> to vector<1x8x8xf32>
    %108 = arith.subf %104, %107 : vector<1x8x8xf32>
    %109 = math.exp %108 : vector<1x8x8xf32>
    %cst_38 = arith.constant dense<0.000000e+00> : vector<1x8xf32>
    %110 = vector.multi_reduction <add>, %109, %cst_38 [2] : vector<1x8x8xf32> to vector<1x8xf32>
    %111 = vector.shape_cast %110 : vector<1x8xf32> to vector<1x8x1xf32>
    %112 = tpu.reciprocal %111 {approx = true} : vector<1x8x1xf32> -> vector<1x8x1xf32>
    %113 = vector.broadcast %112 : vector<1x8x1xf32> to vector<1x8x8xf32>
    %114 = arith.mulf %109, %113 : vector<1x8x8xf32>
    %115 = arith.truncf %114 : vector<1x8x8xf32> to vector<1x8x8xbf16>
    "tpu.trace_start"() <{level = 10 : i32, message = "bqk,bkd->bqd"}> : () -> ()
    %cst_39 = arith.constant dense<0.000000e+00> : vector<1x8x8xf32>
    %116 = tpu.matmul %115, %102, %cst_39 {dimension_numbers = #tpu.dot_dimension_numbers<[2], [1], [1], [2], [0, 0, 0, 1, 1, 2], [0], [0]>} : vector<1x8x8xbf16>, vector<1x8x8xbf16>, vector<1x8x8xf32> -> vector<1x8x8xf32>
    "tpu.trace_stop"() : () -> ()
    %117 = vector.shape_cast %116 : vector<1x8x8xf32> to vector<8x8xf32>
    %118 = tpu.concatenate %63, %81, %99, %117 in 1 : vector<8x8xf32>, vector<8x8xf32>, vector<8x8xf32>, vector<8x8xf32> -> vector<8x32xf32>
    %119 = arith.truncf %118 : vector<8x32xf32> to vector<8x32xbf16>
    %c0_40 = arith.constant 0 : index
    %c0_41 = arith.constant 0 : index
    %120 = vector.load %arg10[%c0_40, %c0_41] : memref<32x32xbf16, #tpu.memory_space<vmem>>, vector<32x32xbf16>
    %cst_42 = arith.constant dense<0.000000e+00> : vector<8x32xf32>
    %121 = tpu.matmul %119, %120, %cst_42 {dimension_numbers = #tpu.dot_dimension_numbers<[1], [0], [0], [1], [0, 0, 1, 1], [], []>} : vector<8x32xbf16>, vector<32x32xbf16>, vector<8x32xf32> -> vector<8x32xf32>
    %c0_43 = arith.constant 0 : index
    %c0_44 = arith.constant 0 : index
    %122 = vector.load %arg11[%c0_43, %c0_44] : memref<1x32xf32, #tpu.memory_space<vmem>>, vector<1x32xf32>
    %123 = vector.broadcast %122 : vector<1x32xf32> to vector<8x32xf32>
    %124 = arith.addf %121, %123 : vector<8x32xf32>
    %125 = arith.addf %124, %1 : vector<8x32xf32>
    %c0_45 = arith.constant 0 : index
    %c0_46 = arith.constant 0 : index
    %126 = vector.load %arg12[%c0_45, %c0_46] : memref<32x64xbf16, #tpu.memory_space<vmem>>, vector<32x64xbf16>
    %cst_47 = arith.constant dense<0.000000e+00> : vector<8x64xf32>
    %127 = tpu.matmul %33, %126, %cst_47 {dimension_numbers = #tpu.dot_dimension_numbers<[1], [0], [0], [1], [0, 0, 1, 1], [], []>} : vector<8x32xbf16>, vector<32x64xbf16>, vector<8x64xf32> -> vector<8x64xf32>
    %c0_48 = arith.constant 0 : index
    %c0_49 = arith.constant 0 : index
    %128 = vector.load %arg13[%c0_48, %c0_49] : memref<1x64xf32, #tpu.memory_space<vmem>>, vector<1x64xf32>
    %129 = vector.broadcast %128 : vector<1x64xf32> to vector<8x64xf32>
    %130 = arith.addf %127, %129 : vector<8x64xf32>
    %cst_50 = arith.constant 0.000000e+00 : f32
    %131 = vector.broadcast %cst_50 : f32 to vector<8x64xf32>
    %132 = arith.maximumf %130, %131 : vector<8x64xf32>
    %133 = arith.truncf %132 : vector<8x64xf32> to vector<8x64xbf16>
    %c0_51 = arith.constant 0 : index
    %c0_52 = arith.constant 0 : index
    %134 = vector.load %arg14[%c0_51, %c0_52] : memref<64x32xbf16, #tpu.memory_space<vmem>>, vector<64x32xbf16>
    %cst_53 = arith.constant dense<0.000000e+00> : vector<8x32xf32>
    %135 = tpu.matmul %133, %134, %cst_53 {dimension_numbers = #tpu.dot_dimension_numbers<[1], [0], [0], [1], [0, 0, 1, 1], [], []>} : vector<8x64xbf16>, vector<64x32xbf16>, vector<8x32xf32> -> vector<8x32xf32>
    %c0_54 = arith.constant 0 : index
    %c0_55 = arith.constant 0 : index
    %136 = vector.load %arg15[%c0_54, %c0_55] : memref<1x32xf32, #tpu.memory_space<vmem>>, vector<1x32xf32>
    %137 = vector.broadcast %136 : vector<1x32xf32> to vector<8x32xf32>
    %138 = arith.addf %135, %137 : vector<8x32xf32>
    %139 = arith.addf %125, %138 : vector<8x32xf32>
    %140 = vector.shape_cast %139 : vector<8x32xf32> to vector<1x8x32xf32>
    %c0_56 = arith.constant 0 : index
    %c0_57 = arith.constant 0 : index
    %c0_58 = arith.constant 0 : index
    %141 = vector.load %arg16[%c0_56, %c0_57, %c0_58] : memref<1x8x32xf32, #tpu.memory_space<vmem>>, vector<1x8x32xf32>
    tpu.vector_store %arg16[%c0_56, %c0_57, %c0_58], %140 {strides = array<i32>} : memref<1x8x32xf32, #tpu.memory_space<vmem>>, vector<1x8x32xf32>,
    return
  }
  func.func @transform_0(%arg0: i32) -> (i32, i32, i32) {
    %c0_i32 = arith.constant 0 : i32
    %c0_i32_0 = arith.constant 0 : i32
    %c0_i32_1 = arith.constant 0 : i32
    return %arg0, %c0_i32, %c0_i32_0 : i32, i32, i32
  }
  func.func @transform_1(%arg0: i32) -> (i32, i32) {
    %c0_i32 = arith.constant 0 : i32
    %c0_i32_0 = arith.constant 0 : i32
    %c0_i32_1 = arith.constant 0 : i32
    return %c0_i32, %c0_i32_0 : i32, i32
  }
  func.func @transform_2(%arg0: i32) -> (i32, i32, i32) {
    %c0_i32 = arith.constant 0 : i32
    %c0_i32_0 = arith.constant 0 : i32
    %c0_i32_1 = arith.constant 0 : i32
    return %arg0, %c0_i32, %c0_i32_0 : i32, i32, i32
  }
  func.func @transform_3(%arg0: i32) -> (i32, i32) {
    %c0_i32 = arith.constant 0 : i32
    %c0_i32_0 = arith.constant 0 : i32
    %c0_i32_1 = arith.constant 0 : i32
    return %c0_i32, %c0_i32_0 : i32, i32
  }
  func.func @transform_4(%arg0: i32) -> (i32, i32) {
    %c0_i32 = arith.constant 0 : i32
    %c0_i32_0 = arith.constant 0 : i32
    %c0_i32_1 = arith.constant 0 : i32
    return %c0_i32, %c0_i32_0 : i32, i32
  }
  func.func @transform_5(%arg0: i32) -> (i32, i32) {
    %c0_i32 = arith.constant 0 : i32
    %c0_i32_0 = arith.constant 0 : i32
    %c0_i32_1 = arith.constant 0 : i32
    return %c0_i32, %c0_i32_0 : i32, i32
  }
  func.func @transform_6(%arg0: i32) -> (i32, i32) {
    %c0_i32 = arith.constant 0 : i32
    %c0_i32_0 = arith.constant 0 : i32
    %c0_i32_1 = arith.constant 0 : i32
    return %c0_i32, %c0_i32_0 : i32, i32
  }
  func.func @transform_7(%arg0: i32) -> (i32, i32) {
    %c0_i32 = arith.constant 0 : i32
    %c0_i32_0 = arith.constant 0 : i32
    %c0_i32_1 = arith.constant 0 : i32
    return %c0_i32, %c0_i32_0 : i32, i32
  }
  func.func @transform_8(%arg0: i32) -> (i32, i32) {
    %c0_i32 = arith.constant 0 : i32
    %c0_i32_0 = arith.constant 0 : i32
    %c0_i32_1 = arith.constant 0 : i32
    return %c0_i32, %c0_i32_0 : i32, i32
  }
  func.func @transform_9(%arg0: i32) -> (i32, i32) {
    %c0_i32 = arith.constant 0 : i32
    %c0_i32_0 = arith.constant 0 : i32
    %c0_i32_1 = arith.constant 0 : i32
    return %c0_i32, %c0_i32_0 : i32, i32
  }
  func.func @transform_10(%arg0: i32) -> (i32, i32) {
    %c0_i32 = arith.constant 0 : i32
    %c0_i32_0 = arith.constant 0 : i32
    %c0_i32_1 = arith.constant 0 : i32
    return %c0_i32, %c0_i32_0 : i32, i32
  }
  func.func @transform_11(%arg0: i32) -> (i32, i32) {
    %c0_i32 = arith.constant 0 : i32
    %c0_i32_0 = arith.constant 0 : i32
    %c0_i32_1 = arith.constant 0 : i32
    return %c0_i32, %c0_i32_0 : i32, i32
  }
  func.func @transform_12(%arg0: i32) -> (i32, i32) {
    %c0_i32 = arith.constant 0 : i32
    %c0_i32_0 = arith.constant 0 : i32
    %c0_i32_1 = arith.constant 0 : i32
    return %c0_i32, %c0_i32_0 : i32, i32
  }
  func.func @transform_13(%arg0: i32) -> (i32, i32) {
    %c0_i32 = arith.constant 0 : i32
    %c0_i32_0 = arith.constant 0 : i32
    %c0_i32_1 = arith.constant 0 : i32
    return %c0_i32, %c0_i32_0 : i32, i32
  }
  func.func @transform_14(%arg0: i32) -> (i32, i32) {
    %c0_i32 = arith.constant 0 : i32
    %c0_i32_0 = arith.constant 0 : i32
    %c0_i32_1 = arith.constant 0 : i32
    return %c0_i32, %c0_i32_0 : i32, i32
  }
  func.func @transform_15(%arg0: i32) -> (i32, i32, i32) {
    %c0_i32 = arith.constant 0 : i32
    %c0_i32_0 = arith.constant 0 : i32
    %c0_i32_1 = arith.constant 0 : i32
    return %arg0, %c0_i32, %c0_i32_0 : i32, i32, i32
  }
}

</mosaic_0001>

<llo_original>
// kernel: tpu_custom_call.1
$region0: #{tpu_custom_call.1}
  #allocation0 [shape = 'u32[]', space=smem, size = 0x4, offset = 0x4, fixed_abs, tag = 'smem constant byte address 0x4 - core index']
  #allocation1 [shape = 'u32[144,128]{1,0:T(1,128)}', space=vmem, size = 0x12000, scoped, tag = 'internal scratch']
  %s0 = inlined_call_operand.vmem [shape: f32[2,8,32], index: 0, kind: input, shape index: {}]
  %s1 = inlined_call_operand.hbm [shape: f32[8,8], index: 1, kind: input, shape index: {}]
  %s2 = inlined_call_operand.vmem [shape: f32[2,1,8], index: 2, kind: input, shape index: {}]
  %s3 = inlined_call_operand.hbm [shape: f32[1,32], index: 3, kind: input, shape index: {}]
  %s4 = inlined_call_operand.hbm [shape: f32[1,32], index: 4, kind: input, shape index: {}]
  %s5 = inlined_call_operand.hbm [shape: f32[1,32], index: 5, kind: input, shape index: {}]
  %s6 = inlined_call_operand.hbm [shape: f32[1,32], index: 6, kind: input, shape index: {}]
  %s7 = inlined_call_operand.vmem [shape: bf16[32,96], index: 7, kind: input, shape index: {}]
  %s8 = inlined_call_operand.hbm [shape: f32[1,96], index: 8, kind: input, shape index: {}]
  %s9 = inlined_call_operand.vmem [shape: bf16[32,32], index: 9, kind: input, shape index: {}]
  %s10 = inlined_call_operand.vmem [shape: f32[1,32], index: 10, kind: input, shape index: {}]
  %s11 = inlined_call_operand.vmem [shape: bf16[32,64], index: 11, kind: input, shape index: {}]
  %s12 = inlined_call_operand.vmem [shape: f32[1,64], index: 12, kind: input, shape index: {}]
  %s13 = inlined_call_operand.vmem [shape: bf16[64,32], index: 13, kind: input, shape index: {}]
  %s14 = inlined_call_operand.vmem [shape: f32[1,32], index: 14, kind: input, shape index: {}]
  %s15 = inlined_call_operand.hbm [shape: f32[2,8,32], index: 15, kind: output, shape index: {}]
  %s16 = sld [smem:[#allocation0]]
  $region117: #{tpu_custom_call.1} parent=0
    _
  %s18 = ssub.s32 1, %s16
  %s19 = scalar_select 0, %s18, %s16
  $region1: #{tpu_custom_call.1} parent=0
    #allocation2 [shape = 'u8[4096]{0}', space=vmem, size = 0x1000, scoped, tag = 'input window, operand 1, single buffered']
    #allocation3 [shape = 's32[2]{0}', space=sflag, size = 0x8, scoped, tag = 'scoped memory for tpu_custom_call.1']
    #allocation4 [shape = 's32[2]{0}', space=sflag, size = 0x8, scoped, tag = 'scoped memory for tpu_custom_call.1']
    #allocation5 [shape = 'u8[512]{0}', space=vmem, size = 0x400, scoped, tag = 'input window, operand 3, single buffered']
    #allocation6 [shape = 's32[1]{0}', space=sflag, size = 0x4, scoped, tag = 'scoped memory for tpu_custom_call.1']
    #allocation7 [shape = 'u8[512]{0}', space=vmem, size = 0x400, scoped, tag = 'input window, operand 4, single buffered']
    #allocation8 [shape = 'u8[512]{0}', space=vmem, size = 0x400, scoped, tag = 'input window, operand 5, single buffered']
    #allocation9 [shape = 's32[1]{0}', space=sflag, size = 0x4, scoped, tag = 'scoped memory for tpu_custom_call.1']
    #allocation10 [shape = 'u8[512]{0}', space=vmem, size = 0x400, scoped, tag = 'input window, operand 6, single buffered']
    #allocation11 [shape = 'u8[512]{0}', space=vmem, size = 0x400, scoped, tag = 'input window, operand 8, single buffered']
    #allocation12 [shape = 's32[1]{0}', space=sflag, size = 0x4, scoped, tag = 'scoped memory for tpu_custom_call.1']
    #allocation13 [shape = 'u8[8192]{0}', space=vmem, size = 0x2000, scoped, tag = 'output window, operand 0']
    %20 = vsyncpa [#allocation3], 0
    %21 = vsyncpa [#allocation6], 0
    %22 = vsyncpa [#allocation9], 0
    %23 = vsyncpa [#allocation12], 0
    %24 = vsyncpa [#allocation4], 0
    %s25 = scalar_lea.sflag [#allocation4], 1
    %26 = vsyncpa %s25, 0
    loop: start=0, step=1, limit=4
    $region2: #{tpu_custom_call.1} parent=1 // loop_pre_header
      _
    $region3: #{tpu_custom_call.1} parent=1 // loop_header
      %s28 = sphi 0, %s32
      %p29 = scmp.ge.s32.totalorder %s28, 4
      %s38 = sphi 0, %s40
      %s41 = sphi 0, %s38
      %s42 = sphi 0, %s41
      %s58 = sphi 0, %s42
      %s62 = sphi 0, %s62
      %s64 = sphi 0, %s62
      %s65 = sphi 0, %s64
      %s79 = sphi 0, %s65
      %s85 = sphi 0, %s87
      %s88 = sphi 0, %s85
      %s89 = sphi 0, %s88
      %s105 = sphi 0, %s89
      %s109 = sphi 0, %s109
      %s111 = sphi 0, %s109
      %s112 = sphi 0, %s111
      %s126 = sphi 0, %s112
      %s130 = sphi 0, %s130
      %s132 = sphi 0, %s130
      %s133 = sphi 0, %s132
      %s147 = sphi 0, %s133
      %s151 = sphi 0, %s151
      %s153 = sphi 0, %s151
      %s154 = sphi 0, %s153
      %s168 = sphi 0, %s154
      %s172 = sphi 0, %s172
      %s174 = sphi 0, %s172
      %s175 = sphi 0, %s174
      %s189 = sphi 0, %s175
      %s193 = sphi 0, %s193
      %s195 = sphi 0, %s193
      %s196 = sphi 0, %s195
      %s210 = sphi 0, %s196
      %s214 = sphi 0, %s214
      %s216 = sphi 0, %s214
      %s217 = sphi 0, %s216
      %s231 = sphi 0, %s217
      %s235 = sphi 0, %s235
      %s237 = sphi 0, %s235
      %s238 = sphi 0, %s237
      %s252 = sphi 0, %s238
      %s256 = sphi 0, %s256
      %s258 = sphi 0, %s256
      %s259 = sphi 0, %s258
      %s273 = sphi 0, %s259
      %s277 = sphi 0, %s277
      %s279 = sphi 0, %s277
      %s280 = sphi 0, %s279
      %s294 = sphi 0, %s280
      %s298 = sphi 0, %s298
      %s300 = sphi 0, %s298
      %s301 = sphi 0, %s300
      %s315 = sphi 0, %s301
      %s319 = sphi 0, %s319
      %s321 = sphi 0, %s319
      %s322 = sphi 0, %s321
      %s336 = sphi 0, %s322
      %s340 = sphi 0, %s340
      %s342 = sphi 0, %s340
      %s343 = sphi 0, %s342
      %s357 = sphi 0, %s343
      %s363 = sphi 0, %s365
      %s366 = sphi 0, %s363
      %s367 = sphi 0, %s366
      %s383 = sphi 0, %s367
    $region4: #{tpu_custom_call.1} parent=1 // loop_header_branch
      %31 = sbr.rel (%p29) target = $region8
    $region5: #{tpu_custom_call.1} parent=1 // loop_body
      %s33 = ssub.s32 %s28, 1
      %s34 = ssub.s32 %s28, 2
      %s35 = sadd.s32 %s28, 1
      %s36 = ssub.s32 %s28, %s35
      %p37 = scmp.eq.s32.totalorder %s36, 0
      %s39 = sadd.s32 %s38, 1
      %s40 = scalar_select %p37, %s38, %s39
      %p43 = pneg %p37
      %p44 = scmp.eq.s32.totalorder %s28, 1
      %p45 = por %p43, %p44
      %p46 = scmp.ne.s32.totalorder %s38, %s41
      %p47 = scmp.eq.s32.totalorder %s28, 0
      %p48 = por %p46, %p47
      %p49 = scmp.ne.s32.totalorder %s38, %s41
      %p50 = scmp.eq.s32.totalorder %s33, 1
      %p51 = por %p49, %p50
      %p52 = scmp.ne.s32.totalorder %s41, %s42
      %p53 = scmp.eq.s32.totalorder %s33, 0
      %p54 = por %p52, %p53
      %p55 = scmp.ne.s32.totalorder %s41, %s42
      %p56 = scmp.eq.s32.totalorder %s34, 1
      %p57 = por %p55, %p56
      %p59 = scmp.ne.s32.totalorder %s42, %s58
      %p60 = scmp.eq.s32.totalorder %s34, 0
      %p61 = por %p59, %p60
      %s63 = sadd.s32 %s62, 1
      %p66 = scmp.eq.s32.totalorder %s28, 1
      %p67 = scmp.ne.s32.totalorder %s62, %s64
      %p68 = scmp.eq.s32.totalorder %s28, 0
      %p69 = por %p67, %p68
      %p70 = scmp.ne.s32.totalorder %s62, %s64
      %p71 = scmp.eq.s32.totalorder %s33, 1
      %p72 = por %p70, %p71
      %p73 = scmp.ne.s32.totalorder %s64, %s65
      %p74 = scmp.eq.s32.totalorder %s33, 0
      %p75 = por %p73, %p74
      %p76 = scmp.ne.s32.totalorder %s64, %s65
      %p77 = scmp.eq.s32.totalorder %s34, 1
      %p78 = por %p76, %p77
      %p80 = scmp.ne.s32.totalorder %s65, %s79
      %p81 = scmp.eq.s32.totalorder %s34, 0
      %p82 = por %p80, %p81
      %s83 = ssub.s32 %s28, %s35
      %p84 = scmp.eq.s32.totalorder %s83, 0
      %s86 = sadd.s32 %s85, 1
      %s87 = scalar_select %p84, %s85, %s86
      %p90 = pneg %p84
      %p91 = scmp.eq.s32.totalorder %s28, 1
      %p92 = por %p90, %p91
      %p93 = scmp.ne.s32.totalorder %s85, %s88
      %p94 = scmp.eq.s32.totalorder %s28, 0
      %p95 = por %p93, %p94
      %p96 = scmp.ne.s32.totalorder %s85, %s88
      %p97 = scmp.eq.s32.totalorder %s33, 1
      %p98 = por %p96, %p97
      %p99 = scmp.ne.s32.totalorder %s88, %s89
      %p100 = scmp.eq.s32.totalorder %s33, 0
      %p101 = por %p99, %p100
      %p102 = scmp.ne.s32.totalorder %s88, %s89
      %p103 = scmp.eq.s32.totalorder %s34, 1
      %p104 = por %p102, %p103
      %p106 = scmp.ne.s32.totalorder %s89, %s105
      %p107 = scmp.eq.s32.totalorder %s34, 0
      %p108 = por %p106, %p107
      %s110 = sadd.s32 %s109, 1
      %p113 = scmp.eq.s32.totalorder %s28, 1
      %p114 = scmp.ne.s32.totalorder %s109, %s111
      %p115 = scmp.eq.s32.totalorder %s28, 0
      %p116 = por %p114, %p115
      %p117 = scmp.ne.s32.totalorder %s109, %s111
      %p118 = scmp.eq.s32.totalorder %s33, 1
      %p119 = por %p117, %p118
      %p120 = scmp.ne.s32.totalorder %s111, %s112
      %p121 = scmp.eq.s32.totalorder %s33, 0
      %p122 = por %p120, %p121
      %p123 = scmp.ne.s32.totalorder %s111, %s112
      %p124 = scmp.eq.s32.totalorder %s34, 1
      %p125 = por %p123, %p124
      %p127 = scmp.ne.s32.totalorder %s112, %s126
      %p128 = scmp.eq.s32.totalorder %s34, 0
      %p129 = por %p127, %p128
      %s131 = sadd.s32 %s130, 1
      %p134 = scmp.eq.s32.totalorder %s28, 1
      %p135 = scmp.ne.s32.totalorder %s130, %s132
      %p136 = scmp.eq.s32.totalorder %s28, 0
      %p137 = por %p135, %p136
      %p138 = scmp.ne.s32.totalorder %s130, %s132
      %p139 = scmp.eq.s32.totalorder %s33, 1
      %p140 = por %p138, %p139
      %p141 = scmp.ne.s32.totalorder %s132, %s133
      %p142 = scmp.eq.s32.totalorder %s33, 0
      %p143 = por %p141, %p142
      %p144 = scmp.ne.s32.totalorder %s132, %s133
      %p145 = scmp.eq.s32.totalorder %s34, 1
      %p146 = por %p144, %p145
      %p148 = scmp.ne.s32.totalorder %s133, %s147
      %p149 = scmp.eq.s32.totalorder %s34, 0
      %p150 = por %p148, %p149
      %s152 = sadd.s32 %s151, 1
      %p155 = scmp.eq.s32.totalorder %s28, 1
      %p156 = scmp.ne.s32.totalorder %s151, %s153
      %p157 = scmp.eq.s32.totalorder %s28, 0
      %p158 = por %p156, %p157
      %p159 = scmp.ne.s32.totalorder %s151, %s153
      %p160 = scmp.eq.s32.totalorder %s33, 1
      %p161 = por %p159, %p160
      %p162 = scmp.ne.s32.totalorder %s153, %s154
      %p163 = scmp.eq.s32.totalorder %s33, 0
      %p164 = por %p162, %p163
      %p165 = scmp.ne.s32.totalorder %s153, %s154
      %p166 = scmp.eq.s32.totalorder %s34, 1
      %p167 = por %p165, %p166
      %p169 = scmp.ne.s32.totalorder %s154, %s168
      %p170 = scmp.eq.s32.totalorder %s34, 0
      %p171 = por %p169, %p170
      %s173 = sadd.s32 %s172, 1
      %p176 = scmp.eq.s32.totalorder %s28, 1
      %p177 = scmp.ne.s32.totalorder %s172, %s174
      %p178 = scmp.eq.s32.totalorder %s28, 0
      %p179 = por %p177, %p178
      %p180 = scmp.ne.s32.totalorder %s172, %s174
      %p181 = scmp.eq.s32.totalorder %s33, 1
      %p182 = por %p180, %p181
      %p183 = scmp.ne.s32.totalorder %s174, %s175
      %p184 = scmp.eq.s32.totalorder %s33, 0
      %p185 = por %p183, %p184
      %p186 = scmp.ne.s32.totalorder %s174, %s175
      %p187 = scmp.eq.s32.totalorder %s34, 1
      %p188 = por %p186, %p187
      %p190 = scmp.ne.s32.totalorder %s175, %s189
      %p191 = scmp.eq.s32.totalorder %s34, 0
      %p192 = por %p190, %p191
      %s194 = sadd.s32 %s193, 1
      %p197 = scmp.eq.s32.totalorder %s28, 1
      %p198 = scmp.ne.s32.totalorder %s193, %s195
      %p199 = scmp.eq.s32.totalorder %s28, 0
      %p200 = por %p198, %p199
      %p201 = scmp.ne.s32.totalorder %s193, %s195
      %p202 = scmp.eq.s32.totalorder %s33, 1
      %p203 = por %p201, %p202
      %p204 = scmp.ne.s32.totalorder %s195, %s196
      %p205 = scmp.eq.s32.totalorder %s33, 0
      %p206 = por %p204, %p205
      %p207 = scmp.ne.s32.totalorder %s195, %s196
      %p208 = scmp.eq.s32.totalorder %s34, 1
      %p209 = por %p207, %p208
      %p211 = scmp.ne.s32.totalorder %s196, %s210
      %p212 = scmp.eq.s32.totalorder %s34, 0
      %p213 = por %p211, %p212
      %s215 = sadd.s32 %s214, 1
      %p218 = scmp.eq.s32.totalorder %s28, 1
      %p219 = scmp.ne.s32.totalorder %s214, %s216
      %p220 = scmp.eq.s32.totalorder %s28, 0
      %p221 = por %p219, %p220
      %p222 = scmp.ne.s32.totalorder %s214, %s216
      %p223 = scmp.eq.s32.totalorder %s33, 1
      %p224 = por %p222, %p223
      %p225 = scmp.ne.s32.totalorder %s216, %s217
      %p226 = scmp.eq.s32.totalorder %s33, 0
      %p227 = por %p225, %p226
      %p228 = scmp.ne.s32.totalorder %s216, %s217
      %p229 = scmp.eq.s32.totalorder %s34, 1
      %p230 = por %p228, %p229
      %p232 = scmp.ne.s32.totalorder %s217, %s231
      %p233 = scmp.eq.s32.totalorder %s34, 0
      %p234 = por %p232, %p233
      %s236 = sadd.s32 %s235, 1
      %p239 = scmp.eq.s32.totalorder %s28, 1
      %p240 = scmp.ne.s32.totalorder %s235, %s237
      %p241 = scmp.eq.s32.totalorder %s28, 0
      %p242 = por %p240, %p241
      %p243 = scmp.ne.s32.totalorder %s235, %s237
      %p244 = scmp.eq.s32.totalorder %s33, 1
      %p245 = por %p243, %p244
      %p246 = scmp.ne.s32.totalorder %s237, %s238
      %p247 = scmp.eq.s32.totalorder %s33, 0
      %p248 = por %p246, %p247
      %p249 = scmp.ne.s32.totalorder %s237, %s238
      %p250 = scmp.eq.s32.totalorder %s34, 1
      %p251 = por %p249, %p250
      %p253 = scmp.ne.s32.totalorder %s238, %s252
      %p254 = scmp.eq.s32.totalorder %s34, 0
      %p255 = por %p253, %p254
      %s257 = sadd.s32 %s256, 1
      %p260 = scmp.eq.s32.totalorder %s28, 1
      %p261 = scmp.ne.s32.totalorder %s256, %s258
      %p262 = scmp.eq.s32.totalorder %s28, 0
      %p263 = por %p261, %p262
      %p264 = scmp.ne.s32.totalorder %s256, %s258
      %p265 = scmp.eq.s32.totalorder %s33, 1
      %p266 = por %p264, %p265
      %p267 = scmp.ne.s32.totalorder %s258, %s259
      %p268 = scmp.eq.s32.totalorder %s33, 0
      %p269 = por %p267, %p268
      %p270 = scmp.ne.s32.totalorder %s258, %s259
      %p271 = scmp.eq.s32.totalorder %s34, 1
      %p272 = por %p270, %p271
      %p274 = scmp.ne.s32.totalorder %s259, %s273
      %p275 = scmp.eq.s32.totalorder %s34, 0
      %p276 = por %p274, %p275
      %s278 = sadd.s32 %s277, 1
      %p281 = scmp.eq.s32.totalorder %s28, 1
      %p282 = scmp.ne.s32.totalorder %s277, %s279
      %p283 = scmp.eq.s32.totalorder %s28, 0
      %p284 = por %p282, %p283
      %p285 = scmp.ne.s32.totalorder %s277, %s279
      %p286 = scmp.eq.s32.totalorder %s33, 1
      %p287 = por %p285, %p286
      %p288 = scmp.ne.s32.totalorder %s279, %s280
      %p289 = scmp.eq.s32.totalorder %s33, 0
      %p290 = por %p288, %p289
      %p291 = scmp.ne.s32.totalorder %s279, %s280
      %p292 = scmp.eq.s32.totalorder %s34, 1
      %p293 = por %p291, %p292
      %p295 = scmp.ne.s32.totalorder %s280, %s294
      %p296 = scmp.eq.s32.totalorder %s34, 0
      %p297 = por %p295, %p296
      %s299 = sadd.s32 %s298, 1
      %p302 = scmp.eq.s32.totalorder %s28, 1
      %p303 = scmp.ne.s32.totalorder %s298, %s300
      %p304 = scmp.eq.s32.totalorder %s28, 0
      %p305 = por %p303, %p304
      %p306 = scmp.ne.s32.totalorder %s298, %s300
      %p307 = scmp.eq.s32.totalorder %s33, 1
      %p308 = por %p306, %p307
      %p309 = scmp.ne.s32.totalorder %s300, %s301
      %p310 = scmp.eq.s32.totalorder %s33, 0
      %p311 = por %p309, %p310
      %p312 = scmp.ne.s32.totalorder %s300, %s301
      %p313 = scmp.eq.s32.totalorder %s34, 1
      %p314 = por %p312, %p313
      %p316 = scmp.ne.s32.totalorder %s301, %s315
      %p317 = scmp.eq.s32.totalorder %s34, 0
      %p318 = por %p316, %p317
      %s320 = sadd.s32 %s319, 1
      %p323 = scmp.eq.s32.totalorder %s28, 1
      %p324 = scmp.ne.s32.totalorder %s319, %s321
      %p325 = scmp.eq.s32.totalorder %s28, 0
      %p326 = por %p324, %p325
      %p327 = scmp.ne.s32.totalorder %s319, %s321
      %p328 = scmp.eq.s32.totalorder %s33, 1
      %p329 = por %p327, %p328
      %p330 = scmp.ne.s32.totalorder %s321, %s322
      %p331 = scmp.eq.s32.totalorder %s33, 0
      %p332 = por %p330, %p331
      %p333 = scmp.ne.s32.totalorder %s321, %s322
      %p334 = scmp.eq.s32.totalorder %s34, 1
      %p335 = por %p333, %p334
      %p337 = scmp.ne.s32.totalorder %s322, %s336
      %p338 = scmp.eq.s32.totalorder %s34, 0
      %p339 = por %p337, %p338
      %s341 = sadd.s32 %s340, 1
      %p344 = scmp.eq.s32.totalorder %s28, 1
      %p345 = scmp.ne.s32.totalorder %s340, %s342
      %p346 = scmp.eq.s32.totalorder %s28, 0
      %p347 = por %p345, %p346
      %p348 = scmp.ne.s32.totalorder %s340, %s342
      %p349 = scmp.eq.s32.totalorder %s33, 1
      %p350 = por %p348, %p349
      %p351 = scmp.ne.s32.totalorder %s342, %s343
      %p352 = scmp.eq.s32.totalorder %s33, 0
      %p353 = por %p351, %p352
      %p354 = scmp.ne.s32.totalorder %s342, %s343
      %p355 = scmp.eq.s32.totalorder %s34, 1
      %p356 = por %p354, %p355
      %p358 = scmp.ne.s32.totalorder %s343, %s357
      %p359 = scmp.eq.s32.totalorder %s34, 0
      %p360 = por %p358, %p359
      %s361 = ssub.s32 %s28, %s35
      %p362 = scmp.eq.s32.totalorder %s361, 0
      %s364 = sadd.s32 %s363, 1
      %s365 = scalar_select %p362, %s363, %s364
      %p368 = pneg %p362
      %p369 = scmp.eq.s32.totalorder %s28, 1
      %p370 = por %p368, %p369
      %p371 = scmp.ne.s32.totalorder %s363, %s366
      %p372 = scmp.eq.s32.totalorder %s28, 0
      %p373 = por %p371, %p372
      %p374 = scmp.ne.s32.totalorder %s363, %s366
      %p375 = scmp.eq.s32.totalorder %s33, 1
      %p376 = por %p374, %p375
      %p377 = scmp.ne.s32.totalorder %s366, %s367
      %p378 = scmp.eq.s32.totalorder %s33, 0
      %p379 = por %p377, %p378
      %p380 = scmp.ne.s32.totalorder %s366, %s367
      %p381 = scmp.eq.s32.totalorder %s34, 1
      %p382 = por %p380, %p381
      %p384 = scmp.ne.s32.totalorder %s367, %s383
      %p385 = scmp.eq.s32.totalorder %s34, 0
      %p386 = por %p384, %p385
      %p387 = scmp.le.s32.totalorder 1, %s28
      %p388 = scmp.lt.s32.totalorder %s28, 3
      %p389 = pnand %p387, %p388
      %p390 = pneg %p389
      // Predicated region
      $region9: #{tpu_custom_call.1} parent=5 // pred_check
        _
      $region10: #{tpu_custom_call.1} parent=5 // pred_check_branch
        %392 = sbr.rel (%p389) target = $region12
      $region11: #{tpu_custom_call.1} parent=5 // pred_region
        %s393 = ssub.s32 %s28, 1
        // Predicated region
        $region13: #{tpu_custom_call.1} parent=11 // pred_check
          %p394 = pneg %p75
        $region14: #{tpu_custom_call.1} parent=11 // pred_check_branch
          %396 = sbr.rel (%p394) target = $region16
        $region15: #{tpu_custom_call.1} parent=11 // pred_region
          %s398 = ssub.s32 128, 128
          %399 = vsyncadd [#allocation3], %s398
          %s401 = sshll.u32 [#allocation2], 4
          %s402 = int_to_ptr.vmem [resolvable:$true] %s401
          %404 = dma.hbm_to_vmem [thread:$0]  %s1, 128, %s402, [#allocation3]
        $region16: #{tpu_custom_call.1} parent=11 // pred_fallthru
          _
        // Predicated region
        $region17: #{tpu_custom_call.1} parent=11 // pred_check
          %p405 = pneg %p122
        $region18: #{tpu_custom_call.1} parent=11 // pred_check_branch
          %407 = sbr.rel (%p405) target = $region20
        $region19: #{tpu_custom_call.1} parent=11 // pred_region
          %s409 = ssub.s32 16, 16
          %410 = vsyncadd [#allocation6], %s409
          %s412 = sshll.u32 [#allocation5], 4
          %s413 = int_to_ptr.vmem [resolvable:$true] %s412
          %415 = dma.hbm_to_vmem [thread:$0]  %s3, 16, %s413, [#allocation6]
        $region20: #{tpu_custom_call.1} parent=11 // pred_fallthru
          _
        // Predicated region
        $region21: #{tpu_custom_call.1} parent=11 // pred_check
          %p416 = pneg %p143
        $region22: #{tpu_custom_call.1} parent=11 // pred_check_branch
          %418 = sbr.rel (%p416) target = $region24
        $region23: #{tpu_custom_call.1} parent=11 // pred_region
          %s420 = ssub.s32 16, 16
          %421 = vsyncadd [#allocation6], %s420
          %s423 = sshll.u32 [#allocation7], 4
          %s424 = int_to_ptr.vmem [resolvable:$true] %s423
          %426 = dma.hbm_to_vmem [thread:$0]  %s4, 16, %s424, [#allocation6]
        $region24: #{tpu_custom_call.1} parent=11 // pred_fallthru
          _
        // Predicated region
        $region25: #{tpu_custom_call.1} parent=11 // pred_check
          %p427 = pneg %p164
        $region26: #{tpu_custom_call.1} parent=11 // pred_check_branch
          %429 = sbr.rel (%p427) target = $region28
        $region27: #{tpu_custom_call.1} parent=11 // pred_region
          %s431 = ssub.s32 16, 16
          %432 = vsyncadd [#allocation9], %s431
          %s434 = sshll.u32 [#allocation8], 4
          %s435 = int_to_ptr.vmem [resolvable:$true] %s434
          %437 = dma.hbm_to_vmem [thread:$0]  %s5, 16, %s435, [#allocation9]
        $region28: #{tpu_custom_call.1} parent=11 // pred_fallthru
          _
        // Predicated region
        $region29: #{tpu_custom_call.1} parent=11 // pred_check
          %p438 = pneg %p185
        $region30: #{tpu_custom_call.1} parent=11 // pred_check_branch
          %440 = sbr.rel (%p438) target = $region32
        $region31: #{tpu_custom_call.1} parent=11 // pred_region
          %s442 = ssub.s32 16, 16
          %443 = vsyncadd [#allocation9], %s442
          %s445 = sshll.u32 [#allocation10], 4
          %s446 = int_to_ptr.vmem [resolvable:$true] %s445
          %448 = dma.hbm_to_vmem [thread:$0]  %s6, 16, %s446, [#allocation9]
        $region32: #{tpu_custom_call.1} parent=11 // pred_fallthru
          _
        // Predicated region
        $region33: #{tpu_custom_call.1} parent=11 // pred_check
          %p449 = pneg %p206
        $region34: #{tpu_custom_call.1} parent=11 // pred_check_branch
          %451 = sbr.rel (%p449) target = $region36
        $region35: #{tpu_custom_call.1} parent=11 // pred_region
          _
        $region36: #{tpu_custom_call.1} parent=11 // pred_fallthru
          _
        // Predicated region
        $region37: #{tpu_custom_call.1} parent=11 // pred_check
          %p452 = pneg %p227
        $region38: #{tpu_custom_call.1} parent=11 // pred_check_branch
          %454 = sbr.rel (%p452) target = $region40
        $region39: #{tpu_custom_call.1} parent=11 // pred_region
          %s456 = ssub.s32 16, 16
          %457 = vsyncadd [#allocation12], %s456
          %s459 = sshll.u32 [#allocation11], 4
          %s460 = int_to_ptr.vmem [resolvable:$true] %s459
          %462 = dma.hbm_to_vmem [thread:$0]  %s8, 16, %s460, [#allocation12]
        $region40: #{tpu_custom_call.1} parent=11 // pred_fallthru
          _
        // Predicated region
        $region41: #{tpu_custom_call.1} parent=11 // pred_check
          %p463 = pneg %p248
        $region42: #{tpu_custom_call.1} parent=11 // pred_check_branch
          %465 = sbr.rel (%p463) target = $region44
        $region43: #{tpu_custom_call.1} parent=11 // pred_region
          _
        $region44: #{tpu_custom_call.1} parent=11 // pred_fallthru
          _
        // Predicated region
        $region45: #{tpu_custom_call.1} parent=11 // pred_check
          %p466 = pneg %p269
        $region46: #{tpu_custom_call.1} parent=11 // pred_check_branch
          %468 = sbr.rel (%p466) target = $region48
        $region47: #{tpu_custom_call.1} parent=11 // pred_region
          _
        $region48: #{tpu_custom_call.1} parent=11 // pred_fallthru
          _
        // Predicated region
        $region49: #{tpu_custom_call.1} parent=11 // pred_check
          %p469 = pneg %p290
        $region50: #{tpu_custom_call.1} parent=11 // pred_check_branch
          %471 = sbr.rel (%p469) target = $region52
        $region51: #{tpu_custom_call.1} parent=11 // pred_region
          _
        $region52: #{tpu_custom_call.1} parent=11 // pred_fallthru
          _
        // Predicated region
        $region53: #{tpu_custom_call.1} parent=11 // pred_check
          %p472 = pneg %p311
        $region54: #{tpu_custom_call.1} parent=11 // pred_check_branch
          %474 = sbr.rel (%p472) target = $region56
        $region55: #{tpu_custom_call.1} parent=11 // pred_region
          _
        $region56: #{tpu_custom_call.1} parent=11 // pred_fallthru
          _
        // Predicated region
        $region57: #{tpu_custom_call.1} parent=11 // pred_check
          %p475 = pneg %p332
        $region58: #{tpu_custom_call.1} parent=11 // pred_check_branch
          %477 = sbr.rel (%p475) target = $region60
        $region59: #{tpu_custom_call.1} parent=11 // pred_region
          _
        $region60: #{tpu_custom_call.1} parent=11 // pred_fallthru
          _
        // Predicated region
        $region61: #{tpu_custom_call.1} parent=11 // pred_check
          %p478 = pneg %p353
        $region62: #{tpu_custom_call.1} parent=11 // pred_check_branch
          %480 = sbr.rel (%p478) target = $region64
        $region63: #{tpu_custom_call.1} parent=11 // pred_region
          _
        $region64: #{tpu_custom_call.1} parent=11 // pred_fallthru
          _
      $region12: #{tpu_custom_call.1} parent=5 // pred_fallthru
        _
      %p481 = scmp.lt.s32.totalorder %s28, 2
      // Predicated region
      $region65: #{tpu_custom_call.1} parent=5 // pred_check
        %p482 = pneg %p481
      $region66: #{tpu_custom_call.1} parent=5 // pred_check_branch
        %484 = sbr.rel (%p482) target = $region68
      $region67: #{tpu_custom_call.1} parent=5 // pred_region
        // Predicated region
        $region69: #{tpu_custom_call.1} parent=67 // pred_check
          %p485 = pneg %p48
        $region70: #{tpu_custom_call.1} parent=67 // pred_check_branch
          %487 = sbr.rel (%p485) target = $region72
        $region71: #{tpu_custom_call.1} parent=67 // pred_region
          %p488 = scmp.lt.s32.totalorder %s28, 1
          %s489 = scalar_select %p488, %s28, 1
          %s490 = smul.addr %s489, 8
          %s491 = scalar_lea.vmem %s0, %s490
        $region72: #{tpu_custom_call.1} parent=67 // pred_fallthru
          _
        // Predicated region
        $region73: #{tpu_custom_call.1} parent=67 // pred_check
          %p492 = pneg %p95
        $region74: #{tpu_custom_call.1} parent=67 // pred_check_branch
          %494 = sbr.rel (%p492) target = $region76
        $region75: #{tpu_custom_call.1} parent=67 // pred_region
          %p495 = scmp.lt.s32.totalorder %s28, 1
          %s496 = scalar_select %p495, %s28, 1
          %s497 = scalar_lea.vmem %s2, %s496
        $region76: #{tpu_custom_call.1} parent=67 // pred_fallthru
          _
      $region68: #{tpu_custom_call.1} parent=5 // pred_fallthru
        _
      %p498 = scmp.le.s32.totalorder 1, %s28
      %p499 = scmp.lt.s32.totalorder %s28, 3
      %p500 = pnand %p498, %p499
      %p501 = pneg %p500
      // Predicated region
      $region77: #{tpu_custom_call.1} parent=5 // pred_check
        _
      $region78: #{tpu_custom_call.1} parent=5 // pred_check_branch
        %503 = sbr.rel (%p500) target = $region80
      $region79: #{tpu_custom_call.1} parent=5 // pred_region
        %s504 = ssub.s32 %s28, 1
        // Predicated region
        $region81: #{tpu_custom_call.1} parent=79 // pred_check
          %p505 = pneg %p75
        $region82: #{tpu_custom_call.1} parent=79 // pred_check_branch
          %507 = sbr.rel (%p505) target = $region84
        $region83: #{tpu_custom_call.1} parent=79 // pred_region
          %508 = dma.done [#allocation3], 128
        $region84: #{tpu_custom_call.1} parent=79 // pred_fallthru
          _
        // Predicated region
        $region85: #{tpu_custom_call.1} parent=79 // pred_check
          %p509 = pneg %p122
        $region86: #{tpu_custom_call.1} parent=79 // pred_check_branch
          %511 = sbr.rel (%p509) target = $region88
        $region87: #{tpu_custom_call.1} parent=79 // pred_region
          %512 = dma.done [#allocation6], 16
        $region88: #{tpu_custom_call.1} parent=79 // pred_fallthru
          _
        // Predicated region
        $region89: #{tpu_custom_call.1} parent=79 // pred_check
          %p513 = pneg %p143
        $region90: #{tpu_custom_call.1} parent=79 // pred_check_branch
          %515 = sbr.rel (%p513) target = $region92
        $region91: #{tpu_custom_call.1} parent=79 // pred_region
          %516 = dma.done [#allocation6], 16
        $region92: #{tpu_custom_call.1} parent=79 // pred_fallthru
          _
        // Predicated region
        $region93: #{tpu_custom_call.1} parent=79 // pred_check
          %p517 = pneg %p164
        $region94: #{tpu_custom_call.1} parent=79 // pred_check_branch
          %519 = sbr.rel (%p517) target = $region96
        $region95: #{tpu_custom_call.1} parent=79 // pred_region
          %520 = dma.done [#allocation9], 16
        $region96: #{tpu_custom_call.1} parent=79 // pred_fallthru
          _
        // Predicated region
        $region97: #{tpu_custom_call.1} parent=79 // pred_check
          %p521 = pneg %p185
        $region98: #{tpu_custom_call.1} parent=79 // pred_check_branch
          %523 = sbr.rel (%p521) target = $region100
        $region99: #{tpu_custom_call.1} parent=79 // pred_region
          %524 = dma.done [#allocation9], 16
        $region100: #{tpu_custom_call.1} parent=79 // pred_fallthru
          _
        // Predicated region
        $region101: #{tpu_custom_call.1} parent=79 // pred_check
          %p525 = pneg %p227
        $region102: #{tpu_custom_call.1} parent=79 // pred_check_branch
          %527 = sbr.rel (%p525) target = $region104
        $region103: #{tpu_custom_call.1} parent=79 // pred_region
          %528 = dma.done [#allocation12], 16
        $region104: #{tpu_custom_call.1} parent=79 // pred_fallthru
          _
        %p529 = scmp.lt.s32.totalorder %s33, 1
        %s530 = scalar_select %p529, %s33, 1
        %s531 = smul.addr %s530, 8
        %s532 = scalar_lea.vmem %s0, %s531
        %p533 = pneg %p54
        %p534 = pneg %p51
        %p535 = pneg %p75
        %p536 = pneg %p72
        %p537 = scmp.lt.s32.totalorder %s33, 1
        %s538 = scalar_select %p537, %s33, 1
        %s539 = scalar_lea.vmem %s2, %s538
        %p540 = pneg %p101
        %p541 = pneg %p98
        %p542 = pneg %p122
        %p543 = pneg %p119
        %p544 = pneg %p143
        %p545 = pneg %p140
        %p546 = pneg %p164
        %p547 = pneg %p161
        %p548 = pneg %p185
        %p549 = pneg %p182
        %p550 = pneg %p206
        %p551 = pneg %p203
        %p552 = pneg %p227
        %p553 = pneg %p224
        %p554 = pneg %p248
        %p555 = pneg %p245
        %p556 = pneg %p269
        %p557 = pneg %p266
        %p558 = pneg %p290
        %p559 = pneg %p287
        %p560 = pneg %p311
        %p561 = pneg %p308
        %p562 = pneg %p332
        %p563 = pneg %p329
        %p564 = pneg %p353
        %p565 = pneg %p350
        %p566 = pneg %p379
        %p567 = pneg %p376
        %s568 = sand.u32 %s366, 1
        %s569 = scalar_lea.sflag [#allocation4], %s568
        %s570 = sand.u32 %s366, 1
        %s571 = smul.addr %s570, 8
        %s572 = scalar_lea.vmem [#allocation13], %s571
        %p573 = scmp.lt.s32.totalorder %s33, 1
        %s574 = scalar_select %p573, %s33, 1
        %s575 = smul.addr %s574, 8
        %s576 = scalar_lea.vmem %s0, %s575
        %p577 = scmp.lt.s32.totalorder %s33, 1
        %s578 = scalar_select %p577, %s33, 1
        %s579 = scalar_lea.vmem %s2, %s578
        %v581 = vld [vmem:[%s576] sm:$0xff]
        %vm582 = vcmask 261120
        %v583 = vsel %vm582, %v581, 0.0
        %584 = vadd.xlane.f32.xlu0 %v583
        %v585 = vpop.xlane.xlu0 %584
        %v586 = vrcp.pop 32.0
        %v587 = vmul.f32 %v585, %v586
        %v588 = vsub.f32 %v581, %v587
        %v589 = vmul.f32 %v588, %v588
        %v590 = vsel %vm582, %v589, 0.0
        %591 = vadd.xlane.f32.xlu0 %v590
        %v592 = vpop.xlane.xlu0 %591
        %v593 = vmul.f32 %v592, %v586
        %v594 = vadd.f32 %v593, 1e-05
        %v595 = vrsqrt.pop %v594
        %v596 = vmul.f32 %v588, %v595
        %v597 = vld [vmem:[#allocation5] sm:$0x1]
        %v599 = vlaneseq
        %v600 = vshrl.u32 %v599, 7
        %v601 = vsub.s32 0, %v600
        %v602 = vrot.slane %v597, %v601
        %v604 = vmul.f32 %v596, %v602
        %v605 = vld [vmem:[#allocation7] sm:$0x1]
        %v607 = vlaneseq
        %v608 = vshrl.u32 %v607, 7
        %v609 = vsub.s32 0, %v608
        %v610 = vrot.slane %v605, %v609
        %v612 = vadd.f32 %v604, %v610
        %v613 = vpack.c.bf16 %v612, %v612
        %v614 = vld [vmem:[#allocation8] sm:$0x1]
        %v616 = vlaneseq
        %v617 = vshrl.u32 %v616, 7
        %v618 = vsub.s32 0, %v617
        %v619 = vrot.slane %v614, %v618
        %v621 = vmul.f32 %v596, %v619
        %v622 = vld [vmem:[#allocation10] sm:$0x1]
        %v624 = vlaneseq
        %v625 = vshrl.u32 %v624, 7
        %v626 = vsub.s32 0, %v625
        %v627 = vrot.slane %v622, %v626
        %v629 = vadd.f32 %v621, %v627
        %v630 = vpack.c.bf16 %v629, %v629
        %v631 = vld [vmem:[%s7] sm:$0xf]
        %v632 = vld [vmem:[%s7 + $0x4] sm:$0xf]
        %v633 = vld [vmem:[%s7 + $0x8] sm:$0xf]
        %v634 = vld [vmem:[%s7 + $0xc] sm:$0xf]
        %v635 = vld [vmem:[#allocation11] sm:$0x1]
        %v637 = vlaneseq
        %v638 = vshrl.u32 %v637, 7
        %v639 = vsub.s32 0, %v638
        %v640 = vrot.slane %v635, %v639
        %v646 = vunpack.c.l.b16 %v631
        %v647 = vunpack.c.l.b16 %v632
        %v648 = vunpack.c.l.b16 %v633
        %v649 = vunpack.c.l.b16 %v634
        %v650 = vpack.c.b16 %v647, %v646
        %v651 = vpack.c.b16 %v649, %v648
        %v655 = vsel %vm582, %v613, 0
        %657 = vmatprep.subr.bf16.mxu0 0
        %658 = vmatpush1.bf16.msra.mxu0 %v650
        %659 = vmatprep.subr.bf16.mxu0 0
        %660 = vmatpush1.bf16.msra.mxu0 %v651
        %661 = vmatprep.subr.bf16.mxu0 0
        %662 = vmatpush1.bf16.msra.mxu0 0
        %663 = vmatprep.subr.bf16.mxu0 0
        %664 = vmatpush1.bf16.msra.mxu0 0
        %665 = vmatprep.subr.bf16.mxu0 0
        %666 = vmatpush1.bf16.msra.mxu0 0
        %667 = vmatprep.subr.bf16.mxu0 0
        %668 = vmatpush1.bf16.msra.mxu0 0
        %669 = vmatprep.subr.bf16.mxu0 0
        %670 = vmatpush1.bf16.msra.mxu0 0
        %671 = vmatprep.subr.bf16.mxu0 0
        %672 = vmatpush1.bf16.msra.mxu0 0
        %673 = vmatprep.subr.bf16.mxu0 0
        %674 = vmatpush1.bf16.msra.mxu0 0
        %675 = vmatprep.subr.bf16.mxu0 0
        %676 = vmatpush1.bf16.msra.mxu0 0
        %677 = vmatprep.subr.bf16.mxu0 0
        %678 = vmatpush1.bf16.msra.mxu0 0
        %679 = vmatprep.subr.bf16.mxu0 0
        %680 = vmatpush1.bf16.msra.mxu0 0
        %681 = vmatprep.subr.bf16.mxu0 0
        %682 = vmatpush1.bf16.msra.mxu0 0
        %683 = vmatprep.subr.bf16.mxu0 0
        %684 = vmatpush1.bf16.msra.mxu0 0
        %685 = vmatprep.subr.bf16.mxu0 0
        %686 = vmatpush1.bf16.msra.mxu0 0
        %687 = vmatprep.subr.bf16.mxu0 0
        %688 = vmatpush1.bf16.msra.mxu0 0
        %689 = vmatprep.mubr.bf16.mxu0 0
        %690 = vmatmul.mubr.bf16.gmra.mrb[0].mxu0 %v655
        %v691 = vpop.f32.mrb[0].mxu0
        %v692 = vadd.f32 %v640, %v691
        %v693 = vpop.f32.mrb[0].mxu0
        %v694 = vpop.f32.mrb[0].mxu0
        %v695 = vpop.f32.mrb[0].mxu0
        %696 = vdwg.mxu0
        %v697 = vpack.c.bf16 %v692, %v692
        %v698 = vld [vmem:[#allocation2] sm:$0xff]
        %v699 = vld [vmem:[%s579] sm:$0x1]
        %v701 = vlaneseq
        %v702 = vshrl.u32 %v701, 7
        %v703 = vsub.s32 0, %v702
        %v704 = vrot.slane %v699, %v703
        %v706 = vadd.f32 %v698, %v704
        %708 = vrot.lane.b32.xlu0 %v697, 96
        %v709 = vpop.permute.xlu0 %708
        %vm710 = vcmask 64512
        %v712 = vsel %vm710, %v697, 0
        %v715 = vsel %vm710, %v709, 0
        %717 = vmatprep.subr.bf16.mxu0 0
        %718 = vmatpush1.bf16.xpose.msra.mxu0 %v715
        %719 = vmatprep.subr.bf16.mxu0 0
        %720 = vmatpush1.bf16.xpose.msra.mxu0 0
        %721 = vmatprep.subr.bf16.mxu0 0
        %722 = vmatpush1.bf16.xpose.msra.mxu0 0
        %723 = vmatprep.subr.bf16.mxu0 0
        %724 = vmatpush1.bf16.xpose.msra.mxu0 0
        %725 = vmatprep.subr.bf16.mxu0 0
        %726 = vmatpush1.bf16.xpose.msra.mxu0 0
        %727 = vmatprep.subr.bf16.mxu0 0
        %728 = vmatpush1.bf16.xpose.msra.mxu0 0
        %729 = vmatprep.subr.bf16.mxu0 0
        %730 = vmatpush1.bf16.xpose.msra.mxu0 0
        %731 = vmatprep.subr.bf16.mxu0 0
        %732 = vmatpush1.bf16.xpose.msra.mxu0 0
        %733 = vmatprep.subr.bf16.mxu0 0
        %734 = vmatpush1.bf16.xpose.msra.mxu0 0
        %735 = vmatprep.subr.bf16.mxu0 0
        %736 = vmatpush1.bf16.xpose.msra.mxu0 0
        %737 = vmatprep.subr.bf16.mxu0 0
        %738 = vmatpush1.bf16.xpose.msra.mxu0 0
        %739 = vmatprep.subr.bf16.mxu0 0
        %740 = vmatpush1.bf16.xpose.msra.mxu0 0
        %741 = vmatprep.subr.bf16.mxu0 0
        %742 = vmatpush1.bf16.xpose.msra.mxu0 0
        %743 = vmatprep.subr.bf16.mxu0 0
        %744 = vmatpush1.bf16.xpose.msra.mxu0 0
        %745 = vmatprep.subr.bf16.mxu0 0
        %746 = vmatpush1.bf16.xpose.msra.mxu0 0
        %747 = vmatprep.subr.bf16.mxu0 0
        %748 = vmatpush1.bf16.xpose.msra.mxu0 0
        %749 = vmatprep.mubr.bf16.mxu0 0
        %750 = vmatmul.mubr.bf16.gmra.mrb[0].mxu0 %v712
        %v751 = vpop.f32.mrb[0].mxu0
        %v752 = vadd.f32 %v706, %v751
        %v753 = vpop.f32.mrb[0].mxu0
        %v754 = vpop.f32.mrb[0].mxu0
        %v755 = vpop.f32.mrb[0].mxu0
        %756 = vdwg.mxu0
        %v757 = vsel %vm710, %v752, -inf
        %758 = vmax.xlane.f32.xlu0 %v757
        %v759 = vpop.xlane.xlu0 %758
        %v760 = vsub.f32 %v752, %v759
        %v761 = vmul.f32 %v760, 1.442695
        %v762 = vpow.pop %v761
        %v763 = vsel %vm710, %v762, 0.0
        %764 = vadd.xlane.f32.xlu0 %v763
        %v765 = vpop.xlane.xlu0 %764
        %v766 = vrcp.pop %v765
        %v767 = vmul.f32 %v762, %v766
        %v768 = vpack.c.bf16 %v767, %v767
        %769 = vrot.lane.b32.xlu0 %v697, 64
        %v770 = vpop.permute.xlu0 %769
        %v772 = vsel %vm710, %v768, 0
        %vm774 = vcmask 1043456
        %v776 = vsel %vm774, %v770, 0
        %778 = vmatprep.subr.bf16.mxu0 0
        %779 = vmatpush1.bf16.msra.mxu0 %v776
        %780 = vmatprep.subr.bf16.mxu0 0
        %781 = vmatpush1.bf16.msra.mxu0 0
        %782 = vmatprep.subr.bf16.mxu0 0
        %783 = vmatpush1.bf16.msra.mxu0 0
        %784 = vmatprep.subr.bf16.mxu0 0
        %785 = vmatpush1.bf16.msra.mxu0 0
        %786 = vmatprep.subr.bf16.mxu0 0
        %787 = vmatpush1.bf16.msra.mxu0 0
        %788 = vmatprep.subr.bf16.mxu0 0
        %789 = vmatpush1.bf16.msra.mxu0 0
        %790 = vmatprep.subr.bf16.mxu0 0
        %791 = vmatpush1.bf16.msra.mxu0 0
        %792 = vmatprep.subr.bf16.mxu0 0
        %793 = vmatpush1.bf16.msra.mxu0 0
        %794 = vmatprep.subr.bf16.mxu0 0
        %795 = vmatpush1.bf16.msra.mxu0 0
        %796 = vmatprep.subr.bf16.mxu0 0
        %797 = vmatpush1.bf16.msra.mxu0 0
        %798 = vmatprep.subr.bf16.mxu0 0
        %799 = vmatpush1.bf16.msra.mxu0 0
        %800 = vmatprep.subr.bf16.mxu0 0
        %801 = vmatpush1.bf16.msra.mxu0 0
        %802 = vmatprep.subr.bf16.mxu0 0
        %803 = vmatpush1.bf16.msra.mxu0 0
        %804 = vmatprep.subr.bf16.mxu0 0
        %805 = vmatpush1.bf16.msra.mxu0 0
        %806 = vmatprep.subr.bf16.mxu0 0
        %807 = vmatpush1.bf16.msra.mxu0 0
        %808 = vmatprep.subr.bf16.mxu0 0
        %809 = vmatpush1.bf16.msra.mxu0 0
        %810 = vmatprep.mubr.bf16.mxu0 0
        %811 = vmatmul.mubr.bf16.gmra.mrb[0].mxu0 %v772
        %v812 = vpop.f32.mrb[0].mxu0
        %v813 = vadd.f32 0.0, %v812
        %v814 = vpop.f32.mrb[0].mxu0
        %v815 = vpop.f32.mrb[0].mxu0
        %v816 = vpop.f32.mrb[0].mxu0
        %817 = vdwg.mxu0
        %818 = vrot.lane.b32.xlu0 %v697, 120
        %v819 = vpop.permute.xlu0 %818
        %820 = vrot.lane.b32.xlu0 %v697, 88
        %v821 = vpop.permute.xlu0 %820
        %v823 = vsel %vm710, %v819, 0
        %v826 = vsel %vm710, %v821, 0
        %828 = vmatprep.subr.bf16.mxu0 0
        %829 = vmatpush1.bf16.xpose.msra.mxu0 %v826
        %830 = vmatprep.subr.bf16.mxu0 0
        %831 = vmatpush1.bf16.xpose.msra.mxu0 0
        %832 = vmatprep.subr.bf16.mxu0 0
        %833 = vmatpush1.bf16.xpose.msra.mxu0 0
        %834 = vmatprep.subr.bf16.mxu0 0
        %835 = vmatpush1.bf16.xpose.msra.mxu0 0
        %836 = vmatprep.subr.bf16.mxu0 0
        %837 = vmatpush1.bf16.xpose.msra.mxu0 0
        %838 = vmatprep.subr.bf16.mxu0 0
        %839 = vmatpush1.bf16.xpose.msra.mxu0 0
        %840 = vmatprep.subr.bf16.mxu0 0
        %841 = vmatpush1.bf16.xpose.msra.mxu0 0
        %842 = vmatprep.subr.bf16.mxu0 0
        %843 = vmatpush1.bf16.xpose.msra.mxu0 0
        %844 = vmatprep.subr.bf16.mxu0 0
        %845 = vmatpush1.bf16.xpose.msra.mxu0 0
        %846 = vmatprep.subr.bf16.mxu0 0
        %847 = vmatpush1.bf16.xpose.msra.mxu0 0
        %848 = vmatprep.subr.bf16.mxu0 0
        %849 = vmatpush1.bf16.xpose.msra.mxu0 0
        %850 = vmatprep.subr.bf16.mxu0 0
        %851 = vmatpush1.bf16.xpose.msra.mxu0 0
        %852 = vmatprep.subr.bf16.mxu0 0
        %853 = vmatpush1.bf16.xpose.msra.mxu0 0
        %854 = vmatprep.subr.bf16.mxu0 0
        %855 = vmatpush1.bf16.xpose.msra.mxu0 0
        %856 = vmatprep.subr.bf16.mxu0 0
        %857 = vmatpush1.bf16.xpose.msra.mxu0 0
        %858 = vmatprep.subr.bf16.mxu0 0
        %859 = vmatpush1.bf16.xpose.msra.mxu0 0
        %860 = vmatprep.mubr.bf16.mxu0 0
        %861 = vmatmul.mubr.bf16.gmra.mrb[0].mxu0 %v823
        %v862 = vpop.f32.mrb[0].mxu0
        %v863 = vadd.f32 %v706, %v862
        %v864 = vpop.f32.mrb[0].mxu0
        %v865 = vpop.f32.mrb[0].mxu0
        %v866 = vpop.f32.mrb[0].mxu0
        %867 = vdwg.mxu0
        %v868 = vsel %vm710, %v863, -inf
        %869 = vmax.xlane.f32.xlu0 %v868
        %v870 = vpop.xlane.xlu0 %869
        %v871 = vsub.f32 %v863, %v870
        %v872 = vmul.f32 %v871, 1.442695
        %v873 = vpow.pop %v872
        %v874 = vsel %vm710, %v873, 0.0
        %875 = vadd.xlane.f32.xlu0 %v874
        %v876 = vpop.xlane.xlu0 %875
        %v877 = vrcp.pop %v876
        %v878 = vmul.f32 %v873, %v877
        %v879 = vpack.c.bf16 %v878, %v878
        %880 = vrot.lane.b32.xlu0 %v697, 56
        %v881 = vpop.permute.xlu0 %880
        %v883 = vsel %vm710, %v879, 0
        %v886 = vsel %vm774, %v881, 0
        %888 = vmatprep.subr.bf16.mxu0 0
        %889 = vmatpush1.bf16.msra.mxu0 %v886
        %890 = vmatprep.subr.bf16.mxu0 0
        %891 = vmatpush1.bf16.msra.mxu0 0
        %892 = vmatprep.subr.bf16.mxu0 0
        %893 = vmatpush1.bf16.msra.mxu0 0
        %894 = vmatprep.subr.bf16.mxu0 0
        %895 = vmatpush1.bf16.msra.mxu0 0
        %896 = vmatprep.subr.bf16.mxu0 0
        %897 = vmatpush1.bf16.msra.mxu0 0
        %898 = vmatprep.subr.bf16.mxu0 0
        %899 = vmatpush1.bf16.msra.mxu0 0
        %900 = vmatprep.subr.bf16.mxu0 0
        %901 = vmatpush1.bf16.msra.mxu0 0
        %902 = vmatprep.subr.bf16.mxu0 0
        %903 = vmatpush1.bf16.msra.mxu0 0
        %904 = vmatprep.subr.bf16.mxu0 0
        %905 = vmatpush1.bf16.msra.mxu0 0
        %906 = vmatprep.subr.bf16.mxu0 0
        %907 = vmatpush1.bf16.msra.mxu0 0
        %908 = vmatprep.subr.bf16.mxu0 0
        %909 = vmatpush1.bf16.msra.mxu0 0
        %910 = vmatprep.subr.bf16.mxu0 0
        %911 = vmatpush1.bf16.msra.mxu0 0
        %912 = vmatprep.subr.bf16.mxu0 0
        %913 = vmatpush1.bf16.msra.mxu0 0
        %914 = vmatprep.subr.bf16.mxu0 0
        %915 = vmatpush1.bf16.msra.mxu0 0
        %916 = vmatprep.subr.bf16.mxu0 0
        %917 = vmatpush1.bf16.msra.mxu0 0
        %918 = vmatprep.subr.bf16.mxu0 0
        %919 = vmatpush1.bf16.msra.mxu0 0
        %920 = vmatprep.mubr.bf16.mxu0 0
        %921 = vmatmul.mubr.bf16.gmra.mrb[0].mxu0 %v883
        %v922 = vpop.f32.mrb[0].mxu0
        %v923 = vadd.f32 0.0, %v922
        %v924 = vpop.f32.mrb[0].mxu0
        %v925 = vpop.f32.mrb[0].mxu0
        %v926 = vpop.f32.mrb[0].mxu0
        %927 = vdwg.mxu0
        %928 = vrot.lane.b32.xlu0 %v697, 112
        %v929 = vpop.permute.xlu0 %928
        %930 = vrot.lane.b32.xlu0 %v697, 80
        %v931 = vpop.permute.xlu0 %930
        %v933 = vsel %vm710, %v929, 0
        %v936 = vsel %vm710, %v931, 0
        %938 = vmatprep.subr.bf16.mxu0 0
        %939 = vmatpush1.bf16.xpose.msra.mxu0 %v936
        %940 = vmatprep.subr.bf16.mxu0 0
        %941 = vmatpush1.bf16.xpose.msra.mxu0 0
        %942 = vmatprep.subr.bf16.mxu0 0
        %943 = vmatpush1.bf16.xpose.msra.mxu0 0
        %944 = vmatprep.subr.bf16.mxu0 0
        %945 = vmatpush1.bf16.xpose.msra.mxu0 0
        %946 = vmatprep.subr.bf16.mxu0 0
        %947 = vmatpush1.bf16.xpose.msra.mxu0 0
        %948 = vmatprep.subr.bf16.mxu0 0
        %949 = vmatpush1.bf16.xpose.msra.mxu0 0
        %950 = vmatprep.subr.bf16.mxu0 0
        %951 = vmatpush1.bf16.xpose.msra.mxu0 0
        %952 = vmatprep.subr.bf16.mxu0 0
        %953 = vmatpush1.bf16.xpose.msra.mxu0 0
        %954 = vmatprep.subr.bf16.mxu0 0
        %955 = vmatpush1.bf16.xpose.msra.mxu0 0
        %956 = vmatprep.subr.bf16.mxu0 0
        %957 = vmatpush1.bf16.xpose.msra.mxu0 0
        %958 = vmatprep.subr.bf16.mxu0 0
        %959 = vmatpush1.bf16.xpose.msra.mxu0 0
        %960 = vmatprep.subr.bf16.mxu0 0
        %961 = vmatpush1.bf16.xpose.msra.mxu0 0
        %962 = vmatprep.subr.bf16.mxu0 0
        %963 = vmatpush1.bf16.xpose.msra.mxu0 0
        %964 = vmatprep.subr.bf16.mxu0 0
        %965 = vmatpush1.bf16.xpose.msra.mxu0 0
        %966 = vmatprep.subr.bf16.mxu0 0
        %967 = vmatpush1.bf16.xpose.msra.mxu0 0
        %968 = vmatprep.subr.bf16.mxu0 0
        %969 = vmatpush1.bf16.xpose.msra.mxu0 0
        %970 = vmatprep.mubr.bf16.mxu0 0
        %971 = vmatmul.mubr.bf16.gmra.mrb[0].mxu0 %v933
        %v972 = vpop.f32.mrb[0].mxu0
        %v973 = vadd.f32 %v706, %v972
        %v974 = vpop.f32.mrb[0].mxu0
        %v975 = vpop.f32.mrb[0].mxu0
        %v976 = vpop.f32.mrb[0].mxu0
        %977 = vdwg.mxu0
        %v978 = vsel %vm710, %v973, -inf
        %979 = vmax.xlane.f32.xlu0 %v978
        %v980 = vpop.xlane.xlu0 %979
        %v981 = vsub.f32 %v973, %v980
        %v982 = vmul.f32 %v981, 1.442695
        %v983 = vpow.pop %v982
        %v984 = vsel %vm710, %v983, 0.0
        %985 = vadd.xlane.f32.xlu0 %v984
        %v986 = vpop.xlane.xlu0 %985
        %v987 = vrcp.pop %v986
        %v988 = vmul.f32 %v983, %v987
        %v989 = vpack.c.bf16 %v988, %v988
        %990 = vrot.lane.b32.xlu0 %v697, 48
        %v991 = vpop.permute.xlu0 %990
        %v993 = vsel %vm710, %v989, 0
        %v996 = vsel %vm774, %v991, 0
        %998 = vmatprep.subr.bf16.mxu0 0
        %999 = vmatpush1.bf16.msra.mxu0 %v996
        %1000 = vmatprep.subr.bf16.mxu0 0
        %1001 = vmatpush1.bf16.msra.mxu0 0
        %1002 = vmatprep.subr.bf16.mxu0 0
        %1003 = vmatpush1.bf16.msra.mxu0 0
        %1004 = vmatprep.subr.bf16.mxu0 0
        %1005 = vmatpush1.bf16.msra.mxu0 0
        %1006 = vmatprep.subr.bf16.mxu0 0
        %1007 = vmatpush1.bf16.msra.mxu0 0
        %1008 = vmatprep.subr.bf16.mxu0 0
        %1009 = vmatpush1.bf16.msra.mxu0 0
        %1010 = vmatprep.subr.bf16.mxu0 0
        %1011 = vmatpush1.bf16.msra.mxu0 0
        %1012 = vmatprep.subr.bf16.mxu0 0
        %1013 = vmatpush1.bf16.msra.mxu0 0
        %1014 = vmatprep.subr.bf16.mxu0 0
        %1015 = vmatpush1.bf16.msra.mxu0 0
        %1016 = vmatprep.subr.bf16.mxu0 0
        %1017 = vmatpush1.bf16.msra.mxu0 0
        %1018 = vmatprep.subr.bf16.mxu0 0
        %1019 = vmatpush1.bf16.msra.mxu0 0
        %1020 = vmatprep.subr.bf16.mxu0 0
        %1021 = vmatpush1.bf16.msra.mxu0 0
        %1022 = vmatprep.subr.bf16.mxu0 0
        %1023 = vmatpush1.bf16.msra.mxu0 0
        %1024 = vmatprep.subr.bf16.mxu0 0
        %1025 = vmatpush1.bf16.msra.mxu0 0
        %1026 = vmatprep.subr.bf16.mxu0 0
        %1027 = vmatpush1.bf16.msra.mxu0 0
        %1028 = vmatprep.subr.bf16.mxu0 0
        %1029 = vmatpush1.bf16.msra.mxu0 0
        %1030 = vmatprep.mubr.bf16.mxu0 0
        %1031 = vmatmul.mubr.bf16.gmra.mrb[0].mxu0 %v993
        %v1032 = vpop.f32.mrb[0].mxu0
        %v1033 = vadd.f32 0.0, %v1032
        %v1034 = vpop.f32.mrb[0].mxu0
        %v1035 = vpop.f32.mrb[0].mxu0
        %v1036 = vpop.f32.mrb[0].mxu0
        %1037 = vdwg.mxu0
        %1038 = vrot.lane.b32.xlu0 %v697, 104
        %v1039 = vpop.permute.xlu0 %1038
        %1040 = vrot.lane.b32.xlu0 %v697, 72
        %v1041 = vpop.permute.xlu0 %1040
        %v1043 = vsel %vm710, %v1039, 0
        %v1046 = vsel %vm710, %v1041, 0
        %1048 = vmatprep.subr.bf16.mxu0 0
        %1049 = vmatpush1.bf16.xpose.msra.mxu0 %v1046
        %1050 = vmatprep.subr.bf16.mxu0 0
        %1051 = vmatpush1.bf16.xpose.msra.mxu0 0
        %1052 = vmatprep.subr.bf16.mxu0 0
        %1053 = vmatpush1.bf16.xpose.msra.mxu0 0
        %1054 = vmatprep.subr.bf16.mxu0 0
        %1055 = vmatpush1.bf16.xpose.msra.mxu0 0
        %1056 = vmatprep.subr.bf16.mxu0 0
        %1057 = vmatpush1.bf16.xpose.msra.mxu0 0
        %1058 = vmatprep.subr.bf16.mxu0 0
        %1059 = vmatpush1.bf16.xpose.msra.mxu0 0
        %1060 = vmatprep.subr.bf16.mxu0 0
        %1061 = vmatpush1.bf16.xpose.msra.mxu0 0
        %1062 = vmatprep.subr.bf16.mxu0 0
        %1063 = vmatpush1.bf16.xpose.msra.mxu0 0
        %1064 = vmatprep.subr.bf16.mxu0 0
        %1065 = vmatpush1.bf16.xpose.msra.mxu0 0
        %1066 = vmatprep.subr.bf16.mxu0 0
        %1067 = vmatpush1.bf16.xpose.msra.mxu0 0
        %1068 = vmatprep.subr.bf16.mxu0 0
        %1069 = vmatpush1.bf16.xpose.msra.mxu0 0
        %1070 = vmatprep.subr.bf16.mxu0 0
        %1071 = vmatpush1.bf16.xpose.msra.mxu0 0
        %1072 = vmatprep.subr.bf16.mxu0 0
        %1073 = vmatpush1.bf16.xpose.msra.mxu0 0
        %1074 = vmatprep.subr.bf16.mxu0 0
        %1075 = vmatpush1.bf16.xpose.msra.mxu0 0
        %1076 = vmatprep.subr.bf16.mxu0 0
        %1077 = vmatpush1.bf16.xpose.msra.mxu0 0
        %1078 = vmatprep.subr.bf16.mxu0 0
        %1079 = vmatpush1.bf16.xpose.msra.mxu0 0
        %1080 = vmatprep.mubr.bf16.mxu0 0
        %1081 = vmatmul.mubr.bf16.gmra.mrb[0].mxu0 %v1043
        %v1082 = vpop.f32.mrb[0].mxu0
        %v1083 = vadd.f32 %v706, %v1082
        %v1084 = vpop.f32.mrb[0].mxu0
        %v1085 = vpop.f32.mrb[0].mxu0
        %v1086 = vpop.f32.mrb[0].mxu0
        %1087 = vdwg.mxu0
        %v1088 = vsel %vm710, %v1083, -inf
        %1089 = vmax.xlane.f32.xlu0 %v1088
        %v1090 = vpop.xlane.xlu0 %1089
        %v1091 = vsub.f32 %v1083, %v1090
        %v1092 = vmul.f32 %v1091, 1.442695
        %v1093 = vpow.pop %v1092
        %v1094 = vsel %vm710, %v1093, 0.0
        %1095 = vadd.xlane.f32.xlu0 %v1094
        %v1096 = vpop.xlane.xlu0 %1095
        %v1097 = vrcp.pop %v1096
        %v1098 = vmul.f32 %v1093, %v1097
        %v1099 = vpack.c.bf16 %v1098, %v1098
        %1100 = vrot.lane.b32.xlu0 %v697, 40
        %v1101 = vpop.permute.xlu0 %1100
        %v1103 = vsel %vm710, %v1099, 0
        %v1106 = vsel %vm774, %v1101, 0
        %1108 = vmatprep.subr.bf16.mxu0 0
        %1109 = vmatpush1.bf16.msra.mxu0 %v1106
        %1110 = vmatprep.subr.bf16.mxu0 0
        %1111 = vmatpush1.bf16.msra.mxu0 0
        %1112 = vmatprep.subr.bf16.mxu0 0
        %1113 = vmatpush1.bf16.msra.mxu0 0
        %1114 = vmatprep.subr.bf16.mxu0 0
        %1115 = vmatpush1.bf16.msra.mxu0 0
        %1116 = vmatprep.subr.bf16.mxu0 0
        %1117 = vmatpush1.bf16.msra.mxu0 0
        %1118 = vmatprep.subr.bf16.mxu0 0
        %1119 = vmatpush1.bf16.msra.mxu0 0
        %1120 = vmatprep.subr.bf16.mxu0 0
        %1121 = vmatpush1.bf16.msra.mxu0 0
        %1122 = vmatprep.subr.bf16.mxu0 0
        %1123 = vmatpush1.bf16.msra.mxu0 0
        %1124 = vmatprep.subr.bf16.mxu0 0
        %1125 = vmatpush1.bf16.msra.mxu0 0
        %1126 = vmatprep.subr.bf16.mxu0 0
        %1127 = vmatpush1.bf16.msra.mxu0 0
        %1128 = vmatprep.subr.bf16.mxu0 0
        %1129 = vmatpush1.bf16.msra.mxu0 0
        %1130 = vmatprep.subr.bf16.mxu0 0
        %1131 = vmatpush1.bf16.msra.mxu0 0
        %1132 = vmatprep.subr.bf16.mxu0 0
        %1133 = vmatpush1.bf16.msra.mxu0 0
        %1134 = vmatprep.subr.bf16.mxu0 0
        %1135 = vmatpush1.bf16.msra.mxu0 0
        %1136 = vmatprep.subr.bf16.mxu0 0
        %1137 = vmatpush1.bf16.msra.mxu0 0
        %1138 = vmatprep.subr.bf16.mxu0 0
        %1139 = vmatpush1.bf16.msra.mxu0 0
        %1140 = vmatprep.mubr.bf16.mxu0 0
        %1141 = vmatmul.mubr.bf16.gmra.mrb[0].mxu0 %v1103
        %v1142 = vpop.f32.mrb[0].mxu0
        %v1143 = vadd.f32 0.0, %v1142
        %v1144 = vpop.f32.mrb[0].mxu0
        %v1145 = vpop.f32.mrb[0].mxu0
        %v1146 = vpop.f32.mrb[0].mxu0
        %1147 = vdwg.mxu0
        %1149 = vrot.lane.b32.xlu0 %v923, 8
        %v1150 = vpop.permute.xlu0 %1149
        %1153 = vrot.lane.b32.xlu0 %v1033, 16
        %v1154 = vpop.permute.xlu0 %1153
        %1157 = vrot.lane.b32.xlu0 %v1143, 24
        %v1158 = vpop.permute.xlu0 %1157
        %v1160 = vsel %vm710, %v813, %v1150
        %vm1161 = vcmask 130048
        %v1162 = vsel %vm1161, %v1160, %v1154
        %vm1163 = vcmask 195584
        %v1164 = vsel %vm1163, %v1162, %v1158
        %v1165 = vpack.c.bf16 %v1164, %v1164
        %v1166 = vld [vmem:[%s9] sm:$0xf]
        %v1167 = vld [vmem:[%s9 + $0x4] sm:$0xf]
        %v1168 = vld [vmem:[%s9 + $0x8] sm:$0xf]
        %v1169 = vld [vmem:[%s9 + $0xc] sm:$0xf]
        %v1170 = vld [vmem:[%s10] sm:$0x1]
        %v1172 = vlaneseq
        %v1173 = vshrl.u32 %v1172, 7
        %v1174 = vsub.s32 0, %v1173
        %v1175 = vrot.slane %v1170, %v1174
        %v1181 = vunpack.c.l.b16 %v1166
        %v1182 = vunpack.c.l.b16 %v1167
        %v1183 = vunpack.c.l.b16 %v1168
        %v1184 = vunpack.c.l.b16 %v1169
        %v1185 = vpack.c.b16 %v1182, %v1181
        %v1186 = vpack.c.b16 %v1184, %v1183
        %v1190 = vsel %vm582, %v1165, 0
        %1192 = vmatprep.subr.bf16.mxu0 0
        %1193 = vmatpush1.bf16.msra.mxu0 %v1185
        %1194 = vmatprep.subr.bf16.mxu0 0
        %1195 = vmatpush1.bf16.msra.mxu0 %v1186
        %1196 = vmatprep.subr.bf16.mxu0 0
        %1197 = vmatpush1.bf16.msra.mxu0 0
        %1198 = vmatprep.subr.bf16.mxu0 0
        %1199 = vmatpush1.bf16.msra.mxu0 0
        %1200 = vmatprep.subr.bf16.mxu0 0
        %1201 = vmatpush1.bf16.msra.mxu0 0
        %1202 = vmatprep.subr.bf16.mxu0 0
        %1203 = vmatpush1.bf16.msra.mxu0 0
        %1204 = vmatprep.subr.bf16.mxu0 0
        %1205 = vmatpush1.bf16.msra.mxu0 0
        %1206 = vmatprep.subr.bf16.mxu0 0
        %1207 = vmatpush1.bf16.msra.mxu0 0
        %1208 = vmatprep.subr.bf16.mxu0 0
        %1209 = vmatpush1.bf16.msra.mxu0 0
        %1210 = vmatprep.subr.bf16.mxu0 0
        %1211 = vmatpush1.bf16.msra.mxu0 0
        %1212 = vmatprep.subr.bf16.mxu0 0
        %1213 = vmatpush1.bf16.msra.mxu0 0
        %1214 = vmatprep.subr.bf16.mxu0 0
        %1215 = vmatpush1.bf16.msra.mxu0 0
        %1216 = vmatprep.subr.bf16.mxu0 0
        %1217 = vmatpush1.bf16.msra.mxu0 0
        %1218 = vmatprep.subr.bf16.mxu0 0
        %1219 = vmatpush1.bf16.msra.mxu0 0
        %1220 = vmatprep.subr.bf16.mxu0 0
        %1221 = vmatpush1.bf16.msra.mxu0 0
        %1222 = vmatprep.subr.bf16.mxu0 0
        %1223 = vmatpush1.bf16.msra.mxu0 0
        %1224 = vmatprep.mubr.bf16.mxu0 0
        %1225 = vmatmul.mubr.bf16.gmra.mrb[0].mxu0 %v1190
        %v1226 = vpop.f32.mrb[0].mxu0
        %v1227 = vadd.f32 %v1175, %v1226
        %v1228 = vpop.f32.mrb[0].mxu0
        %v1229 = vpop.f32.mrb[0].mxu0
        %v1230 = vpop.f32.mrb[0].mxu0
        %1231 = vdwg.mxu0
        %v1232 = vadd.f32 %v1227, %v581
        %v1233 = vld [vmem:[%s11] sm:$0xf]
        %v1234 = vld [vmem:[%s11 + $0x4] sm:$0xf]
        %v1235 = vld [vmem:[%s11 + $0x8] sm:$0xf]
        %v1236 = vld [vmem:[%s11 + $0xc] sm:$0xf]
        %v1237 = vld [vmem:[%s12] sm:$0x1]
        %v1239 = vlaneseq
        %v1240 = vshrl.u32 %v1239, 7
        %v1241 = vsub.s32 0, %v1240
        %v1242 = vrot.slane %v1237, %v1241
        %v1248 = vunpack.c.l.b16 %v1233
        %v1249 = vunpack.c.l.b16 %v1234
        %v1250 = vunpack.c.l.b16 %v1235
        %v1251 = vunpack.c.l.b16 %v1236
        %v1252 = vpack.c.b16 %v1249, %v1248
        %v1253 = vpack.c.b16 %v1251, %v1250
        %v1257 = vsel %vm582, %v630, 0
        %1259 = vmatprep.subr.bf16.mxu0 0
        %1260 = vmatpush1.bf16.msra.mxu0 %v1252
        %1261 = vmatprep.subr.bf16.mxu0 0
        %1262 = vmatpush1.bf16.msra.mxu0 %v1253
        %1263 = vmatprep.subr.bf16.mxu0 0
        %1264 = vmatpush1.bf16.msra.mxu0 0
        %1265 = vmatprep.subr.bf16.mxu0 0
        %1266 = vmatpush1.bf16.msra.mxu0 0
        %1267 = vmatprep.subr.bf16.mxu0 0
        %1268 = vmatpush1.bf16.msra.mxu0 0
        %1269 = vmatprep.subr.bf16.mxu0 0
        %1270 = vmatpush1.bf16.msra.mxu0 0
        %1271 = vmatprep.subr.bf16.mxu0 0
        %1272 = vmatpush1.bf16.msra.mxu0 0
        %1273 = vmatprep.subr.bf16.mxu0 0
        %1274 = vmatpush1.bf16.msra.mxu0 0
        %1275 = vmatprep.subr.bf16.mxu0 0
        %1276 = vmatpush1.bf16.msra.mxu0 0
        %1277 = vmatprep.subr.bf16.mxu0 0
        %1278 = vmatpush1.bf16.msra.mxu0 0
        %1279 = vmatprep.subr.bf16.mxu0 0
        %1280 = vmatpush1.bf16.msra.mxu0 0
        %1281 = vmatprep.subr.bf16.mxu0 0
        %1282 = vmatpush1.bf16.msra.mxu0 0
        %1283 = vmatprep.subr.bf16.mxu0 0
        %1284 = vmatpush1.bf16.msra.mxu0 0
        %1285 = vmatprep.subr.bf16.mxu0 0
        %1286 = vmatpush1.bf16.msra.mxu0 0
        %1287 = vmatprep.subr.bf16.mxu0 0
        %1288 = vmatpush1.bf16.msra.mxu0 0
        %1289 = vmatprep.subr.bf16.mxu0 0
        %1290 = vmatpush1.bf16.msra.mxu0 0
        %1291 = vmatprep.mubr.bf16.mxu0 0
        %1292 = vmatmul.mubr.bf16.gmra.mrb[0].mxu0 %v1257
        %v1293 = vpop.f32.mrb[0].mxu0
        %v1294 = vadd.f32 %v1242, %v1293
        %v1295 = vpop.f32.mrb[0].mxu0
        %v1296 = vpop.f32.mrb[0].mxu0
        %v1297 = vpop.f32.mrb[0].mxu0
        %1298 = vdwg.mxu0
        %v1299 = vmax.f32 %v1294, 0.0
        %v1300 = vpack.c.bf16 %v1299, %v1299
        %v1301 = vld [vmem:[%s13] sm:$0xf]
        %v1302 = vld [vmem:[%s13 + $0x4] sm:$0xf]
        %v1303 = vld [vmem:[%s13 + $0x8] sm:$0xf]
        %v1304 = vld [vmem:[%s13 + $0xc] sm:$0xf]
        %v1305 = vld [vmem:[%s13 + $0x10] sm:$0xf]
        %v1306 = vld [vmem:[%s13 + $0x14] sm:$0xf]
        %v1307 = vld [vmem:[%s13 + $0x18] sm:$0xf]
        %v1308 = vld [vmem:[%s13 + $0x1c] sm:$0xf]
        %v1309 = vld [vmem:[%s14] sm:$0x1]
        %v1311 = vlaneseq
        %v1312 = vshrl.u32 %v1311, 7
        %v1313 = vsub.s32 0, %v1312
        %v1314 = vrot.slane %v1309, %v1313
        %v1324 = vunpack.c.l.b16 %v1301
        %v1325 = vunpack.c.l.b16 %v1302
        %v1326 = vunpack.c.l.b16 %v1303
        %v1327 = vunpack.c.l.b16 %v1304
        %v1328 = vunpack.c.l.b16 %v1305
        %v1329 = vunpack.c.l.b16 %v1306
        %v1330 = vunpack.c.l.b16 %v1307
        %v1331 = vunpack.c.l.b16 %v1308
        %v1332 = vpack.c.b16 %v1325, %v1324
        %v1333 = vpack.c.b16 %v1327, %v1326
        %v1334 = vpack.c.b16 %v1329, %v1328
        %v1335 = vpack.c.b16 %v1331, %v1330
        %vm1340 = vcmask 523264
        %v1342 = vsel %vm1340, %v1300, 0
        %1344 = vmatprep.subr.bf16.mxu0 0
        %1345 = vmatpush1.bf16.msra.mxu0 %v1332
        %1346 = vmatprep.subr.bf16.mxu0 0
        %1347 = vmatpush1.bf16.msra.mxu0 %v1333
        %1348 = vmatprep.subr.bf16.mxu0 0
        %1349 = vmatpush1.bf16.msra.mxu0 %v1334
        %1350 = vmatprep.subr.bf16.mxu0 0
        %1351 = vmatpush1.bf16.msra.mxu0 %v1335
        %1352 = vmatprep.subr.bf16.mxu0 0
        %1353 = vmatpush1.bf16.msra.mxu0 0
        %1354 = vmatprep.subr.bf16.mxu0 0
        %1355 = vmatpush1.bf16.msra.mxu0 0
        %1356 = vmatprep.subr.bf16.mxu0 0
        %1357 = vmatpush1.bf16.msra.mxu0 0
        %1358 = vmatprep.subr.bf16.mxu0 0
        %1359 = vmatpush1.bf16.msra.mxu0 0
        %1360 = vmatprep.subr.bf16.mxu0 0
        %1361 = vmatpush1.bf16.msra.mxu0 0
        %1362 = vmatprep.subr.bf16.mxu0 0
        %1363 = vmatpush1.bf16.msra.mxu0 0
        %1364 = vmatprep.subr.bf16.mxu0 0
        %1365 = vmatpush1.bf16.msra.mxu0 0
        %1366 = vmatprep.subr.bf16.mxu0 0
        %1367 = vmatpush1.bf16.msra.mxu0 0
        %1368 = vmatprep.subr.bf16.mxu0 0
        %1369 = vmatpush1.bf16.msra.mxu0 0
        %1370 = vmatprep.subr.bf16.mxu0 0
        %1371 = vmatpush1.bf16.msra.mxu0 0
        %1372 = vmatprep.subr.bf16.mxu0 0
        %1373 = vmatpush1.bf16.msra.mxu0 0
        %1374 = vmatprep.subr.bf16.mxu0 0
        %1375 = vmatpush1.bf16.msra.mxu0 0
        %1376 = vmatprep.mubr.bf16.mxu0 0
        %1377 = vmatmul.mubr.bf16.gmra.mrb[0].mxu0 %v1342
        %v1378 = vpop.f32.mrb[0].mxu0
        %v1379 = vadd.f32 %v1314, %v1378
        %v1380 = vpop.f32.mrb[0].mxu0
        %v1381 = vpop.f32.mrb[0].mxu0
        %v1382 = vpop.f32.mrb[0].mxu0
        %1383 = vdwg.mxu0
        %v1384 = vadd.f32 %v1232, %v1379
        %1385 = vst.msk [vmem:[%s572] sm:$0xff] %vm582, %v1384
        %s1386 = sand.u32 %s366, 1
        %s1387 = scalar_lea.sflag [#allocation4], %s1386
        %s1388 = sand.u32 %s366, 1
        %s1389 = smul.addr %s1388, 8
        %s1390 = scalar_lea.vmem [#allocation13], %s1389
        // Predicated region
        $region105: #{tpu_custom_call.1} parent=79 // pred_check
          %p1391 = pneg %p376
        $region106: #{tpu_custom_call.1} parent=79 // pred_check_branch
          %1393 = sbr.rel (%p1391) target = $region108
        $region107: #{tpu_custom_call.1} parent=79 // pred_region
          %s1395 = ssub.s32 128, 128
          %1396 = vsyncadd %s1387, %s1395
          %s1397 = smul.addr %s33, 128
          %s1398 = scalar_lea.hbm %s15, %s1397
          %s1400 = sshll.u32 %s1390, 4
          %s1401 = int_to_ptr.vmem [resolvable:$true] %s1400
          %1403 = dma.vmem_to_hbm [thread:$0]  %s1401, 128, %s1398, %s1387
        $region108: #{tpu_custom_call.1} parent=79 // pred_fallthru
          _
      $region80: #{tpu_custom_call.1} parent=5 // pred_fallthru
        _
      %p1404 = scmp.le.s32.totalorder 2, %s28
      // Predicated region
      $region109: #{tpu_custom_call.1} parent=5 // pred_check
        %p1405 = pneg %p1404
      $region110: #{tpu_custom_call.1} parent=5 // pred_check_branch
        %1407 = sbr.rel (%p1405) target = $region112
      $region111: #{tpu_custom_call.1} parent=5 // pred_region
        %s1408 = ssub.s32 %s28, 2
        // Predicated region
        $region113: #{tpu_custom_call.1} parent=111 // pred_check
          %p1409 = pneg %p382
        $region114: #{tpu_custom_call.1} parent=111 // pred_check_branch
          %1411 = sbr.rel (%p1409) target = $region116
        $region115: #{tpu_custom_call.1} parent=111 // pred_region
          %s1412 = sand.u32 %s367, 1
          %s1413 = scalar_lea.sflag [#allocation4], %s1412
          %s1414 = sand.u32 %s367, 1
          %s1415 = smul.addr %s1414, 8
          %s1416 = scalar_lea.vmem [#allocation13], %s1415
          %1417 = dma.done %s1413, 128
        $region116: #{tpu_custom_call.1} parent=111 // pred_fallthru
          _
      $region112: #{tpu_custom_call.1} parent=5 // pred_fallthru
        _
    $region6: #{tpu_custom_call.1} parent=1 // loop_footer
      %s32 = sadd.s32 1, %s28
    $region7: #{tpu_custom_call.1} parent=1 // loop_footer_branch
      %27 = sbr.rel target = $region3
    $region8: #{tpu_custom_call.1} parent=1 // loop_exit
      _
    %1418 = vsyncpa [#allocation3], 1
    %s1419 = scalar_lea.sflag [#allocation3], 1
    %1420 = vsyncpa %s1419, 1
    %1421 = vsyncpa [#allocation6], 1
    %1422 = vsyncpa [#allocation9], 1
    %1423 = vsyncpa [#allocation12], 1
    %1424 = vsyncpa [#allocation4], 1
    %s1425 = scalar_lea.sflag [#allocation4], 1
    %1426 = vsyncpa %s1425, 1

// kernel: tpu_custom_call.1
$region0: #{tpu_custom_call.1}
  #allocation0 [shape = 'u32[]', space=smem, size = 0x4, offset = 0x4, fixed_abs, tag = 'smem constant byte address 0x4 - core index']
  #allocation1 [shape = 'u32[144,128]{1,0:T(1,128)}', space=vmem, size = 0x12000, scoped, tag = 'internal scratch']
  %s0 = inlined_call_operand.vmem [shape: f32[2,8,32], index: 0, kind: input, shape index: {}]
  %s1 = inlined_call_operand.hbm [shape: f32[8,8], index: 1, kind: input, shape index: {}]
  %s2 = inlined_call_operand.vmem [shape: f32[2,1,8], index: 2, kind: input, shape index: {}]
  %s3 = inlined_call_operand.hbm [shape: f32[1,32], index: 3, kind: input, shape index: {}]
  %s4 = inlined_call_operand.hbm [shape: f32[1,32], index: 4, kind: input, shape index: {}]
  %s5 = inlined_call_operand.hbm [shape: f32[1,32], index: 5, kind: input, shape index: {}]
  %s6 = inlined_call_operand.hbm [shape: f32[1,32], index: 6, kind: input, shape index: {}]
  %s7 = inlined_call_operand.vmem [shape: bf16[32,96], index: 7, kind: input, shape index: {}]
  %s8 = inlined_call_operand.hbm [shape: f32[1,96], index: 8, kind: input, shape index: {}]
  %s9 = inlined_call_operand.vmem [shape: bf16[32,32], index: 9, kind: input, shape index: {}]
  %s10 = inlined_call_operand.vmem [shape: f32[1,32], index: 10, kind: input, shape index: {}]
  %s11 = inlined_call_operand.vmem [shape: bf16[32,64], index: 11, kind: input, shape index: {}]
  %s12 = inlined_call_operand.vmem [shape: f32[1,64], index: 12, kind: input, shape index: {}]
  %s13 = inlined_call_operand.vmem [shape: bf16[64,32], index: 13, kind: input, shape index: {}]
  %s14 = inlined_call_operand.vmem [shape: f32[1,32], index: 14, kind: input, shape index: {}]
  %s15 = inlined_call_operand.hbm [shape: f32[2,8,32], index: 15, kind: output, shape index: {}]
  %s16 = sld [smem:[#allocation0]]
  $region117: #{tpu_custom_call.1} parent=0
    _
  %s18 = ssub.s32 1, %s16
  %s19 = scalar_select 0, %s18, %s16
  $region1: #{tpu_custom_call.1} parent=0
    #allocation2 [shape = 'u8[4096]{0}', space=vmem, size = 0x1000, scoped, tag = 'input window, operand 1, single buffered']
    #allocation3 [shape = 's32[2]{0}', space=sflag, size = 0x8, scoped, tag = 'scoped memory for tpu_custom_call.1']
    #allocation4 [shape = 's32[2]{0}', space=sflag, size = 0x8, scoped, tag = 'scoped memory for tpu_custom_call.1']
    #allocation5 [shape = 'u8[512]{0}', space=vmem, size = 0x400, scoped, tag = 'input window, operand 3, single buffered']
    #allocation6 [shape = 's32[1]{0}', space=sflag, size = 0x4, scoped, tag = 'scoped memory for tpu_custom_call.1']
    #allocation7 [shape = 'u8[512]{0}', space=vmem, size = 0x400, scoped, tag = 'input window, operand 4, single buffered']
    #allocation8 [shape = 'u8[512]{0}', space=vmem, size = 0x400, scoped, tag = 'input window, operand 5, single buffered']
    #allocation9 [shape = 's32[1]{0}', space=sflag, size = 0x4, scoped, tag = 'scoped memory for tpu_custom_call.1']
    #allocation10 [shape = 'u8[512]{0}', space=vmem, size = 0x400, scoped, tag = 'input window, operand 6, single buffered']
    #allocation11 [shape = 'u8[512]{0}', space=vmem, size = 0x400, scoped, tag = 'input window, operand 8, single buffered']
    #allocation12 [shape = 's32[1]{0}', space=sflag, size = 0x4, scoped, tag = 'scoped memory for tpu_custom_call.1']
    #allocation13 [shape = 'u8[8192]{0}', space=vmem, size = 0x2000, scoped, tag = 'output window, operand 0']
    %20 = vsyncpa [#allocation3], 0
    %21 = vsyncpa [#allocation6], 0
    %22 = vsyncpa [#allocation9], 0
    %23 = vsyncpa [#allocation12], 0
    %24 = vsyncpa [#allocation4], 0
    %s25 = scalar_lea.sflag [#allocation4], 1
    %26 = vsyncpa %s25, 0
    loop: start=0, step=1, limit=4
    $region2: #{tpu_custom_call.1} parent=1 // loop_pre_header
      _
    $region3: #{tpu_custom_call.1} parent=1 // loop_header
      %s28 = sphi 0, %s32
      %p29 = scmp.ge.s32.totalorder %s28, 4
      %s38 = sphi 0, %s40
      %s41 = sphi 0, %s38
      %s42 = sphi 0, %s41
      %s58 = sphi 0, %s42
      %s62 = sphi 0, %s62
      %s64 = sphi 0, %s62
      %s65 = sphi 0, %s64
      %s79 = sphi 0, %s65
      %s85 = sphi 0, %s87
      %s88 = sphi 0, %s85
      %s89 = sphi 0, %s88
      %s105 = sphi 0, %s89
      %s109 = sphi 0, %s109
      %s111 = sphi 0, %s109
      %s112 = sphi 0, %s111
      %s126 = sphi 0, %s112
      %s130 = sphi 0, %s130
      %s132 = sphi 0, %s130
      %s133 = sphi 0, %s132
      %s147 = sphi 0, %s133
      %s151 = sphi 0, %s151
      %s153 = sphi 0, %s151
      %s154 = sphi 0, %s153
      %s168 = sphi 0, %s154
      %s172 = sphi 0, %s172
      %s174 = sphi 0, %s172
      %s175 = sphi 0, %s174
      %s189 = sphi 0, %s175
      %s193 = sphi 0, %s193
      %s195 = sphi 0, %s193
      %s196 = sphi 0, %s195
      %s210 = sphi 0, %s196
      %s214 = sphi 0, %s214
      %s216 = sphi 0, %s214
      %s217 = sphi 0, %s216
      %s231 = sphi 0, %s217
      %s235 = sphi 0, %s235
      %s237 = sphi 0, %s235
      %s238 = sphi 0, %s237
      %s252 = sphi 0, %s238
      %s256 = sphi 0, %s256
      %s258 = sphi 0, %s256
      %s259 = sphi 0, %s258
      %s273 = sphi 0, %s259
      %s277 = sphi 0, %s277
      %s279 = sphi 0, %s277
      %s280 = sphi 0, %s279
      %s294 = sphi 0, %s280
      %s298 = sphi 0, %s298
      %s300 = sphi 0, %s298
      %s301 = sphi 0, %s300
      %s315 = sphi 0, %s301
      %s319 = sphi 0, %s319
      %s321 = sphi 0, %s319
      %s322 = sphi 0, %s321
      %s336 = sphi 0, %s322
      %s340 = sphi 0, %s340
      %s342 = sphi 0, %s340
      %s343 = sphi 0, %s342
      %s357 = sphi 0, %s343
      %s363 = sphi 0, %s365
      %s366 = sphi 0, %s363
      %s367 = sphi 0, %s366
      %s383 = sphi 0, %s367
    $region4: #{tpu_custom_call.1} parent=1 // loop_header_branch
      %31 = sbr.rel (%p29) target = $region8
    $region5: #{tpu_custom_call.1} parent=1 // loop_body
      %s33 = ssub.s32 %s28, 1
      %s34 = ssub.s32 %s28, 2
      %s35 = sadd.s32 %s28, 1
      %s36 = ssub.s32 %s28, %s35
      %p37 = scmp.eq.s32.totalorder %s36, 0
      %s39 = sadd.s32 %s38, 1
      %s40 = scalar_select %p37, %s38, %s39
      %p43 = pneg %p37
      %p44 = scmp.eq.s32.totalorder %s28, 1
      %p45 = por %p43, %p44
      %p46 = scmp.ne.s32.totalorder %s38, %s41
      %p47 = scmp.eq.s32.totalorder %s28, 0
      %p48 = por %p46, %p47
      %p49 = scmp.ne.s32.totalorder %s38, %s41
      %p50 = scmp.eq.s32.totalorder %s33, 1
      %p51 = por %p49, %p50
      %p52 = scmp.ne.s32.totalorder %s41, %s42
      %p53 = scmp.eq.s32.totalorder %s33, 0
      %p54 = por %p52, %p53
      %p55 = scmp.ne.s32.totalorder %s41, %s42
      %p56 = scmp.eq.s32.totalorder %s34, 1
      %p57 = por %p55, %p56
      %p59 = scmp.ne.s32.totalorder %s42, %s58
      %p60 = scmp.eq.s32.totalorder %s34, 0
      %p61 = por %p59, %p60
      %s63 = sadd.s32 %s62, 1
      %p66 = scmp.eq.s32.totalorder %s28, 1
      %p67 = scmp.ne.s32.totalorder %s62, %s64
      %p68 = scmp.eq.s32.totalorder %s28, 0
      %p69 = por %p67, %p68
      %p70 = scmp.ne.s32.totalorder %s62, %s64
      %p71 = scmp.eq.s32.totalorder %s33, 1
      %p72 = por %p70, %p71
      %p73 = scmp.ne.s32.totalorder %s64, %s65
      %p74 = scmp.eq.s32.totalorder %s33, 0
      %p75 = por %p73, %p74
      %p76 = scmp.ne.s32.totalorder %s64, %s65
      %p77 = scmp.eq.s32.totalorder %s34, 1
      %p78 = por %p76, %p77
      %p80 = scmp.ne.s32.totalorder %s65, %s79
      %p81 = scmp.eq.s32.totalorder %s34, 0
      %p82 = por %p80, %p81
      %s83 = ssub.s32 %s28, %s35
      %p84 = scmp.eq.s32.totalorder %s83, 0
      %s86 = sadd.s32 %s85, 1
      %s87 = scalar_select %p84, %s85, %s86
      %p90 = pneg %p84
      %p91 = scmp.eq.s32.totalorder %s28, 1
      %p92 = por %p90, %p91
      %p93 = scmp.ne.s32.totalorder %s85, %s88
      %p94 = scmp.eq.s32.totalorder %s28, 0
      %p95 = por %p93, %p94
      %p96 = scmp.ne.s32.totalorder %s85, %s88
      %p97 = scmp.eq.s32.totalorder %s33, 1
      %p98 = por %p96, %p97
      %p99 = scmp.ne.s32.totalorder %s88, %s89
      %p100 = scmp.eq.s32.totalorder %s33, 0
      %p101 = por %p99, %p100
      %p102 = scmp.ne.s32.totalorder %s88, %s89
      %p103 = scmp.eq.s32.totalorder %s34, 1
      %p104 = por %p102, %p103
      %p106 = scmp.ne.s32.totalorder %s89, %s105
      %p107 = scmp.eq.s32.totalorder %s34, 0
      %p108 = por %p106, %p107
      %s110 = sadd.s32 %s109, 1
      %p113 = scmp.eq.s32.totalorder %s28, 1
      %p114 = scmp.ne.s32.totalorder %s109, %s111
      %p115 = scmp.eq.s32.totalorder %s28, 0
      %p116 = por %p114, %p115
      %p117 = scmp.ne.s32.totalorder %s109, %s111
      %p118 = scmp.eq.s32.totalorder %s33, 1
      %p119 = por %p117, %p118
      %p120 = scmp.ne.s32.totalorder %s111, %s112
      %p121 = scmp.eq.s32.totalorder %s33, 0
      %p122 = por %p120, %p121
      %p123 = scmp.ne.s32.totalorder %s111, %s112
      %p124 = scmp.eq.s32.totalorder %s34, 1
      %p125 = por %p123, %p124
      %p127 = scmp.ne.s32.totalorder %s112, %s126
      %p128 = scmp.eq.s32.totalorder %s34, 0
      %p129 = por %p127, %p128
      %s131 = sadd.s32 %s130, 1
      %p134 = scmp.eq.s32.totalorder %s28, 1
      %p135 = scmp.ne.s32.totalorder %s130, %s132
      %p136 = scmp.eq.s32.totalorder %s28, 0
      %p137 = por %p135, %p136
      %p138 = scmp.ne.s32.totalorder %s130, %s132
      %p139 = scmp.eq.s32.totalorder %s33, 1
      %p140 = por %p138, %p139
      %p141 = scmp.ne.s32.totalorder %s132, %s133
      %p142 = scmp.eq.s32.totalorder %s33, 0
      %p143 = por %p141, %p142
      %p144 = scmp.ne.s32.totalorder %s132, %s133
      %p145 = scmp.eq.s32.totalorder %s34, 1
      %p146 = por %p144, %p145
      %p148 = scmp.ne.s32.totalorder %s133, %s147
      %p149 = scmp.eq.s32.totalorder %s34, 0
      %p150 = por %p148, %p149
      %s152 = sadd.s32 %s151, 1
      %p155 = scmp.eq.s32.totalorder %s28, 1
      %p156 = scmp.ne.s32.totalorder %s151, %s153
      %p157 = scmp.eq.s32.totalorder %s28, 0
      %p158 = por %p156, %p157
      %p159 = scmp.ne.s32.totalorder %s151, %s153
      %p160 = scmp.eq.s32.totalorder %s33, 1
      %p161 = por %p159, %p160
      %p162 = scmp.ne.s32.totalorder %s153, %s154
      %p163 = scmp.eq.s32.totalorder %s33, 0
      %p164 = por %p162, %p163
      %p165 = scmp.ne.s32.totalorder %s153, %s154
      %p166 = scmp.eq.s32.totalorder %s34, 1
      %p167 = por %p165, %p166
      %p169 = scmp.ne.s32.totalorder %s154, %s168
      %p170 = scmp.eq.s32.totalorder %s34, 0
      %p171 = por %p169, %p170
      %s173 = sadd.s32 %s172, 1
      %p176 = scmp.eq.s32.totalorder %s28, 1
      %p177 = scmp.ne.s32.totalorder %s172, %s174
      %p178 = scmp.eq.s32.totalorder %s28, 0
      %p179 = por %p177, %p178
      %p180 = scmp.ne.s32.totalorder %s172, %s174
      %p181 = scmp.eq.s32.totalorder %s33, 1
      %p182 = por %p180, %p181
      %p183 = scmp.ne.s32.totalorder %s174, %s175
      %p184 = scmp.eq.s32.totalorder %s33, 0
      %p185 = por %p183, %p184
      %p186 = scmp.ne.s32.totalorder %s174, %s175
      %p187 = scmp.eq.s32.totalorder %s34, 1
      %p188 = por %p186, %p187
      %p190 = scmp.ne.s32.totalorder %s175, %s189
      %p191 = scmp.eq.s32.totalorder %s34, 0
      %p192 = por %p190, %p191
      %s194 = sadd.s32 %s193, 1
      %p197 = scmp.eq.s32.totalorder %s28, 1
      %p198 = scmp.ne.s32.totalorder %s193, %s195
      %p199 = scmp.eq.s32.totalorder %s28, 0
      %p200 = por %p198, %p199
      %p201 = scmp.ne.s32.totalorder %s193, %s195
      %p202 = scmp.eq.s32.totalorder %s33, 1
      %p203 = por %p201, %p202
      %p204 = scmp.ne.s32.totalorder %s195, %s196
      %p205 = scmp.eq.s32.totalorder %s33, 0
      %p206 = por %p204, %p205
      %p207 = scmp.ne.s32.totalorder %s195, %s196
      %p208 = scmp.eq.s32.totalorder %s34, 1
      %p209 = por %p207, %p208
      %p211 = scmp.ne.s32.totalorder %s196, %s210
      %p212 = scmp.eq.s32.totalorder %s34, 0
      %p213 = por %p211, %p212
      %s215 = sadd.s32 %s214, 1
      %p218 = scmp.eq.s32.totalorder %s28, 1
      %p219 = scmp.ne.s32.totalorder %s214, %s216
      %p220 = scmp.eq.s32.totalorder %s28, 0
      %p221 = por %p219, %p220
      %p222 = scmp.ne.s32.totalorder %s214, %s216
      %p223 = scmp.eq.s32.totalorder %s33, 1
      %p224 = por %p222, %p223
      %p225 = scmp.ne.s32.totalorder %s216, %s217
      %p226 = scmp.eq.s32.totalorder %s33, 0
      %p227 = por %p225, %p226
      %p228 = scmp.ne.s32.totalorder %s216, %s217
      %p229 = scmp.eq.s32.totalorder %s34, 1
      %p230 = por %p228, %p229
      %p232 = scmp.ne.s32.totalorder %s217, %s231
      %p233 = scmp.eq.s32.totalorder %s34, 0
      %p234 = por %p232, %p233
      %s236 = sadd.s32 %s235, 1
      %p239 = scmp.eq.s32.totalorder %s28, 1
      %p240 = scmp.ne.s32.totalorder %s235, %s237
      %p241 = scmp.eq.s32.totalorder %s28, 0
      %p242 = por %p240, %p241
      %p243 = scmp.ne.s32.totalorder %s235, %s237
      %p244 = scmp.eq.s32.totalorder %s33, 1
      %p245 = por %p243, %p244
      %p246 = scmp.ne.s32.totalorder %s237, %s238
      %p247 = scmp.eq.s32.totalorder %s33, 0
      %p248 = por %p246, %p247
      %p249 = scmp.ne.s32.totalorder %s237, %s238
      %p250 = scmp.eq.s32.totalorder %s34, 1
      %p251 = por %p249, %p250
      %p253 = scmp.ne.s32.totalorder %s238, %s252
      %p254 = scmp.eq.s32.totalorder %s34, 0
      %p255 = por %p253, %p254
      %s257 = sadd.s32 %s256, 1
      %p260 = scmp.eq.s32.totalorder %s28, 1
      %p261 = scmp.ne.s32.totalorder %s256, %s258
      %p262 = scmp.eq.s32.totalorder %s28, 0
      %p263 = por %p261, %p262
      %p264 = scmp.ne.s32.totalorder %s256, %s258
      %p265 = scmp.eq.s32.totalorder %s33, 1
      %p266 = por %p264, %p265
      %p267 = scmp.ne.s32.totalorder %s258, %s259
      %p268 = scmp.eq.s32.totalorder %s33, 0
      %p269 = por %p267, %p268
      %p270 = scmp.ne.s32.totalorder %s258, %s259
      %p271 = scmp.eq.s32.totalorder %s34, 1
      %p272 = por %p270, %p271
      %p274 = scmp.ne.s32.totalorder %s259, %s273
      %p275 = scmp.eq.s32.totalorder %s34, 0
      %p276 = por %p274, %p275
      %s278 = sadd.s32 %s277, 1
      %p281 = scmp.eq.s32.totalorder %s28, 1
      %p282 = scmp.ne.s32.totalorder %s277, %s279
      %p283 = scmp.eq.s32.totalorder %s28, 0
      %p284 = por %p282, %p283
      %p285 = scmp.ne.s32.totalorder %s277, %s279
      %p286 = scmp.eq.s32.totalorder %s33, 1
      %p287 = por %p285, %p286
      %p288 = scmp.ne.s32.totalorder %s279, %s280
      %p289 = scmp.eq.s32.totalorder %s33, 0
      %p290 = por %p288, %p289
      %p291 = scmp.ne.s32.totalorder %s279, %s280
      %p292 = scmp.eq.s32.totalorder %s34, 1
      %p293 = por %p291, %p292
      %p295 = scmp.ne.s32.totalorder %s280, %s294
      %p296 = scmp.eq.s32.totalorder %s34, 0
      %p297 = por %p295, %p296
      %s299 = sadd.s32 %s298, 1
      %p302 = scmp.eq.s32.totalorder %s28, 1
      %p303 = scmp.ne.s32.totalorder %s298, %s300
      %p304 = scmp.eq.s32.totalorder %s28, 0
      %p305 = por %p303, %p304
      %p306 = scmp.ne.s32.totalorder %s298, %s300
      %p307 = scmp.eq.s32.totalorder %s33, 1
      %p308 = por %p306, %p307
      %p309 = scmp.ne.s32.totalorder %s300, %s301
      %p310 = scmp.eq.s32.totalorder %s33, 0
      %p311 = por %p309, %p310
      %p312 = scmp.ne.s32.totalorder %s300, %s301
      %p313 = scmp.eq.s32.totalorder %s34, 1
      %p314 = por %p312, %p313
      %p316 = scmp.ne.s32.totalorder %s301, %s315
      %p317 = scmp.eq.s32.totalorder %s34, 0
      %p318 = por %p316, %p317
      %s320 = sadd.s32 %s319, 1
      %p323 = scmp.eq.s32.totalorder %s28, 1
      %p324 = scmp.ne.s32.totalorder %s319, %s321
      %p325 = scmp.eq.s32.totalorder %s28, 0
      %p326 = por %p324, %p325
      %p327 = scmp.ne.s32.totalorder %s319, %s321
      %p328 = scmp.eq.s32.totalorder %s33, 1
      %p329 = por %p327, %p328
      %p330 = scmp.ne.s32.totalorder %s321, %s322
      %p331 = scmp.eq.s32.totalorder %s33, 0
      %p332 = por %p330, %p331
      %p333 = scmp.ne.s32.totalorder %s321, %s322
      %p334 = scmp.eq.s32.totalorder %s34, 1
      %p335 = por %p333, %p334
      %p337 = scmp.ne.s32.totalorder %s322, %s336
      %p338 = scmp.eq.s32.totalorder %s34, 0
      %p339 = por %p337, %p338
      %s341 = sadd.s32 %s340, 1
      %p344 = scmp.eq.s32.totalorder %s28, 1
      %p345 = scmp.ne.s32.totalorder %s340, %s342
      %p346 = scmp.eq.s32.totalorder %s28, 0
      %p347 = por %p345, %p346
      %p348 = scmp.ne.s32.totalorder %s340, %s342
      %p349 = scmp.eq.s32.totalorder %s33, 1
      %p350 = por %p348, %p349
      %p351 = scmp.ne.s32.totalorder %s342, %s343
      %p352 = scmp.eq.s32.totalorder %s33, 0
      %p353 = por %p351, %p352
      %p354 = scmp.ne.s32.totalorder %s342, %s343
      %p355 = scmp.eq.s32.totalorder %s34, 1
      %p356 = por %p354, %p355
      %p358 = scmp.ne.s32.totalorder %s343, %s357
      %p359 = scmp.eq.s32.totalorder %s34, 0
      %p360 = por %p358, %p359
      %s361 = ssub.s32 %s28, %s35
      %p362 = scmp.eq.s32.totalorder %s361, 0
      %s364 = sadd.s32 %s363, 1
      %s365 = scalar_select %p362, %s363, %s364
      %p368 = pneg %p362
      %p369 = scmp.eq.s32.totalorder %s28, 1
      %p370 = por %p368, %p369
      %p371 = scmp.ne.s32.totalorder %s363, %s366
      %p372 = scmp.eq.s32.totalorder %s28, 0
      %p373 = por %p371, %p372
      %p374 = scmp.ne.s32.totalorder %s363, %s366
      %p375 = scmp.eq.s32.totalorder %s33, 1
      %p376 = por %p374, %p375
      %p377 = scmp.ne.s32.totalorder %s366, %s367
      %p378 = scmp.eq.s32.totalorder %s33, 0
      %p379 = por %p377, %p378
      %p380 = scmp.ne.s32.totalorder %s366, %s367
      %p381 = scmp.eq.s32.totalorder %s34, 1
      %p382 = por %p380, %p381
      %p384 = scmp.ne.s32.totalorder %s367, %s383
      %p385 = scmp.eq.s32.totalorder %s34, 0
      %p386 = por %p384, %p385
      %p387 = scmp.le.s32.totalorder 1, %s28
      %p388 = scmp.lt.s32.totalorder %s28, 3
      %p389 = pnand %p387, %p388
      %p390 = pneg %p389
      // Predicated region
      $region9: #{tpu_custom_call.1} parent=5 // pred_check
        _
      $region10: #{tpu_custom_call.1} parent=5 // pred_check_branch
        %392 = sbr.rel (%p389) target = $region12
      $region11: #{tpu_custom_call.1} parent=5 // pred_region
        %s393 = ssub.s32 %s28, 1
        // Predicated region
        $region13: #{tpu_custom_call.1} parent=11 // pred_check
          %p394 = pneg %p75
        $region14: #{tpu_custom_call.1} parent=11 // pred_check_branch
          %396 = sbr.rel (%p394) target = $region16
        $region15: #{tpu_custom_call.1} parent=11 // pred_region
          %s398 = ssub.s32 128, 128
          %399 = vsyncadd [#allocation3], %s398
          %s401 = sshll.u32 [#allocation2], 4
          %s402 = int_to_ptr.vmem [resolvable:$true] %s401
          %404 = dma.hbm_to_vmem [thread:$0]  %s1, 128, %s402, [#allocation3]
        $region16: #{tpu_custom_call.1} parent=11 // pred_fallthru
          _
        // Predicated region
        $region17: #{tpu_custom_call.1} parent=11 // pred_check
          %p405 = pneg %p122
        $region18: #{tpu_custom_call.1} parent=11 // pred_check_branch
          %407 = sbr.rel (%p405) target = $region20
        $region19: #{tpu_custom_call.1} parent=11 // pred_region
          %s409 = ssub.s32 16, 16
          %410 = vsyncadd [#allocation6], %s409
          %s412 = sshll.u32 [#allocation5], 4
          %s413 = int_to_ptr.vmem [resolvable:$true] %s412
          %415 = dma.hbm_to_vmem [thread:$0]  %s3, 16, %s413, [#allocation6]
        $region20: #{tpu_custom_call.1} parent=11 // pred_fallthru
          _
        // Predicated region
        $region21: #{tpu_custom_call.1} parent=11 // pred_check
          %p416 = pneg %p143
        $region22: #{tpu_custom_call.1} parent=11 // pred_check_branch
          %418 = sbr.rel (%p416) target = $region24
        $region23: #{tpu_custom_call.1} parent=11 // pred_region
          %s420 = ssub.s32 16, 16
          %421 = vsyncadd [#allocation6], %s420
          %s423 = sshll.u32 [#allocation7], 4
          %s424 = int_to_ptr.vmem [resolvable:$true] %s423
          %426 = dma.hbm_to_vmem [thread:$0]  %s4, 16, %s424, [#allocation6]
        $region24: #{tpu_custom_call.1} parent=11 // pred_fallthru
          _
        // Predicated region
        $region25: #{tpu_custom_call.1} parent=11 // pred_check
          %p427 = pneg %p164
        $region26: #{tpu_custom_call.1} parent=11 // pred_check_branch
          %429 = sbr.rel (%p427) target = $region28
        $region27: #{tpu_custom_call.1} parent=11 // pred_region
          %s431 = ssub.s32 16, 16
          %432 = vsyncadd [#allocation9], %s431
          %s434 = sshll.u32 [#allocation8], 4
          %s435 = int_to_ptr.vmem [resolvable:$true] %s434
          %437 = dma.hbm_to_vmem [thread:$0]  %s5, 16, %s435, [#allocation9]
        $region28: #{tpu_custom_call.1} parent=11 // pred_fallthru
          _
        // Predicated region
        $region29: #{tpu_custom_call.1} parent=11 // pred_check
          %p438 = pneg %p185
        $region30: #{tpu_custom_call.1} parent=11 // pred_check_branch
          %440 = sbr.rel (%p438) target = $region32
        $region31: #{tpu_custom_call.1} parent=11 // pred_region
          %s442 = ssub.s32 16, 16
          %443 = vsyncadd [#allocation9], %s442
          %s445 = sshll.u32 [#allocation10], 4
          %s446 = int_to_ptr.vmem [resolvable:$true] %s445
          %448 = dma.hbm_to_vmem [thread:$0]  %s6, 16, %s446, [#allocation9]
        $region32: #{tpu_custom_call.1} parent=11 // pred_fallthru
          _
        // Predicated region
        $region33: #{tpu_custom_call.1} parent=11 // pred_check
          %p449 = pneg %p206
        $region34: #{tpu_custom_call.1} parent=11 // pred_check_branch
          %451 = sbr.rel (%p449) target = $region36
        $region35: #{tpu_custom_call.1} parent=11 // pred_region
          _
        $region36: #{tpu_custom_call.1} parent=11 // pred_fallthru
          _
        // Predicated region
        $region37: #{tpu_custom_call.1} parent=11 // pred_check
          %p452 = pneg %p227
        $region38: #{tpu_custom_call.1} parent=11 // pred_check_branch
          %454 = sbr.rel (%p452) target = $region40
        $region39: #{tpu_custom_call.1} parent=11 // pred_region
          %s456 = ssub.s32 16, 16
          %457 = vsyncadd [#allocation12], %s456
          %s459 = sshll.u32 [#allocation11], 4
          %s460 = int_to_ptr.vmem [resolvable:$true] %s459
          %462 = dma.hbm_to_vmem [thread:$0]  %s8, 16, %s460, [#allocation12]
        $region40: #{tpu_custom_call.1} parent=11 // pred_fallthru
          _
        // Predicated region
        $region41: #{tpu_custom_call.1} parent=11 // pred_check
          %p463 = pneg %p248
        $region42: #{tpu_custom_call.1} parent=11 // pred_check_branch
          %465 = sbr.rel (%p463) target = $region44
        $region43: #{tpu_custom_call.1} parent=11 // pred_region
          _
        $region44: #{tpu_custom_call.1} parent=11 // pred_fallthru
          _
        // Predicated region
        $region45: #{tpu_custom_call.1} parent=11 // pred_check
          %p466 = pneg %p269
        $region46: #{tpu_custom_call.1} parent=11 // pred_check_branch
          %468 = sbr.rel (%p466) target = $region48
        $region47: #{tpu_custom_call.1} parent=11 // pred_region
          _
        $region48: #{tpu_custom_call.1} parent=11 // pred_fallthru
          _
        // Predicated region
        $region49: #{tpu_custom_call.1} parent=11 // pred_check
          %p469 = pneg %p290
        $region50: #{tpu_custom_call.1} parent=11 // pred_check_branch
          %471 = sbr.rel (%p469) target = $region52
        $region51: #{tpu_custom_call.1} parent=11 // pred_region
          _
        $region52: #{tpu_custom_call.1} parent=11 // pred_fallthru
          _
        // Predicated region
        $region53: #{tpu_custom_call.1} parent=11 // pred_check
          %p472 = pneg %p311
        $region54: #{tpu_custom_call.1} parent=11 // pred_check_branch
          %474 = sbr.rel (%p472) target = $region56
        $region55: #{tpu_custom_call.1} parent=11 // pred_region
          _
        $region56: #{tpu_custom_call.1} parent=11 // pred_fallthru
          _
        // Predicated region
        $region57: #{tpu_custom_call.1} parent=11 // pred_check
          %p475 = pneg %p332
        $region58: #{tpu_custom_call.1} parent=11 // pred_check_branch
          %477 = sbr.rel (%p475) target = $region60
        $region59: #{tpu_custom_call.1} parent=11 // pred_region
          _
        $region60: #{tpu_custom_call.1} parent=11 // pred_fallthru
          _
        // Predicated region
        $region61: #{tpu_custom_call.1} parent=11 // pred_check
          %p478 = pneg %p353
        $region62: #{tpu_custom_call.1} parent=11 // pred_check_branch
          %480 = sbr.rel (%p478) target = $region64
        $region63: #{tpu_custom_call.1} parent=11 // pred_region
          _
        $region64: #{tpu_custom_call.1} parent=11 // pred_fallthru
          _
      $region12: #{tpu_custom_call.1} parent=5 // pred_fallthru
        _
      %p481 = scmp.lt.s32.totalorder %s28, 2
      // Predicated region
      $region65: #{tpu_custom_call.1} parent=5 // pred_check
        %p482 = pneg %p481
      $region66: #{tpu_custom_call.1} parent=5 // pred_check_branch
        %484 = sbr.rel (%p482) target = $region68
      $region67: #{tpu_custom_call.1} parent=5 // pred_region
        // Predicated region
        $region69: #{tpu_custom_call.1} parent=67 // pred_check
          %p485 = pneg %p48
        $region70: #{tpu_custom_call.1} parent=67 // pred_check_branch
          %487 = sbr.rel (%p485) target = $region72
        $region71: #{tpu_custom_call.1} parent=67 // pred_region
          %p488 = scmp.lt.s32.totalorder %s28, 1
          %s489 = scalar_select %p488, %s28, 1
          %s490 = smul.addr %s489, 8
          %s491 = scalar_lea.vmem %s0, %s490
        $region72: #{tpu_custom_call.1} parent=67 // pred_fallthru
          _
        // Predicated region
        $region73: #{tpu_custom_call.1} parent=67 // pred_check
          %p492 = pneg %p95
        $region74: #{tpu_custom_call.1} parent=67 // pred_check_branch
          %494 = sbr.rel (%p492) target = $region76
        $region75: #{tpu_custom_call.1} parent=67 // pred_region
          %p495 = scmp.lt.s32.totalorder %s28, 1
          %s496 = scalar_select %p495, %s28, 1
          %s497 = scalar_lea.vmem %s2, %s496
        $region76: #{tpu_custom_call.1} parent=67 // pred_fallthru
          _
      $region68: #{tpu_custom_call.1} parent=5 // pred_fallthru
        _
      %p498 = scmp.le.s32.totalorder 1, %s28
      %p499 = scmp.lt.s32.totalorder %s28, 3
      %p500 = pnand %p498, %p499
      %p501 = pneg %p500
      // Predicated region
      $region77: #{tpu_custom_call.1} parent=5 // pred_check
        _
      $region78: #{tpu_custom_call.1} parent=5 // pred_check_branch
        %503 = sbr.rel (%p500) target = $region80
      $region79: #{tpu_custom_call.1} parent=5 // pred_region
        %s504 = ssub.s32 %s28, 1
        // Predicated region
        $region81: #{tpu_custom_call.1} parent=79 // pred_check
          %p505 = pneg %p75
        $region82: #{tpu_custom_call.1} parent=79 // pred_check_branch
          %507 = sbr.rel (%p505) target = $region84
        $region83: #{tpu_custom_call.1} parent=79 // pred_region
          %508 = dma.done [#allocation3], 128
        $region84: #{tpu_custom_call.1} parent=79 // pred_fallthru
          _
        // Predicated region
        $region85: #{tpu_custom_call.1} parent=79 // pred_check
          %p509 = pneg %p122
        $region86: #{tpu_custom_call.1} parent=79 // pred_check_branch
          %511 = sbr.rel (%p509) target = $region88
        $region87: #{tpu_custom_call.1} parent=79 // pred_region
          %512 = dma.done [#allocation6], 16
        $region88: #{tpu_custom_call.1} parent=79 // pred_fallthru
          _
        // Predicated region
        $region89: #{tpu_custom_call.1} parent=79 // pred_check
          %p513 = pneg %p143
        $region90: #{tpu_custom_call.1} parent=79 // pred_check_branch
          %515 = sbr.rel (%p513) target = $region92
        $region91: #{tpu_custom_call.1} parent=79 // pred_region
          %516 = dma.done [#allocation6], 16
        $region92: #{tpu_custom_call.1} parent=79 // pred_fallthru
          _
        // Predicated region
        $region93: #{tpu_custom_call.1} parent=79 // pred_check
          %p517 = pneg %p164
        $region94: #{tpu_custom_call.1} parent=79 // pred_check_branch
          %519 = sbr.rel (%p517) target = $region96
        $region95: #{tpu_custom_call.1} parent=79 // pred_region
          %520 = dma.done [#allocation9], 16
        $region96: #{tpu_custom_call.1} parent=79 // pred_fallthru
          _
        // Predicated region
        $region97: #{tpu_custom_call.1} parent=79 // pred_check
          %p521 = pneg %p185
        $region98: #{tpu_custom_call.1} parent=79 // pred_check_branch
          %523 = sbr.rel (%p521) target = $region100
        $region99: #{tpu_custom_call.1} parent=79 // pred_region
          %524 = dma.done [#allocation9], 16
        $region100: #{tpu_custom_call.1} parent=79 // pred_fallthru
          _
        // Predicated region
        $region101: #{tpu_custom_call.1} parent=79 // pred_check
          %p525 = pneg %p227
        $region102: #{tpu_custom_call.1} parent=79 // pred_check_branch
          %527 = sbr.rel (%p525) target = $region104
        $region103: #{tpu_custom_call.1} parent=79 // pred_region
          %528 = dma.done [#allocation12], 16
        $region104: #{tpu_custom_call.1} parent=79 // pred_fallthru
          _
        %p529 = scmp.lt.s32.totalorder %s33, 1
        %s530 = scalar_select %p529, %s33, 1
        %s531 = smul.addr %s530, 8
        %s532 = scalar_lea.vmem %s0, %s531
        %p533 = pneg %p54
        %p534 = pneg %p51
        %p535 = pneg %p75
        %p536 = pneg %p72
        %p537 = scmp.lt.s32.totalorder %s33, 1
        %s538 = scalar_select %p537, %s33, 1
        %s539 = scalar_lea.vmem %s2, %s538
        %p540 = pneg %p101
        %p541 = pneg %p98
        %p542 = pneg %p122
        %p543 = pneg %p119
        %p544 = pneg %p143
        %p545 = pneg %p140
        %p546 = pneg %p164
        %p547 = pneg %p161
        %p548 = pneg %p185
        %p549 = pneg %p182
        %p550 = pneg %p206
        %p551 = pneg %p203
        %p552 = pneg %p227
        %p553 = pneg %p224
        %p554 = pneg %p248
        %p555 = pneg %p245
        %p556 = pneg %p269
        %p557 = pneg %p266
        %p558 = pneg %p290
        %p559 = pneg %p287
        %p560 = pneg %p311
        %p561 = pneg %p308
        %p562 = pneg %p332
        %p563 = pneg %p329
        %p564 = pneg %p353
        %p565 = pneg %p350
        %p566 = pneg %p379
        %p567 = pneg %p376
        %s568 = sand.u32 %s366, 1
        %s569 = scalar_lea.sflag [#allocation4], %s568
        %s570 = sand.u32 %s366, 1
        %s571 = smul.addr %s570, 8
        %s572 = scalar_lea.vmem [#allocation13], %s571
        %p573 = scmp.lt.s32.totalorder %s33, 1
        %s574 = scalar_select %p573, %s33, 1
        %s575 = smul.addr %s574, 8
        %s576 = scalar_lea.vmem %s0, %s575
        %p577 = scmp.lt.s32.totalorder %s33, 1
        %s578 = scalar_select %p577, %s33, 1
        %s579 = scalar_lea.vmem %s2, %s578
        %v581 = vld [vmem:[%s576] sm:$0xff]
        %vm582 = vcmask 261120
        %v583 = vsel %vm582, %v581, 0.0
        %584 = vadd.xlane.f32.xlu0 %v583
        %v585 = vpop.xlane.xlu0 %584
        %v586 = vrcp.pop 32.0
        %v587 = vmul.f32 %v585, %v586
        %v588 = vsub.f32 %v581, %v587
        %v589 = vmul.f32 %v588, %v588
        %v590 = vsel %vm582, %v589, 0.0
        %591 = vadd.xlane.f32.xlu0 %v590
        %v592 = vpop.xlane.xlu0 %591
        %v593 = vmul.f32 %v592, %v586
        %v594 = vadd.f32 %v593, 1e-05
        %v595 = vrsqrt.pop %v594
        %v596 = vmul.f32 %v588, %v595
        %v597 = vld [vmem:[#allocation5] sm:$0x1]
        %v599 = vlaneseq
        %v600 = vshrl.u32 %v599, 7
        %v601 = vsub.s32 0, %v600
        %v602 = vrot.slane %v597, %v601
        %v604 = vmul.f32 %v596, %v602
        %v605 = vld [vmem:[#allocation7] sm:$0x1]
        %v607 = vlaneseq
        %v608 = vshrl.u32 %v607, 7
        %v609 = vsub.s32 0, %v608
        %v610 = vrot.slane %v605, %v609
        %v612 = vadd.f32 %v604, %v610
        %v613 = vpack.c.bf16 %v612, %v612
        %v614 = vld [vmem:[#allocation8] sm:$0x1]
        %v616 = vlaneseq
        %v617 = vshrl.u32 %v616, 7
        %v618 = vsub.s32 0, %v617
        %v619 = vrot.slane %v614, %v618
        %v621 = vmul.f32 %v596, %v619
        %v622 = vld [vmem:[#allocation10] sm:$0x1]
        %v624 = vlaneseq
        %v625 = vshrl.u32 %v624, 7
        %v626 = vsub.s32 0, %v625
        %v627 = vrot.slane %v622, %v626
        %v629 = vadd.f32 %v621, %v627
        %v630 = vpack.c.bf16 %v629, %v629
        %v631 = vld [vmem:[%s7] sm:$0xf]
        %v632 = vld [vmem:[%s7 + $0x4] sm:$0xf]
        %v633 = vld [vmem:[%s7 + $0x8] sm:$0xf]
        %v634 = vld [vmem:[%s7 + $0xc] sm:$0xf]
        %v635 = vld [vmem:[#allocation11] sm:$0x1]
        %v637 = vlaneseq
        %v638 = vshrl.u32 %v637, 7
        %v639 = vsub.s32 0, %v638
        %v640 = vrot.slane %v635, %v639
        %v646 = vunpack.c.l.b16 %v631
        %v647 = vunpack.c.l.b16 %v632
        %v648 = vunpack.c.l.b16 %v633
        %v649 = vunpack.c.l.b16 %v634
        %v650 = vpack.c.b16 %v647, %v646
        %v651 = vpack.c.b16 %v649, %v648
        %v655 = vsel %vm582, %v613, 0
        %657 = vmatprep.subr.bf16.mxu0 0
        %658 = vmatpush1.bf16.msra.mxu0 %v650
        %659 = vmatprep.subr.bf16.mxu0 0
        %660 = vmatpush1.bf16.msra.mxu0 %v651
        %661 = vmatprep.subr.bf16.mxu0 0
        %662 = vmatpush1.bf16.msra.mxu0 0
        %663 = vmatprep.subr.bf16.mxu0 0
        %664 = vmatpush1.bf16.msra.mxu0 0
        %665 = vmatprep.subr.bf16.mxu0 0
        %666 = vmatpush1.bf16.msra.mxu0 0
        %667 = vmatprep.subr.bf16.mxu0 0
        %668 = vmatpush1.bf16.msra.mxu0 0
        %669 = vmatprep.subr.bf16.mxu0 0
        %670 = vmatpush1.bf16.msra.mxu0 0
        %671 = vmatprep.subr.bf16.mxu0 0
        %672 = vmatpush1.bf16.msra.mxu0 0
        %673 = vmatprep.subr.bf16.mxu0 0
        %674 = vmatpush1.bf16.msra.mxu0 0
        %675 = vmatprep.subr.bf16.mxu0 0
        %676 = vmatpush1.bf16.msra.mxu0 0
        %677 = vmatprep.subr.bf16.mxu0 0
        %678 = vmatpush1.bf16.msra.mxu0 0
        %679 = vmatprep.subr.bf16.mxu0 0
        %680 = vmatpush1.bf16.msra.mxu0 0
        %681 = vmatprep.subr.bf16.mxu0 0
        %682 = vmatpush1.bf16.msra.mxu0 0
        %683 = vmatprep.subr.bf16.mxu0 0
        %684 = vmatpush1.bf16.msra.mxu0 0
        %685 = vmatprep.subr.bf16.mxu0 0
        %686 = vmatpush1.bf16.msra.mxu0 0
        %687 = vmatprep.subr.bf16.mxu0 0
        %688 = vmatpush1.bf16.msra.mxu0 0
        %689 = vmatprep.mubr.bf16.mxu0 0
        %690 = vmatmul.mubr.bf16.gmra.mrb[0].mxu0 %v655
        %v691 = vpop.f32.mrb[0].mxu0
        %v692 = vadd.f32 %v640, %v691
        %v693 = vpop.f32.mrb[0].mxu0
        %v694 = vpop.f32.mrb[0].mxu0
        %v695 = vpop.f32.mrb[0].mxu0
        %696 = vdwg.mxu0
        %v697 = vpack.c.bf16 %v692, %v692
        %v698 = vld [vmem:[#allocation2] sm:$0xff]
        %v699 = vld [vmem:[%s579] sm:$0x1]
        %v701 = vlaneseq
        %v702 = vshrl.u32 %v701, 7
        %v703 = vsub.s32 0, %v702
        %v704 = vrot.slane %v699, %v703
        %v706 = vadd.f32 %v698, %v704
        %708 = vrot.lane.b32.xlu0 %v697, 96
        %v709 = vpop.permute.xlu0 %708
        %vm710 = vcmask 64512
        %v712 = vsel %vm710, %v697, 0
        %v715 = vsel %vm710, %v709, 0
        %717 = vmatprep.subr.bf16.mxu0 0
        %718 = vmatpush1.bf16.xpose.msra.mxu0 %v715
        %719 = vmatprep.subr.bf16.mxu0 0
        %720 = vmatpush1.bf16.xpose.msra.mxu0 0
        %721 = vmatprep.subr.bf16.mxu0 0
        %722 = vmatpush1.bf16.xpose.msra.mxu0 0
        %723 = vmatprep.subr.bf16.mxu0 0
        %724 = vmatpush1.bf16.xpose.msra.mxu0 0
        %725 = vmatprep.subr.bf16.mxu0 0
        %726 = vmatpush1.bf16.xpose.msra.mxu0 0
        %727 = vmatprep.subr.bf16.mxu0 0
        %728 = vmatpush1.bf16.xpose.msra.mxu0 0
        %729 = vmatprep.subr.bf16.mxu0 0
        %730 = vmatpush1.bf16.xpose.msra.mxu0 0
        %731 = vmatprep.subr.bf16.mxu0 0
        %732 = vmatpush1.bf16.xpose.msra.mxu0 0
        %733 = vmatprep.subr.bf16.mxu0 0
        %734 = vmatpush1.bf16.xpose.msra.mxu0 0
        %735 = vmatprep.subr.bf16.mxu0 0
        %736 = vmatpush1.bf16.xpose.msra.mxu0 0
        %737 = vmatprep.subr.bf16.mxu0 0
        %738 = vmatpush1.bf16.xpose.msra.mxu0 0
        %739 = vmatprep.subr.bf16.mxu0 0
        %740 = vmatpush1.bf16.xpose.msra.mxu0 0
        %741 = vmatprep.subr.bf16.mxu0 0
        %742 = vmatpush1.bf16.xpose.msra.mxu0 0
        %743 = vmatprep.subr.bf16.mxu0 0
        %744 = vmatpush1.bf16.xpose.msra.mxu0 0
        %745 = vmatprep.subr.bf16.mxu0 0
        %746 = vmatpush1.bf16.xpose.msra.mxu0 0
        %747 = vmatprep.subr.bf16.mxu0 0
        %748 = vmatpush1.bf16.xpose.msra.mxu0 0
        %749 = vmatprep.mubr.bf16.mxu0 0
        %750 = vmatmul.mubr.bf16.gmra.mrb[0].mxu0 %v712
        %v751 = vpop.f32.mrb[0].mxu0
        %v752 = vadd.f32 %v706, %v751
        %v753 = vpop.f32.mrb[0].mxu0
        %v754 = vpop.f32.mrb[0].mxu0
        %v755 = vpop.f32.mrb[0].mxu0
        %756 = vdwg.mxu0
        %v757 = vsel %vm710, %v752, -inf
        %758 = vmax.xlane.f32.xlu0 %v757
        %v759 = vpop.xlane.xlu0 %758
        %v760 = vsub.f32 %v752, %v759
        %v761 = vmul.f32 %v760, 1.442695
        %v762 = vpow.pop %v761
        %v763 = vsel %vm710, %v762, 0.0
        %764 = vadd.xlane.f32.xlu0 %v763
        %v765 = vpop.xlane.xlu0 %764
        %v766 = vrcp.pop %v765
        %v767 = vmul.f32 %v762, %v766
        %v768 = vpack.c.bf16 %v767, %v767
        %769 = vrot.lane.b32.xlu0 %v697, 64
        %v770 = vpop.permute.xlu0 %769
        %v772 = vsel %vm710, %v768, 0
        %vm774 = vcmask 1043456
        %v776 = vsel %vm774, %v770, 0
        %778 = vmatprep.subr.bf16.mxu0 0
        %779 = vmatpush1.bf16.msra.mxu0 %v776
        %780 = vmatprep.subr.bf16.mxu0 0
        %781 = vmatpush1.bf16.msra.mxu0 0
        %782 = vmatprep.subr.bf16.mxu0 0
        %783 = vmatpush1.bf16.msra.mxu0 0
        %784 = vmatprep.subr.bf16.mxu0 0
        %785 = vmatpush1.bf16.msra.mxu0 0
        %786 = vmatprep.subr.bf16.mxu0 0
        %787 = vmatpush1.bf16.msra.mxu0 0
        %788 = vmatprep.subr.bf16.mxu0 0
        %789 = vmatpush1.bf16.msra.mxu0 0
        %790 = vmatprep.subr.bf16.mxu0 0
        %791 = vmatpush1.bf16.msra.mxu0 0
        %792 = vmatprep.subr.bf16.mxu0 0
        %793 = vmatpush1.bf16.msra.mxu0 0
        %794 = vmatprep.subr.bf16.mxu0 0
        %795 = vmatpush1.bf16.msra.mxu0 0
        %796 = vmatprep.subr.bf16.mxu0 0
        %797 = vmatpush1.bf16.msra.mxu0 0
        %798 = vmatprep.subr.bf16.mxu0 0
        %799 = vmatpush1.bf16.msra.mxu0 0
        %800 = vmatprep.subr.bf16.mxu0 0
        %801 = vmatpush1.bf16.msra.mxu0 0
        %802 = vmatprep.subr.bf16.mxu0 0
        %803 = vmatpush1.bf16.msra.mxu0 0
        %804 = vmatprep.subr.bf16.mxu0 0
        %805 = vmatpush1.bf16.msra.mxu0 0
        %806 = vmatprep.subr.bf16.mxu0 0
        %807 = vmatpush1.bf16.msra.mxu0 0
        %808 = vmatprep.subr.bf16.mxu0 0
        %809 = vmatpush1.bf16.msra.mxu0 0
        %810 = vmatprep.mubr.bf16.mxu0 0
        %811 = vmatmul.mubr.bf16.gmra.mrb[0].mxu0 %v772
        %v812 = vpop.f32.mrb[0].mxu0
        %v813 = vadd.f32 0.0, %v812
        %v814 = vpop.f32.mrb[0].mxu0
        %v815 = vpop.f32.mrb[0].mxu0
        %v816 = vpop.f32.mrb[0].mxu0
        %817 = vdwg.mxu0
        %818 = vrot.lane.b32.xlu0 %v697, 120
        %v819 = vpop.permute.xlu0 %818
        %820 = vrot.lane.b32.xlu0 %v697, 88
        %v821 = vpop.permute.xlu0 %820
        %v823 = vsel %vm710, %v819, 0
        %v826 = vsel %vm710, %v821, 0
        %828 = vmatprep.subr.bf16.mxu0 0
        %829 = vmatpush1.bf16.xpose.msra.mxu0 %v826
        %830 = vmatprep.subr.bf16.mxu0 0
        %831 = vmatpush1.bf16.xpose.msra.mxu0 0
        %832 = vmatprep.subr.bf16.mxu0 0
        %833 = vmatpush1.bf16.xpose.msra.mxu0 0
        %834 = vmatprep.subr.bf16.mxu0 0
        %835 = vmatpush1.bf16.xpose.msra.mxu0 0
        %836 = vmatprep.subr.bf16.mxu0 0
        %837 = vmatpush1.bf16.xpose.msra.mxu0 0
        %838 = vmatprep.subr.bf16.mxu0 0
        %839 = vmatpush1.bf16.xpose.msra.mxu0 0
        %840 = vmatprep.subr.bf16.mxu0 0
        %841 = vmatpush1.bf16.xpose.msra.mxu0 0
        %842 = vmatprep.subr.bf16.mxu0 0
        %843 = vmatpush1.bf16.xpose.msra.mxu0 0
        %844 = vmatprep.subr.bf16.mxu0 0
        %845 = vmatpush1.bf16.xpose.msra.mxu0 0
        %846 = vmatprep.subr.bf16.mxu0 0
        %847 = vmatpush1.bf16.xpose.msra.mxu0 0
        %848 = vmatprep.subr.bf16.mxu0 0
        %849 = vmatpush1.bf16.xpose.msra.mxu0 0
        %850 = vmatprep.subr.bf16.mxu0 0
        %851 = vmatpush1.bf16.xpose.msra.mxu0 0
        %852 = vmatprep.subr.bf16.mxu0 0
        %853 = vmatpush1.bf16.xpose.msra.mxu0 0
        %854 = vmatprep.subr.bf16.mxu0 0
        %855 = vmatpush1.bf16.xpose.msra.mxu0 0
        %856 = vmatprep.subr.bf16.mxu0 0
        %857 = vmatpush1.bf16.xpose.msra.mxu0 0
        %858 = vmatprep.subr.bf16.mxu0 0
        %859 = vmatpush1.bf16.xpose.msra.mxu0 0
        %860 = vmatprep.mubr.bf16.mxu0 0
        %861 = vmatmul.mubr.bf16.gmra.mrb[0].mxu0 %v823
        %v862 = vpop.f32.mrb[0].mxu0
        %v863 = vadd.f32 %v706, %v862
        %v864 = vpop.f32.mrb[0].mxu0
        %v865 = vpop.f32.mrb[0].mxu0
        %v866 = vpop.f32.mrb[0].mxu0
        %867 = vdwg.mxu0
        %v868 = vsel %vm710, %v863, -inf
        %869 = vmax.xlane.f32.xlu0 %v868
        %v870 = vpop.xlane.xlu0 %869
        %v871 = vsub.f32 %v863, %v870
        %v872 = vmul.f32 %v871, 1.442695
        %v873 = vpow.pop %v872
        %v874 = vsel %vm710, %v873, 0.0
        %875 = vadd.xlane.f32.xlu0 %v874
        %v876 = vpop.xlane.xlu0 %875
        %v877 = vrcp.pop %v876
        %v878 = vmul.f32 %v873, %v877
        %v879 = vpack.c.bf16 %v878, %v878
        %880 = vrot.lane.b32.xlu0 %v697, 56
        %v881 = vpop.permute.xlu0 %880
        %v883 = vsel %vm710, %v879, 0
        %v886 = vsel %vm774, %v881, 0
        %888 = vmatprep.subr.bf16.mxu0 0
        %889 = vmatpush1.bf16.msra.mxu0 %v886
        %890 = vmatprep.subr.bf16.mxu0 0
        %891 = vmatpush1.bf16.msra.mxu0 0
        %892 = vmatprep.subr.bf16.mxu0 0
        %893 = vmatpush1.bf16.msra.mxu0 0
        %894 = vmatprep.subr.bf16.mxu0 0
        %895 = vmatpush1.bf16.msra.mxu0 0
        %896 = vmatprep.subr.bf16.mxu0 0
        %897 = vmatpush1.bf16.msra.mxu0 0
        %898 = vmatprep.subr.bf16.mxu0 0
        %899 = vmatpush1.bf16.msra.mxu0 0
        %900 = vmatprep.subr.bf16.mxu0 0
        %901 = vmatpush1.bf16.msra.mxu0 0
        %902 = vmatprep.subr.bf16.mxu0 0
        %903 = vmatpush1.bf16.msra.mxu0 0
        %904 = vmatprep.subr.bf16.mxu0 0
        %905 = vmatpush1.bf16.msra.mxu0 0
        %906 = vmatprep.subr.bf16.mxu0 0
        %907 = vmatpush1.bf16.msra.mxu0 0
        %908 = vmatprep.subr.bf16.mxu0 0
        %909 = vmatpush1.bf16.msra.mxu0 0
        %910 = vmatprep.subr.bf16.mxu0 0
        %911 = vmatpush1.bf16.msra.mxu0 0
        %912 = vmatprep.subr.bf16.mxu0 0
        %913 = vmatpush1.bf16.msra.mxu0 0
        %914 = vmatprep.subr.bf16.mxu0 0
        %915 = vmatpush1.bf16.msra.mxu0 0
        %916 = vmatprep.subr.bf16.mxu0 0
        %917 = vmatpush1.bf16.msra.mxu0 0
        %918 = vmatprep.subr.bf16.mxu0 0
        %919 = vmatpush1.bf16.msra.mxu0 0
        %920 = vmatprep.mubr.bf16.mxu0 0
        %921 = vmatmul.mubr.bf16.gmra.mrb[0].mxu0 %v883
        %v922 = vpop.f32.mrb[0].mxu0
        %v923 = vadd.f32 0.0, %v922
        %v924 = vpop.f32.mrb[0].mxu0
        %v925 = vpop.f32.mrb[0].mxu0
        %v926 = vpop.f32.mrb[0].mxu0
        %927 = vdwg.mxu0
        %928 = vrot.lane.b32.xlu0 %v697, 112
        %v929 = vpop.permute.xlu0 %928
        %930 = vrot.lane.b32.xlu0 %v697, 80
        %v931 = vpop.permute.xlu0 %930
        %v933 = vsel %vm710, %v929, 0
        %v936 = vsel %vm710, %v931, 0
        %938 = vmatprep.subr.bf16.mxu0 0
        %939 = vmatpush1.bf16.xpose.msra.mxu0 %v936
        %940 = vmatprep.subr.bf16.mxu0 0
        %941 = vmatpush1.bf16.xpose.msra.mxu0 0
        %942 = vmatprep.subr.bf16.mxu0 0
        %943 = vmatpush1.bf16.xpose.msra.mxu0 0
        %944 = vmatprep.subr.bf16.mxu0 0
        %945 = vmatpush1.bf16.xpose.msra.mxu0 0
        %946 = vmatprep.subr.bf16.mxu0 0
        %947 = vmatpush1.bf16.xpose.msra.mxu0 0
        %948 = vmatprep.subr.bf16.mxu0 0
        %949 = vmatpush1.bf16.xpose.msra.mxu0 0
        %950 = vmatprep.subr.bf16.mxu0 0
        %951 = vmatpush1.bf16.xpose.msra.mxu0 0
        %952 = vmatprep.subr.bf16.mxu0 0
        %953 = vmatpush1.bf16.xpose.msra.mxu0 0
        %954 = vmatprep.subr.bf16.mxu0 0
        %955 = vmatpush1.bf16.xpose.msra.mxu0 0
        %956 = vmatprep.subr.bf16.mxu0 0
        %957 = vmatpush1.bf16.xpose.msra.mxu0 0
        %958 = vmatprep.subr.bf16.mxu0 0
        %959 = vmatpush1.bf16.xpose.msra.mxu0 0
        %960 = vmatprep.subr.bf16.mxu0 0
        %961 = vmatpush1.bf16.xpose.msra.mxu0 0
        %962 = vmatprep.subr.bf16.mxu0 0
        %963 = vmatpush1.bf16.xpose.msra.mxu0 0
        %964 = vmatprep.subr.bf16.mxu0 0
        %965 = vmatpush1.bf16.xpose.msra.mxu0 0
        %966 = vmatprep.subr.bf16.mxu0 0
        %967 = vmatpush1.bf16.xpose.msra.mxu0 0
        %968 = vmatprep.subr.bf16.mxu0 0
        %969 = vmatpush1.bf16.xpose.msra.mxu0 0
        %970 = vmatprep.mubr.bf16.mxu0 0
        %971 = vmatmul.mubr.bf16.gmra.mrb[0].mxu0 %v933
        %v972 = vpop.f32.mrb[0].mxu0
        %v973 = vadd.f32 %v706, %v972
        %v974 = vpop.f32.mrb[0].mxu0
        %v975 = vpop.f32.mrb[0].mxu0
        %v976 = vpop.f32.mrb[0].mxu0
        %977 = vdwg.mxu0
        %v978 = vsel %vm710, %v973, -inf
        %979 = vmax.xlane.f32.xlu0 %v978
        %v980 = vpop.xlane.xlu0 %979
        %v981 = vsub.f32 %v973, %v980
        %v982 = vmul.f32 %v981, 1.442695
        %v983 = vpow.pop %v982
        %v984 = vsel %vm710, %v983, 0.0
        %985 = vadd.xlane.f32.xlu0 %v984
        %v986 = vpop.xlane.xlu0 %985
        %v987 = vrcp.pop %v986
        %v988 = vmul.f32 %v983, %v987
        %v989 = vpack.c.bf16 %v988, %v988
        %990 = vrot.lane.b32.xlu0 %v697, 48
        %v991 = vpop.permute.xlu0 %990
        %v993 = vsel %vm710, %v989, 0
        %v996 = vsel %vm774, %v991, 0
        %998 = vmatprep.subr.bf16.mxu0 0
        %999 = vmatpush1.bf16.msra.mxu0 %v996
        %1000 = vmatprep.subr.bf16.mxu0 0
        %1001 = vmatpush1.bf16.msra.mxu0 0
        %1002 = vmatprep.subr.bf16.mxu0 0
        %1003 = vmatpush1.bf16.msra.mxu0 0
        %1004 = vmatprep.subr.bf16.mxu0 0
        %1005 = vmatpush1.bf16.msra.mxu0 0
        %1006 = vmatprep.subr.bf16.mxu0 0
        %1007 = vmatpush1.bf16.msra.mxu0 0
        %1008 = vmatprep.subr.bf16.mxu0 0
        %1009 = vmatpush1.bf16.msra.mxu0 0
        %1010 = vmatprep.subr.bf16.mxu0 0
        %1011 = vmatpush1.bf16.msra.mxu0 0
        %1012 = vmatprep.subr.bf16.mxu0 0
        %1013 = vmatpush1.bf16.msra.mxu0 0
        %1014 = vmatprep.subr.bf16.mxu0 0
        %1015 = vmatpush1.bf16.msra.mxu0 0
        %1016 = vmatprep.subr.bf16.mxu0 0
        %1017 = vmatpush1.bf16.msra.mxu0 0
        %1018 = vmatprep.subr.bf16.mxu0 0
        %1019 = vmatpush1.bf16.msra.mxu0 0
        %1020 = vmatprep.subr.bf16.mxu0 0
        %1021 = vmatpush1.bf16.msra.mxu0 0
        %1022 = vmatprep.subr.bf16.mxu0 0
        %1023 = vmatpush1.bf16.msra.mxu0 0
        %1024 = vmatprep.subr.bf16.mxu0 0
        %1025 = vmatpush1.bf16.msra.mxu0 0
        %1026 = vmatprep.subr.bf16.mxu0 0
        %1027 = vmatpush1.bf16.msra.mxu0 0
        %1028 = vmatprep.subr.bf16.mxu0 0
        %1029 = vmatpush1.bf16.msra.mxu0 0
        %1030 = vmatprep.mubr.bf16.mxu0 0
        %1031 = vmatmul.mubr.bf16.gmra.mrb[0].mxu0 %v993
        %v1032 = vpop.f32.mrb[0].mxu0
        %v1033 = vadd.f32 0.0, %v1032
        %v1034 = vpop.f32.mrb[0].mxu0
        %v1035 = vpop.f32.mrb[0].mxu0
        %v1036 = vpop.f32.mrb[0].mxu0
        %1037 = vdwg.mxu0
        %1038 = vrot.lane.b32.xlu0 %v697, 104
        %v1039 = vpop.permute.xlu0 %1038
        %1040 = vrot.lane.b32.xlu0 %v697, 72
        %v1041 = vpop.permute.xlu0 %1040
        %v1043 = vsel %vm710, %v1039, 0
        %v1046 = vsel %vm710, %v1041, 0
        %1048 = vmatprep.subr.bf16.mxu0 0
        %1049 = vmatpush1.bf16.xpose.msra.mxu0 %v1046
        %1050 = vmatprep.subr.bf16.mxu0 0
        %1051 = vmatpush1.bf16.xpose.msra.mxu0 0
        %1052 = vmatprep.subr.bf16.mxu0 0
        %1053 = vmatpush1.bf16.xpose.msra.mxu0 0
        %1054 = vmatprep.subr.bf16.mxu0 0
        %1055 = vmatpush1.bf16.xpose.msra.mxu0 0
        %1056 = vmatprep.subr.bf16.mxu0 0
        %1057 = vmatpush1.bf16.xpose.msra.mxu0 0
        %1058 = vmatprep.subr.bf16.mxu0 0
        %1059 = vmatpush1.bf16.xpose.msra.mxu0 0
        %1060 = vmatprep.subr.bf16.mxu0 0
        %1061 = vmatpush1.bf16.xpose.msra.mxu0 0
        %1062 = vmatprep.subr.bf16.mxu0 0
        %1063 = vmatpush1.bf16.xpose.msra.mxu0 0
        %1064 = vmatprep.subr.bf16.mxu0 0
        %1065 = vmatpush1.bf16.xpose.msra.mxu0 0
        %1066 = vmatprep.subr.bf16.mxu0 0
        %1067 = vmatpush1.bf16.xpose.msra.mxu0 0
        %1068 = vmatprep.subr.bf16.mxu0 0
        %1069 = vmatpush1.bf16.xpose.msra.mxu0 0
        %1070 = vmatprep.subr.bf16.mxu0 0
        %1071 = vmatpush1.bf16.xpose.msra.mxu0 0
        %1072 = vmatprep.subr.bf16.mxu0 0
        %1073 = vmatpush1.bf16.xpose.msra.mxu0 0
        %1074 = vmatprep.subr.bf16.mxu0 0
        %1075 = vmatpush1.bf16.xpose.msra.mxu0 0
        %1076 = vmatprep.subr.bf16.mxu0 0
        %1077 = vmatpush1.bf16.xpose.msra.mxu0 0
        %1078 = vmatprep.subr.bf16.mxu0 0
        %1079 = vmatpush1.bf16.xpose.msra.mxu0 0
        %1080 = vmatprep.mubr.bf16.mxu0 0
        %1081 = vmatmul.mubr.bf16.gmra.mrb[0].mxu0 %v1043
        %v1082 = vpop.f32.mrb[0].mxu0
        %v1083 = vadd.f32 %v706, %v1082
        %v1084 = vpop.f32.mrb[0].mxu0
        %v1085 = vpop.f32.mrb[0].mxu0
        %v1086 = vpop.f32.mrb[0].mxu0
        %1087 = vdwg.mxu0
        %v1088 = vsel %vm710, %v1083, -inf
        %1089 = vmax.xlane.f32.xlu0 %v1088
        %v1090 = vpop.xlane.xlu0 %1089
        %v1091 = vsub.f32 %v1083, %v1090
        %v1092 = vmul.f32 %v1091, 1.442695
        %v1093 = vpow.pop %v1092
        %v1094 = vsel %vm710, %v1093, 0.0
        %1095 = vadd.xlane.f32.xlu0 %v1094
        %v1096 = vpop.xlane.xlu0 %1095
        %v1097 = vrcp.pop %v1096
        %v1098 = vmul.f32 %v1093, %v1097
        %v1099 = vpack.c.bf16 %v1098, %v1098
        %1100 = vrot.lane.b32.xlu0 %v697, 40
        %v1101 = vpop.permute.xlu0 %1100
        %v1103 = vsel %vm710, %v1099, 0
        %v1106 = vsel %vm774, %v1101, 0
        %1108 = vmatprep.subr.bf16.mxu0 0
        %1109 = vmatpush1.bf16.msra.mxu0 %v1106
        %1110 = vmatprep.subr.bf16.mxu0 0
        %1111 = vmatpush1.bf16.msra.mxu0 0
        %1112 = vmatprep.subr.bf16.mxu0 0
        %1113 = vmatpush1.bf16.msra.mxu0 0
        %1114 = vmatprep.subr.bf16.mxu0 0
        %1115 = vmatpush1.bf16.msra.mxu0 0
        %1116 = vmatprep.subr.bf16.mxu0 0
        %1117 = vmatpush1.bf16.msra.mxu0 0
        %1118 = vmatprep.subr.bf16.mxu0 0
        %1119 = vmatpush1.bf16.msra.mxu0 0
        %1120 = vmatprep.subr.bf16.mxu0 0
        %1121 = vmatpush1.bf16.msra.mxu0 0
        %1122 = vmatprep.subr.bf16.mxu0 0
        %1123 = vmatpush1.bf16.msra.mxu0 0
        %1124 = vmatprep.subr.bf16.mxu0 0
        %1125 = vmatpush1.bf16.msra.mxu0 0
        %1126 = vmatprep.subr.bf16.mxu0 0
        %1127 = vmatpush1.bf16.msra.mxu0 0
        %1128 = vmatprep.subr.bf16.mxu0 0
        %1129 = vmatpush1.bf16.msra.mxu0 0
        %1130 = vmatprep.subr.bf16.mxu0 0
        %1131 = vmatpush1.bf16.msra.mxu0 0
        %1132 = vmatprep.subr.bf16.mxu0 0
        %1133 = vmatpush1.bf16.msra.mxu0 0
        %1134 = vmatprep.subr.bf16.mxu0 0
        %1135 = vmatpush1.bf16.msra.mxu0 0
        %1136 = vmatprep.subr.bf16.mxu0 0
        %1137 = vmatpush1.bf16.msra.mxu0 0
        %1138 = vmatprep.subr.bf16.mxu0 0
        %1139 = vmatpush1.bf16.msra.mxu0 0
        %1140 = vmatprep.mubr.bf16.mxu0 0
        %1141 = vmatmul.mubr.bf16.gmra.mrb[0].mxu0 %v1103
        %v1142 = vpop.f32.mrb[0].mxu0
        %v1143 = vadd.f32 0.0, %v1142
        %v1144 = vpop.f32.mrb[0].mxu0
        %v1145 = vpop.f32.mrb[0].mxu0
        %v1146 = vpop.f32.mrb[0].mxu0
        %1147 = vdwg.mxu0
        %1149 = vrot.lane.b32.xlu0 %v923, 8
        %v1150 = vpop.permute.xlu0 %1149
        %1153 = vrot.lane.b32.xlu0 %v1033, 16
        %v1154 = vpop.permute.xlu0 %1153
        %1157 = vrot.lane.b32.xlu0 %v1143, 24
        %v1158 = vpop.permute.xlu0 %1157
        %v1160 = vsel %vm710, %v813, %v1150
        %vm1161 = vcmask 130048
        %v1162 = vsel %vm1161, %v1160, %v1154
        %vm1163 = vcmask 195584
        %v1164 = vsel %vm1163, %v1162, %v1158
        %v1165 = vpack.c.bf16 %v1164, %v1164
        %v1166 = vld [vmem:[%s9] sm:$0xf]
        %v1167 = vld [vmem:[%s9 + $0x4] sm:$0xf]
        %v1168 = vld [vmem:[%s9 + $0x8] sm:$0xf]
        %v1169 = vld [vmem:[%s9 + $0xc] sm:$0xf]
        %v1170 = vld [vmem:[%s10] sm:$0x1]
        %v1172 = vlaneseq
        %v1173 = vshrl.u32 %v1172, 7
        %v1174 = vsub.s32 0, %v1173
        %v1175 = vrot.slane %v1170, %v1174
        %v1181 = vunpack.c.l.b16 %v1166
        %v1182 = vunpack.c.l.b16 %v1167
        %v1183 = vunpack.c.l.b16 %v1168
        %v1184 = vunpack.c.l.b16 %v1169
        %v1185 = vpack.c.b16 %v1182, %v1181
        %v1186 = vpack.c.b16 %v1184, %v1183
        %v1190 = vsel %vm582, %v1165, 0
        %1192 = vmatprep.subr.bf16.mxu0 0
        %1193 = vmatpush1.bf16.msra.mxu0 %v1185
        %1194 = vmatprep.subr.bf16.mxu0 0
        %1195 = vmatpush1.bf16.msra.mxu0 %v1186
        %1196 = vmatprep.subr.bf16.mxu0 0
        %1197 = vmatpush1.bf16.msra.mxu0 0
        %1198 = vmatprep.subr.bf16.mxu0 0
        %1199 = vmatpush1.bf16.msra.mxu0 0
        %1200 = vmatprep.subr.bf16.mxu0 0
        %1201 = vmatpush1.bf16.msra.mxu0 0
        %1202 = vmatprep.subr.bf16.mxu0 0
        %1203 = vmatpush1.bf16.msra.mxu0 0
        %1204 = vmatprep.subr.bf16.mxu0 0
        %1205 = vmatpush1.bf16.msra.mxu0 0
        %1206 = vmatprep.subr.bf16.mxu0 0
        %1207 = vmatpush1.bf16.msra.mxu0 0
        %1208 = vmatprep.subr.bf16.mxu0 0
        %1209 = vmatpush1.bf16.msra.mxu0 0
        %1210 = vmatprep.subr.bf16.mxu0 0
        %1211 = vmatpush1.bf16.msra.mxu0 0
        %1212 = vmatprep.subr.bf16.mxu0 0
        %1213 = vmatpush1.bf16.msra.mxu0 0
        %1214 = vmatprep.subr.bf16.mxu0 0
        %1215 = vmatpush1.bf16.msra.mxu0 0
        %1216 = vmatprep.subr.bf16.mxu0 0
        %1217 = vmatpush1.bf16.msra.mxu0 0
        %1218 = vmatprep.subr.bf16.mxu0 0
        %1219 = vmatpush1.bf16.msra.mxu0 0
        %1220 = vmatprep.subr.bf16.mxu0 0
        %1221 = vmatpush1.bf16.msra.mxu0 0
        %1222 = vmatprep.subr.bf16.mxu0 0
        %1223 = vmatpush1.bf16.msra.mxu0 0
        %1224 = vmatprep.mubr.bf16.mxu0 0
        %1225 = vmatmul.mubr.bf16.gmra.mrb[0].mxu0 %v1190
        %v1226 = vpop.f32.mrb[0].mxu0
        %v1227 = vadd.f32 %v1175, %v1226
        %v1228 = vpop.f32.mrb[0].mxu0
        %v1229 = vpop.f32.mrb[0].mxu0
        %v1230 = vpop.f32.mrb[0].mxu0
        %1231 = vdwg.mxu0
        %v1232 = vadd.f32 %v1227, %v581
        %v1233 = vld [vmem:[%s11] sm:$0xf]
        %v1234 = vld [vmem:[%s11 + $0x4] sm:$0xf]
        %v1235 = vld [vmem:[%s11 + $0x8] sm:$0xf]
        %v1236 = vld [vmem:[%s11 + $0xc] sm:$0xf]
        %v1237 = vld [vmem:[%s12] sm:$0x1]
        %v1239 = vlaneseq
        %v1240 = vshrl.u32 %v1239, 7
        %v1241 = vsub.s32 0, %v1240
        %v1242 = vrot.slane %v1237, %v1241
        %v1248 = vunpack.c.l.b16 %v1233
        %v1249 = vunpack.c.l.b16 %v1234
        %v1250 = vunpack.c.l.b16 %v1235
        %v1251 = vunpack.c.l.b16 %v1236
        %v1252 = vpack.c.b16 %v1249, %v1248
        %v1253 = vpack.c.b16 %v1251, %v1250
        %v1257 = vsel %vm582, %v630, 0
        %1259 = vmatprep.subr.bf16.mxu0 0
        %1260 = vmatpush1.bf16.msra.mxu0 %v1252
        %1261 = vmatprep.subr.bf16.mxu0 0
        %1262 = vmatpush1.bf16.msra.mxu0 %v1253
        %1263 = vmatprep.subr.bf16.mxu0 0
        %1264 = vmatpush1.bf16.msra.mxu0 0
        %1265 = vmatprep.subr.bf16.mxu0 0
        %1266 = vmatpush1.bf16.msra.mxu0 0
        %1267 = vmatprep.subr.bf16.mxu0 0
        %1268 = vmatpush1.bf16.msra.mxu0 0
        %1269 = vmatprep.subr.bf16.mxu0 0
        %1270 = vmatpush1.bf16.msra.mxu0 0
        %1271 = vmatprep.subr.bf16.mxu0 0
        %1272 = vmatpush1.bf16.msra.mxu0 0
        %1273 = vmatprep.subr.bf16.mxu0 0
        %1274 = vmatpush1.bf16.msra.mxu0 0
        %1275 = vmatprep.subr.bf16.mxu0 0
        %1276 = vmatpush1.bf16.msra.mxu0 0
        %1277 = vmatprep.subr.bf16.mxu0 0
        %1278 = vmatpush1.bf16.msra.mxu0 0
        %1279 = vmatprep.subr.bf16.mxu0 0
        %1280 = vmatpush1.bf16.msra.mxu0 0
        %1281 = vmatprep.subr.bf16.mxu0 0
        %1282 = vmatpush1.bf16.msra.mxu0 0
        %1283 = vmatprep.subr.bf16.mxu0 0
        %1284 = vmatpush1.bf16.msra.mxu0 0
        %1285 = vmatprep.subr.bf16.mxu0 0
        %1286 = vmatpush1.bf16.msra.mxu0 0
        %1287 = vmatprep.subr.bf16.mxu0 0
        %1288 = vmatpush1.bf16.msra.mxu0 0
        %1289 = vmatprep.subr.bf16.mxu0 0
        %1290 = vmatpush1.bf16.msra.mxu0 0
        %1291 = vmatprep.mubr.bf16.mxu0 0
        %1292 = vmatmul.mubr.bf16.gmra.mrb[0].mxu0 %v1257
        %v1293 = vpop.f32.mrb[0].mxu0
        %v1294 = vadd.f32 %v1242, %v1293
        %v1295 = vpop.f32.mrb[0].mxu0
        %v1296 = vpop.f32.mrb[0].mxu0
        %v1297 = vpop.f32.mrb[0].mxu0
        %1298 = vdwg.mxu0
        %v1299 = vmax.f32 %v1294, 0.0
        %v1300 = vpack.c.bf16 %v1299, %v1299
        %v1301 = vld [vmem:[%s13] sm:$0xf]
        %v1302 = vld [vmem:[%s13 + $0x4] sm:$0xf]
        %v1303 = vld [vmem:[%s13 + $0x8] sm:$0xf]
        %v1304 = vld [vmem:[%s13 + $0xc] sm:$0xf]
        %v1305 = vld [vmem:[%s13 + $0x10] sm:$0xf]
        %v1306 = vld [vmem:[%s13 + $0x14] sm:$0xf]
        %v1307 = vld [vmem:[%s13 + $0x18] sm:$0xf]
        %v1308 = vld [vmem:[%s13 + $0x1c] sm:$0xf]
        %v1309 = vld [vmem:[%s14] sm:$0x1]
        %v1311 = vlaneseq
        %v1312 = vshrl.u32 %v1311, 7
        %v1313 = vsub.s32 0, %v1312
        %v1314 = vrot.slane %v1309, %v1313
        %v1324 = vunpack.c.l.b16 %v1301
        %v1325 = vunpack.c.l.b16 %v1302
        %v1326 = vunpack.c.l.b16 %v1303
        %v1327 = vunpack.c.l.b16 %v1304
        %v1328 = vunpack.c.l.b16 %v1305
        %v1329 = vunpack.c.l.b16 %v1306
        %v1330 = vunpack.c.l.b16 %v1307
        %v1331 = vunpack.c.l.b16 %v1308
        %v1332 = vpack.c.b16 %v1325, %v1324
        %v1333 = vpack.c.b16 %v1327, %v1326
        %v1334 = vpack.c.b16 %v1329, %v1328
        %v1335 = vpack.c.b16 %v1331, %v1330
        %vm1340 = vcmask 523264
        %v1342 = vsel %vm1340, %v1300, 0
        %1344 = vmatprep.subr.bf16.mxu0 0
        %1345 = vmatpush1.bf16.msra.mxu0 %v1332
        %1346 = vmatprep.subr.bf16.mxu0 0
        %1347 = vmatpush1.bf16.msra.mxu0 %v1333
        %1348 = vmatprep.subr.bf16.mxu0 0
        %1349 = vmatpush1.bf16.msra.mxu0 %v1334
        %1350 = vmatprep.subr.bf16.mxu0 0
        %1351 = vmatpush1.bf16.msra.mxu0 %v1335
        %1352 = vmatprep.subr.bf16.mxu0 0
        %1353 = vmatpush1.bf16.msra.mxu0 0
        %1354 = vmatprep.subr.bf16.mxu0 0
        %1355 = vmatpush1.bf16.msra.mxu0 0
        %1356 = vmatprep.subr.bf16.mxu0 0
        %1357 = vmatpush1.bf16.msra.mxu0 0
        %1358 = vmatprep.subr.bf16.mxu0 0
        %1359 = vmatpush1.bf16.msra.mxu0 0
        %1360 = vmatprep.subr.bf16.mxu0 0
        %1361 = vmatpush1.bf16.msra.mxu0 0
        %1362 = vmatprep.subr.bf16.mxu0 0
        %1363 = vmatpush1.bf16.msra.mxu0 0
        %1364 = vmatprep.subr.bf16.mxu0 0
        %1365 = vmatpush1.bf16.msra.mxu0 0
        %1366 = vmatprep.subr.bf16.mxu0 0
        %1367 = vmatpush1.bf16.msra.mxu0 0
        %1368 = vmatprep.subr.bf16.mxu0 0
        %1369 = vmatpush1.bf16.msra.mxu0 0
        %1370 = vmatprep.subr.bf16.mxu0 0
        %1371 = vmatpush1.bf16.msra.mxu0 0
        %1372 = vmatprep.subr.bf16.mxu0 0
        %1373 = vmatpush1.bf16.msra.mxu0 0
        %1374 = vmatprep.subr.bf16.mxu0 0
        %1375 = vmatpush1.bf16.msra.mxu0 0
        %1376 = vmatprep.mubr.bf16.mxu0 0
        %1377 = vmatmul.mubr.bf16.gmra.mrb[0].mxu0 %v1342
        %v1378 = vpop.f32.mrb[0].mxu0
        %v1379 = vadd.f32 %v1314, %v1378
        %v1380 = vpop.f32.mrb[0].mxu0
        %v1381 = vpop.f32.mrb[0].mxu0
        %v1382 = vpop.f32.mrb[0].mxu0
        %1383 = vdwg.mxu0
        %v1384 = vadd.f32 %v1232, %v1379
        %1385 = vst.msk [vmem:[%s572] sm:$0xff] %vm582, %v1384
        %s1386 = sand.u32 %s366, 1
        %s1387 = scalar_lea.sflag [#allocation4], %s1386
        %s1388 = sand.u32 %s366, 1
        %s1389 = smul.addr %s1388, 8
        %s1390 = scalar_lea.vmem [#allocation13], %s1389
        // Predicated region
        $region105: #{tpu_custom_call.1} parent=79 // pred_check
          %p1391 = pneg %p376
        $region106: #{tpu_custom_call.1} parent=79 // pred_check_branch
          %1393 = sbr.rel (%p1391) target = $region108
        $region107: #{tpu_custom_call.1} parent=79 // pred_region
          %s1395 = ssub.s32 128, 128
          %1396 = vsyncadd %s1387, %s1395
          %s1397 = smul.addr %s33, 128
          %s1398 = scalar_lea.hbm %s15, %s1397
          %s1400 = sshll.u32 %s1390, 4
          %s1401 = int_to_ptr.vmem [resolvable:$true] %s1400
          %1403 = dma.vmem_to_hbm [thread:$0]  %s1401, 128, %s1398, %s1387
        $region108: #{tpu_custom_call.1} parent=79 // pred_fallthru
          _
      $region80: #{tpu_custom_call.1} parent=5 // pred_fallthru
        _
      %p1404 = scmp.le.s32.totalorder 2, %s28
      // Predicated region
      $region109: #{tpu_custom_call.1} parent=5 // pred_check
        %p1405 = pneg %p1404
      $region110: #{tpu_custom_call.1} parent=5 // pred_check_branch
        %1407 = sbr.rel (%p1405) target = $region112
      $region111: #{tpu_custom_call.1} parent=5 // pred_region
        %s1408 = ssub.s32 %s28, 2
        // Predicated region
        $region113: #{tpu_custom_call.1} parent=111 // pred_check
          %p1409 = pneg %p382
        $region114: #{tpu_custom_call.1} parent=111 // pred_check_branch
          %1411 = sbr.rel (%p1409) target = $region116
        $region115: #{tpu_custom_call.1} parent=111 // pred_region
          %s1412 = sand.u32 %s367, 1
          %s1413 = scalar_lea.sflag [#allocation4], %s1412
          %s1414 = sand.u32 %s367, 1
          %s1415 = smul.addr %s1414, 8
          %s1416 = scalar_lea.vmem [#allocation13], %s1415
          %1417 = dma.done %s1413, 128
        $region116: #{tpu_custom_call.1} parent=111 // pred_fallthru
          _
      $region112: #{tpu_custom_call.1} parent=5 // pred_fallthru
        _
    $region6: #{tpu_custom_call.1} parent=1 // loop_footer
      %s32 = sadd.s32 1, %s28
    $region7: #{tpu_custom_call.1} parent=1 // loop_footer_branch
      %27 = sbr.rel target = $region3
    $region8: #{tpu_custom_call.1} parent=1 // loop_exit
      _
    %1418 = vsyncpa [#allocation3], 1
    %s1419 = scalar_lea.sflag [#allocation3], 1
    %1420 = vsyncpa %s1419, 1
    %1421 = vsyncpa [#allocation6], 1
    %1422 = vsyncpa [#allocation9], 1
    %1423 = vsyncpa [#allocation12], 1
    %1424 = vsyncpa [#allocation4], 1
    %s1425 = scalar_lea.sflag [#allocation4], 1
    %1426 = vsyncpa %s1425, 1

</llo_original>
